<compile_context>
chip_gen: v7x
topology: tpu7x:2x2x1
jax: 0.10.0
libtpu: 0.0.40
codegen_flags: <defaults>
</compile_context>

<pallas_src>
import math
import functools

import jax
import jax.numpy as jnp
from jax import lax
from jax.experimental import pallas as pl
from jax.experimental.pallas import tpu as pltpu


# ----------------------------------------------------------------------------
# Pass 1: RMSNorm + fused K/V projection (+RoPE on K) over sequence tiles
# ----------------------------------------------------------------------------
def kv_norm_kernel(x_ref, cos_ref, sin_ref, ln1_ref, wkv_ref, bkv_ref,
                   xn_ref, k_ref, v_ref, *, num_kv_heads, head_dim, eps):
    half = head_dim // 2
    kv_dim = num_kv_heads * head_dim

    x = x_ref[0]                                              # (tKV, H) f32
    var = jnp.mean(x * x, axis=-1, keepdims=True)
    xn = x * lax.rsqrt(var + eps) * ln1_ref[...]
    xn_ref[0] = xn.astype(jnp.bfloat16)                       # reused by Q path

    kv = jnp.dot(xn.astype(jnp.bfloat16), wkv_ref[...],
                 preferred_element_type=jnp.float32) + bkv_ref[...]

    cos = cos_ref[...]
    sin = sin_ref[...]
    lane = lax.broadcasted_iota(jnp.int32, (1, head_dim), 1)
    sign = jnp.where(lane < half, -1.0, 1.0)                  # rotate_half sign

    for h in range(num_kv_heads):
        lo, hi = h * head_dim, (h + 1) * head_dim
        kh = kv[:, lo:hi]
        vh = kv[:, kv_dim + lo:kv_dim + hi]
        k_rope = kh * cos + pltpu.roll(kh, shift=half, axis=1) * sign * sin
        k_ref[0, :, lo:hi] = k_rope.astype(jnp.bfloat16)
        v_ref[0, :, lo:hi] = vh.astype(jnp.bfloat16)


# ----------------------------------------------------------------------------
# Pass 2: causal attention (flash-style, causal-frontier bounded) + MLP
# ----------------------------------------------------------------------------
def attn_mlp_kernel(x_ref, xn_ref, cos_ref, sin_ref, k_ref, v_ref,
                    wq_ref, bq_ref, wo_ref, ln2_ref, wgu_ref, wd_ref,
                    o_ref, *, num_heads, num_kv_heads, head_dim, inter,
                    tile_s, eps):
    group = num_heads // num_kv_heads
    half = head_dim // 2
    GT = group * tile_s
    q_idx = pl.program_id(1)

    x = x_ref[0]                                              # (tS, H) f32
    xn = xn_ref[0]                                            # (tS, H) bf16

    # Q projection; 1/sqrt(head_dim) is folded into wq/bq by the wrapper.
    q = jnp.dot(xn, wq_ref[...], preferred_element_type=jnp.float32) + bq_ref[...]

    cos = cos_ref[...]
    sin = sin_ref[...]
    lane = lax.broadcasted_iota(jnp.int32, (1, head_dim), 1)
    sign = jnp.where(lane < half, -1.0, 1.0)

    def rope(t):
        return t * cos + pltpu.roll(t, shift=half, axis=1) * sign * sin

    # Global query-row index of this tile, replicated for the grouped heads.
    row_in_tile = lax.broadcasted_iota(jnp.int32, (tile_s, 1), 0)
    q_row = q_idx * tile_s + jnp.tile(row_in_tile, (group, 1))        # (GT, 1)
    col_base = lax.broadcasted_iota(jnp.int32, (1, tile_s), 1)

    # Causal frontier: KV tiles beyond q_idx are fully masked -> skip them.
    n_kv_tiles = q_idx + 1

    ctx_heads = []
    for kvh in range(num_kv_heads):
        lo, hi = kvh * head_dim, (kvh + 1) * head_dim
        # Stack this KV head's `group` query heads along M -> one bigger GEMM.
        qg = jnp.concatenate(
            [rope(q[:, (kvh * group + g) * head_dim:
                       (kvh * group + g + 1) * head_dim])
             for g in range(group)], axis=0).astype(jnp.bfloat16)     # (GT, hd)

        def body(j, carry, lo=lo, hi=hi, qg=qg):
            m, l, acc = carry
            start = pl.multiple_of(j * tile_s, tile_s)
            k_j = k_ref[0, pl.ds(start, tile_s), lo:hi]               # (tS, hd)
            v_j = v_ref[0, pl.ds(start, tile_s), lo:hi]
            s = lax.dot_general(qg, k_j, (((1,), (1,)), ((), ())),
                                preferred_element_type=jnp.float32)   # (GT, tS)
            s = jnp.where(q_row >= j * tile_s + col_base, s, -1e30)
            m_new = jnp.maximum(m, jnp.max(s, axis=-1, keepdims=True))
            alpha = jnp.exp(m - m_new)
            p = jnp.exp(s - m_new)
            l_new = alpha * l + jnp.sum(p, axis=-1, keepdims=True)
            acc_new = alpha * acc + jnp.dot(p.astype(jnp.bfloat16), v_j,
                                            preferred_element_type=jnp.float32)
            return m_new, l_new, acc_new

        m0 = jnp.full((GT, 1), -1e30, jnp.float32)
        l0 = jnp.zeros((GT, 1), jnp.float32)
        a0 = jnp.zeros((GT, head_dim), jnp.float32)
        m, l, acc = lax.fori_loop(0, n_kv_tiles, body, (m0, l0, a0))

        # Every causal row has >=1 unmasked column, so l > 0; the approx EUP
        # reciprocal (~2^-12 rel err) is well inside the bf16 error budget.
        ctx = acc * pl.reciprocal(l, approx=True)                     # (GT, hd)
        for g in range(group):
            ctx_heads.append(ctx[g * tile_s:(g + 1) * tile_s, :])

    # Single fused output projection over all heads (no per-head mini-GEMMs).
    ctx_all = jnp.concatenate(ctx_heads, axis=1).astype(jnp.bfloat16)  # (tS, qd)
    attn = jnp.dot(ctx_all, wo_ref[...], preferred_element_type=jnp.float32)

    h1 = x + attn                                                     # residual 1

    # ------------------------------ MLP (SwiGLU) -----------------------------
    var2 = jnp.mean(h1 * h1, axis=-1, keepdims=True)
    xn2 = (h1 * lax.rsqrt(var2 + eps) * ln2_ref[...]).astype(jnp.bfloat16)
    gu = jnp.dot(xn2, wgu_ref[...], preferred_element_type=jnp.float32)
    gate = gu[:, :inter]
    up = gu[:, inter:]
    act = (gate * jax.nn.sigmoid(gate) * up).astype(jnp.bfloat16)
    o_ref[0] = h1 + jnp.dot(act, wd_ref[...], preferred_element_type=jnp.float32)


# ----------------------------------------------------------------------------
# Host-side wrapper
# ----------------------------------------------------------------------------
def _rope_tables(S, head_dim, rope_theta):
    inv_freq = 1.0 / (rope_theta ** (jnp.arange(0, head_dim, 2,
                                                dtype=jnp.float32) / head_dim))
    pos = jnp.arange(S, dtype=jnp.float32)
    freqs = pos[:, None] * inv_freq[None, :]
    emb = jnp.concatenate([freqs, freqs], axis=-1)                   # (S, hd)
    return jnp.cos(emb), jnp.sin(emb)


def _pick_tile(S, target=256):
    # Largest tile <= target that divides S (prefer multiples of 8).
    if S <= target:
        return S
    for t in range(target, 7, -1):
        if S % t == 0 and t % 8 == 0:
            return t
    for t in range(target, 0, -1):
        if S % t == 0:
            return t
    return S


def _vmem_limit_bytes():
    # Generation-aware scoped-VMEM budget (v5e/v6e: 128 MiB phys, v7x: 64 MiB).
    try:
        cap = pltpu.get_tpu_info().vmem_capacity_bytes
    except Exception:
        cap = 64 * 1024 * 1024
    return int(min(cap * 3 // 4, 100 * 1024 * 1024))


def _const_spec(arr, single_buffer):
    zeros = (0,) * arr.ndim
    if single_buffer:
        # Constant block index -> default double-buffering is pure VMEM waste.
        return pl.BlockSpec(arr.shape, lambda *_: zeros,
                            pipeline_mode=pl.Buffered(1))
    return pl.BlockSpec(arr.shape, lambda *_: zeros)


def _forward(hidden, params, *, num_heads, num_kv_heads, head_dim, eps,
             rope_theta, tile_s, tile_kv, single_buffer_consts):
    B, S, H = hidden.shape
    q_dim = num_heads * head_dim
    kv_dim = num_kv_heads * head_dim
    inter = params['wg'].shape[0]

    tile_s = _pick_tile(S) if tile_s is None else tile_s
    tile_kv = _pick_tile(S) if tile_kv is None else tile_kv
    assert S % tile_s == 0 and S % tile_kv == 0
    n_qt = S // tile_s
    n_kt = S // tile_kv

    cos, sin = _rope_tables(S, head_dim, rope_theta)

    bf16 = jnp.bfloat16
    scale = 1.0 / math.sqrt(head_dim)
    # Fold the 1/sqrt(head_dim) attention scale into the Q projection.
    wq = (params['wq'].T * scale).astype(bf16)                        # (H, q_dim)
    bq = (params['bq'] * scale)[None, :].astype(jnp.float32)
    wkv = jnp.concatenate([params['wk'].T, params['wv'].T], axis=1).astype(bf16)
    bkv = jnp.concatenate([params['bk'], params['bv']])[None, :].astype(jnp.float32)
    wo = params['wo'].T.astype(bf16)                                  # (q_dim, H)
    wgu = jnp.concatenate([params['wg'].T, params['wu'].T], axis=1).astype(bf16)
    wd = params['wd'].T.astype(bf16)                                  # (inter, H)
    ln1 = params['ln1'][None, :].astype(jnp.float32)
    ln2 = params['ln2'][None, :].astype(jnp.float32)

    cparams = pltpu.CompilerParams(
        dimension_semantics=("parallel", "parallel"),
        vmem_limit_bytes=_vmem_limit_bytes())
    csp = functools.partial(_const_spec, single_buffer=single_buffer_consts)

    # -------------- pass 1: RMSNorm + K/V projection (+RoPE on K) -----------
    kv_kernel = functools.partial(kv_norm_kernel, num_kv_heads=num_kv_heads,
                                  head_dim=head_dim, eps=eps)
    xn, k, v = pl.pallas_call(
        kv_kernel,
        out_shape=(jax.ShapeDtypeStruct((B, S, H), bf16),
                   jax.ShapeDtypeStruct((B, S, kv_dim), bf16),
                   jax.ShapeDtypeStruct((B, S, kv_dim), bf16)),
        grid_spec=pltpu.PrefetchScalarGridSpec(
            num_scalar_prefetch=0,
            grid=(B, n_kt),
            in_specs=[
                pl.BlockSpec((1, tile_kv, H), lambda b, s: (b, s, 0)),    # x
                pl.BlockSpec((tile_kv, head_dim), lambda b, s: (s, 0)),   # cos
                pl.BlockSpec((tile_kv, head_dim), lambda b, s: (s, 0)),   # sin
                csp(ln1), csp(wkv), csp(bkv),
            ],
            out_specs=[
                pl.BlockSpec((1, tile_kv, H), lambda b, s: (b, s, 0)),    # xn
                pl.BlockSpec((1, tile_kv, kv_dim), lambda b, s: (b, s, 0)),  # K
                pl.BlockSpec((1, tile_kv, kv_dim), lambda b, s: (b, s, 0)),  # V
            ]),
        compiler_params=cparams,
    )(hidden, cos, sin, ln1, wkv, bkv)

    # -------------- pass 2: attention + output proj + MLP -------------------
    am_kernel = functools.partial(attn_mlp_kernel, num_heads=num_heads,
                                  num_kv_heads=num_kv_heads, head_dim=head_dim,
                                  inter=inter, tile_s=tile_s, eps=eps)
    return pl.pallas_call(
        am_kernel,
        out_shape=jax.ShapeDtypeStruct((B, S, H), jnp.float32),
        grid_spec=pltpu.PrefetchScalarGridSpec(
            num_scalar_prefetch=0,
            grid=(B, n_qt),
            in_specs=[
                pl.BlockSpec((1, tile_s, H), lambda b, q: (b, q, 0)),     # x
                pl.BlockSpec((1, tile_s, H), lambda b, q: (b, q, 0)),     # xn
                pl.BlockSpec((tile_s, head_dim), lambda b, q: (q, 0)),    # cos
                pl.BlockSpec((tile_s, head_dim), lambda b, q: (q, 0)),    # sin
                pl.BlockSpec((1, S, kv_dim), lambda b, q: (b, 0, 0)),     # K full
                pl.BlockSpec((1, S, kv_dim), lambda b, q: (b, 0, 0)),     # V full
                csp(wq), csp(bq), csp(wo), csp(ln2), csp(wgu), csp(wd),
            ],
            out_specs=pl.BlockSpec((1, tile_s, H), lambda b, q: (b, q, 0))),
        compiler_params=cparams,
    )(hidden, xn, cos, sin, k, v, wq, bq, wo, ln2, wgu, wd)


def wedoctor_decoder_layer(hidden, params, *, num_heads, num_kv_heads,
                           head_dim, eps, rope_theta, tile_s=None, tile_kv=None):
    kwargs = dict(num_heads=num_heads, num_kv_heads=num_kv_heads,
                  head_dim=head_dim, eps=eps, rope_theta=rope_theta,
                  tile_s=tile_s, tile_kv=tile_kv)
    try:
        return _forward(hidden, params, single_buffer_consts=True, **kwargs)
    except Exception:
        # pl.Buffered(1) on constant operands is a VMEM-headroom optimization;
        # fall back to default double-buffering if this build rejects it.
        return _forward(hidden, params, single_buffer_consts=False, **kwargs)


# ----------------------------- pure-JAX reference -----------------------------
def reference(hidden, params, *, num_heads, num_kv_heads, head_dim, eps,
              rope_theta):
    B, S, H = hidden.shape
    cos, sin = _rope_tables(S, head_dim, rope_theta)
    half = head_dim // 2

    def rms_norm(v, w):
        var = jnp.mean(v * v, axis=-1, keepdims=True)
        return v * jax.lax.rsqrt(var + eps) * w

    def rope(t):
        t1, t2 = t[..., :half], t[..., half:]
        rot = jnp.concatenate([-t2, t1], axis=-1)
        return t * cos + rot * sin

    x = hidden
    xn = rms_norm(x, params['ln1'])
    q = xn @ params['wq'].T + params['bq']
    k = xn @ params['wk'].T + params['bk']
    v = xn @ params['wv'].T + params['bv']
    q = q.reshape(B, S, num_heads, head_dim).transpose(0, 2, 1, 3)
    k = k.reshape(B, S, num_kv_heads, head_dim).transpose(0, 2, 1, 3)
    v = v.reshape(B, S, num_kv_heads, head_dim).transpose(0, 2, 1, 3)
    q, k = rope(q), rope(k)
    group = num_heads // num_kv_heads
    k = jnp.repeat(k, group, axis=1)
    v = jnp.repeat(v, group, axis=1)
    s = jnp.einsum('bhqd,bhkd->bhqk', q, k) / math.sqrt(head_dim)
    causal = jnp.tril(jnp.ones((S, S), bool))
    s = jnp.where(causal, s, -1e30)
    p = jax.nn.softmax(s, axis=-1)
    attn = jnp.einsum('bhqk,bhkd->bhqd', p, v)
    attn = attn.transpose(0, 2, 1, 3).reshape(B, S, H)
    h1 = x + attn @ params['wo'].T
    xn2 = rms_norm(h1, params['ln2'])
    g = xn2 @ params['wg'].T
    u = xn2 @ params['wu'].T
    return h1 + (jax.nn.silu(g) * u) @ params['wd'].T


if __name__ == "__main__":
    # Small but lane-aligned shapes (head_dim=128 matches real Qwen2 heads).
    B, S = 2, 16
    num_heads, num_kv_heads, head_dim = 4, 2, 128
    H = num_heads * head_dim          # 512
    inter = 128
    eps = 1e-6
    rope_theta = 10000.0

    key = jax.random.PRNGKey(0)
    keys = jax.random.split(key, 12)

    def init(k, shape):
        return 0.02 * jax.random.normal(k, shape, jnp.float32)

    params = dict(
        ln1=jnp.ones((H,), jnp.float32),
        ln2=jnp.ones((H,), jnp.float32),
        wq=init(keys[0], (num_heads * head_dim, H)),
        bq=init(keys[1], (num_heads * head_dim,)),
        wk=init(keys[2], (num_kv_heads * head_dim, H)),
        bk=init(keys[3], (num_kv_heads * head_dim,)),
        wv=init(keys[4], (num_kv_heads * head_dim, H)),
        bv=init(keys[5], (num_kv_heads * head_dim,)),
        wo=init(keys[6], (H, num_heads * head_dim)),
        wg=init(keys[7], (inter, H)),
        wu=init(keys[8], (inter, H)),
        wd=init(keys[9], (H, inter)),
    )
    x = jax.random.normal(keys[10], (B, S, H), jnp.float32)

    out = wedoctor_decoder_layer(x, params, num_heads=num_heads,
                                 num_kv_heads=num_kv_heads,
                                 head_dim=head_dim, eps=eps,
                                 rope_theta=rope_theta)
    jax.block_until_ready(out)

    ref = reference(x, params, num_heads=num_heads, num_kv_heads=num_kv_heads,
                    head_dim=head_dim, eps=eps, rope_theta=rope_theta)
    assert out.shape == (B, S, H)
    # bf16 MXU inputs (f32 accumulation) vs pure-f32 reference -> relaxed tol.
    assert jnp.allclose(out, ref, atol=2e-2, rtol=2e-2), \
        f"max err {jnp.max(jnp.abs(out - ref))}"
    print("KERNEL_OK")
</pallas_src>

<mosaic_0001>
module attributes {stable_mosaic.version = 11 : i64} {
  func.func @kv_norm_kernel(%arg0: i32, %arg1: i32, %arg2: memref<1x16x512xf32, #tpu.memory_space<vmem>>, %arg3: memref<16x128xf32, #tpu.memory_space<vmem>>, %arg4: memref<16x128xf32, #tpu.memory_space<vmem>>, %arg5: memref<1x512xf32, #tpu.memory_space<vmem>>, %arg6: memref<512x512xbf16, #tpu.memory_space<vmem>>, %arg7: memref<1x512xf32, #tpu.memory_space<vmem>>, %arg8: memref<1x16x512xbf16, #tpu.memory_space<vmem>>, %arg9: memref<1x16x256xbf16, #tpu.memory_space<vmem>>, %arg10: memref<1x16x256xbf16, #tpu.memory_space<vmem>>) attributes {dimension_semantics = [#tpu.dimension_semantics<parallel>, #tpu.dimension_semantics<parallel>], iteration_bounds = array<i64: 2, 1>, scalar_prefetch = 0 : i64, scratch_operands = 0 : i64, tpu.core_type = #tpu.core_type<tc>, window_params = [{transform_indices = @transform_0, window_bounds = array<i64: 1, 16, 512>}, {transform_indices = @transform_1, window_bounds = array<i64: 16, 128>}, {transform_indices = @transform_2, window_bounds = array<i64: 16, 128>}, {pipeline_mode = #tpu.pipeline_mode<synchronous>, transform_indices = @transform_3, window_bounds = array<i64: 1, 512>}, {pipeline_mode = #tpu.pipeline_mode<synchronous>, transform_indices = @transform_4, window_bounds = array<i64: 512, 512>}, {pipeline_mode = #tpu.pipeline_mode<synchronous>, transform_indices = @transform_5, window_bounds = array<i64: 1, 512>}, {transform_indices = @transform_6, window_bounds = array<i64: 1, 16, 512>}, {transform_indices = @transform_7, window_bounds = array<i64: 1, 16, 256>}, {transform_indices = @transform_8, window_bounds = array<i64: 1, 16, 256>}]} {
    %c0 = arith.constant 0 : index
    %c0_0 = arith.constant 0 : index
    %c0_1 = arith.constant 0 : index
    %0 = vector.load %arg2[%c0, %c0_0, %c0_1] : memref<1x16x512xf32, #tpu.memory_space<vmem>>, vector<1x16x512xf32>
    %1 = vector.shape_cast %0 : vector<1x16x512xf32> to vector<16x512xf32>
    %2 = arith.mulf %1, %1 : vector<16x512xf32>
    %cst = arith.constant dense<0.000000e+00> : vector<16xf32>
    %3 = vector.multi_reduction <add>, %2, %cst [1] : vector<16x512xf32> to vector<16xf32>
    %4 = vector.shape_cast %3 : vector<16xf32> to vector<16x1xf32>
    %cst_2 = arith.constant 5.120000e+02 : f32
    %5 = vector.broadcast %cst_2 : f32 to vector<16x1xf32>
    %6 = arith.divf %4, %5 : vector<16x1xf32>
    %cst_3 = arith.constant 9.99999997E-7 : f32
    %7 = vector.broadcast %cst_3 : f32 to vector<16x1xf32>
    %8 = arith.addf %6, %7 : vector<16x1xf32>
    %9 = math.rsqrt %8 : vector<16x1xf32>
    %10 = vector.broadcast %9 : vector<16x1xf32> to vector<16x512xf32>
    %11 = arith.mulf %1, %10 : vector<16x512xf32>
    %c0_4 = arith.constant 0 : index
    %c0_5 = arith.constant 0 : index
    %12 = vector.load %arg5[%c0_4, %c0_5] : memref<1x512xf32, #tpu.memory_space<vmem>>, vector<1x512xf32>
    %13 = vector.broadcast %12 : vector<1x512xf32> to vector<16x512xf32>
    %14 = arith.mulf %11, %13 : vector<16x512xf32>
    %15 = arith.truncf %14 : vector<16x512xf32> to vector<16x512xbf16>
    %c0_6 = arith.constant 0 : index
    %c0_7 = arith.constant 0 : index
    %c0_8 = arith.constant 0 : index
    %16 = vector.load %arg8[%c0_6, %c0_7, %c0_8] : memref<1x16x512xbf16, #tpu.memory_space<vmem>>, vector<1x16x512xbf16>
    %17 = vector.shape_cast %16 : vector<1x16x512xbf16> to vector<16x512xbf16>
    %18 = vector.shape_cast %15 : vector<16x512xbf16> to vector<1x16x512xbf16>
    tpu.vector_store %arg8[%c0_6, %c0_7, %c0_8], %18 {strides = array<i32>} : memref<1x16x512xbf16, #tpu.memory_space<vmem>>, vector<1x16x512xbf16>,
    %19 = arith.truncf %14 : vector<16x512xf32> to vector<16x512xbf16>
    %c0_9 = arith.constant 0 : index
    %c0_10 = arith.constant 0 : index
    %20 = vector.load %arg6[%c0_9, %c0_10] : memref<512x512xbf16, #tpu.memory_space<vmem>>, vector<512x512xbf16>
    %cst_11 = arith.constant dense<0.000000e+00> : vector<16x512xf32>
    %21 = tpu.matmul %19, %20, %cst_11 {dimension_numbers = #tpu.dot_dimension_numbers<[1], [0], [0], [1], [0, 0, 1, 1], [], []>} : vector<16x512xbf16>, vector<512x512xbf16>, vector<16x512xf32> -> vector<16x512xf32>
    %c0_12 = arith.constant 0 : index
    %c0_13 = arith.constant 0 : index
    %22 = vector.load %arg7[%c0_12, %c0_13] : memref<1x512xf32, #tpu.memory_space<vmem>>, vector<1x512xf32>
    %23 = vector.broadcast %22 : vector<1x512xf32> to vector<16x512xf32>
    %24 = arith.addf %21, %23 : vector<16x512xf32>
    %c0_14 = arith.constant 0 : index
    %c0_15 = arith.constant 0 : index
    %25 = vector.load %arg3[%c0_14, %c0_15] : memref<16x128xf32, #tpu.memory_space<vmem>>, vector<16x128xf32>
    %c0_16 = arith.constant 0 : index
    %c0_17 = arith.constant 0 : index
    %26 = vector.load %arg4[%c0_16, %c0_17] : memref<16x128xf32, #tpu.memory_space<vmem>>, vector<16x128xf32>
    %27 = tpu.iota {dimensions = array<i32: 1>} : vector<1x128xi32>
    %c64_i32 = arith.constant 64 : i32
    %28 = vector.broadcast %c64_i32 : i32 to vector<1x128xi32>
    %29 = arith.cmpi slt, %27, %28 : vector<1x128xi32>
    %cst_18 = arith.constant -1.000000e+00 : f32
    %cst_19 = arith.constant 1.000000e+00 : f32
    %30 = vector.broadcast %cst_18 : f32 to vector<1x128xf32>
    %31 = vector.broadcast %cst_19 : f32 to vector<1x128xf32>
    %32 = arith.select %29, %30, %31 : vector<1x128xi1>, vector<1x128xf32>
    %33 = vector.extract_strided_slice %24 {offsets = [0, 0], sizes = [16, 128], strides = [1, 1]} : vector<16x512xf32> to vector<16x128xf32>
    %34 = vector.extract_strided_slice %24 {offsets = [0, 256], sizes = [16, 128], strides = [1, 1]} : vector<16x512xf32> to vector<16x128xf32>
    %35 = arith.mulf %33, %25 : vector<16x128xf32>
    %c64_i32_20 = arith.constant 64 : i32
    %36 = tpu.dynamic_rotate %33 by %c64_i32_20 dim 1 : vector<16x128xf32>, i32 -> vector<16x128xf32>
    %37 = vector.broadcast %32 : vector<1x128xf32> to vector<16x128xf32>
    %38 = arith.mulf %36, %37 : vector<16x128xf32>
    %39 = arith.mulf %38, %26 : vector<16x128xf32>
    %40 = arith.addf %35, %39 : vector<16x128xf32>
    %41 = arith.truncf %40 : vector<16x128xf32> to vector<16x128xbf16>
    %c0_21 = arith.constant 0 : index
    %c0_22 = arith.constant 0 : index
    %c0_23 = arith.constant 0 : index
    %42 = vector.load %arg9[%c0_21, %c0_22, %c0_23] : memref<1x16x256xbf16, #tpu.memory_space<vmem>>, vector<1x16x128xbf16>
    %43 = vector.shape_cast %42 : vector<1x16x128xbf16> to vector<16x128xbf16>
    %44 = vector.shape_cast %41 : vector<16x128xbf16> to vector<1x16x128xbf16>
    tpu.vector_store %arg9[%c0_21, %c0_22, %c0_23], %44 {strides = array<i32>} : memref<1x16x256xbf16, #tpu.memory_space<vmem>>, vector<1x16x128xbf16>,
    %45 = arith.truncf %34 : vector<16x128xf32> to vector<16x128xbf16>
    %c0_24 = arith.constant 0 : index
    %c0_25 = arith.constant 0 : index
    %c0_26 = arith.constant 0 : index
    %46 = vector.load %arg10[%c0_24, %c0_25, %c0_26] : memref<1x16x256xbf16, #tpu.memory_space<vmem>>, vector<1x16x128xbf16>
    %47 = vector.shape_cast %46 : vector<1x16x128xbf16> to vector<16x128xbf16>
    %48 = vector.shape_cast %45 : vector<16x128xbf16> to vector<1x16x128xbf16>
    tpu.vector_store %arg10[%c0_24, %c0_25, %c0_26], %48 {strides = array<i32>} : memref<1x16x256xbf16, #tpu.memory_space<vmem>>, vector<1x16x128xbf16>,
    %49 = vector.extract_strided_slice %24 {offsets = [0, 128], sizes = [16, 128], strides = [1, 1]} : vector<16x512xf32> to vector<16x128xf32>
    %50 = vector.extract_strided_slice %24 {offsets = [0, 384], sizes = [16, 128], strides = [1, 1]} : vector<16x512xf32> to vector<16x128xf32>
    %51 = arith.mulf %49, %25 : vector<16x128xf32>
    %c64_i32_27 = arith.constant 64 : i32
    %52 = tpu.dynamic_rotate %49 by %c64_i32_27 dim 1 : vector<16x128xf32>, i32 -> vector<16x128xf32>
    %53 = vector.broadcast %32 : vector<1x128xf32> to vector<16x128xf32>
    %54 = arith.mulf %52, %53 : vector<16x128xf32>
    %55 = arith.mulf %54, %26 : vector<16x128xf32>
    %56 = arith.addf %51, %55 : vector<16x128xf32>
    %57 = arith.truncf %56 : vector<16x128xf32> to vector<16x128xbf16>
    %c0_28 = arith.constant 0 : index
    %c0_29 = arith.constant 0 : index
    %c128 = arith.constant 128 : index
    %58 = vector.load %arg9[%c0_28, %c0_29, %c128] : memref<1x16x256xbf16, #tpu.memory_space<vmem>>, vector<1x16x128xbf16>
    %59 = vector.shape_cast %58 : vector<1x16x128xbf16> to vector<16x128xbf16>
    %60 = vector.shape_cast %57 : vector<16x128xbf16> to vector<1x16x128xbf16>
    tpu.vector_store %arg9[%c0_28, %c0_29, %c128], %60 {strides = array<i32>} : memref<1x16x256xbf16, #tpu.memory_space<vmem>>, vector<1x16x128xbf16>,
    %61 = arith.truncf %50 : vector<16x128xf32> to vector<16x128xbf16>
    %c0_30 = arith.constant 0 : index
    %c0_31 = arith.constant 0 : index
    %c128_32 = arith.constant 128 : index
    %62 = vector.load %arg10[%c0_30, %c0_31, %c128_32] : memref<1x16x256xbf16, #tpu.memory_space<vmem>>, vector<1x16x128xbf16>
    %63 = vector.shape_cast %62 : vector<1x16x128xbf16> to vector<16x128xbf16>
    %64 = vector.shape_cast %61 : vector<16x128xbf16> to vector<1x16x128xbf16>
    tpu.vector_store %arg10[%c0_30, %c0_31, %c128_32], %64 {strides = array<i32>} : memref<1x16x256xbf16, #tpu.memory_space<vmem>>, vector<1x16x128xbf16>,
    return
  }
  func.func @transform_0(%arg0: i32, %arg1: i32) -> (i32, i32, i32) {
    %c0_i32 = arith.constant 0 : i32
    %c0_i32_0 = arith.constant 0 : i32
    return %arg0, %arg1, %c0_i32 : i32, i32, i32
  }
  func.func @transform_1(%arg0: i32, %arg1: i32) -> (i32, i32) {
    %c0_i32 = arith.constant 0 : i32
    %c0_i32_0 = arith.constant 0 : i32
    return %arg1, %c0_i32 : i32, i32
  }
  func.func @transform_2(%arg0: i32, %arg1: i32) -> (i32, i32) {
    %c0_i32 = arith.constant 0 : i32
    %c0_i32_0 = arith.constant 0 : i32
    return %arg1, %c0_i32 : i32, i32
  }
  func.func @transform_3(%arg0: i32, %arg1: i32) -> (i32, i32) {
    %c0_i32 = arith.constant 0 : i32
    %c0_i32_0 = arith.constant 0 : i32
    %c0_i32_1 = arith.constant 0 : i32
    return %c0_i32, %c0_i32_0 : i32, i32
  }
  func.func @transform_4(%arg0: i32, %arg1: i32) -> (i32, i32) {
    %c0_i32 = arith.constant 0 : i32
    %c0_i32_0 = arith.constant 0 : i32
    %c0_i32_1 = arith.constant 0 : i32
    return %c0_i32, %c0_i32_0 : i32, i32
  }
  func.func @transform_5(%arg0: i32, %arg1: i32) -> (i32, i32) {
    %c0_i32 = arith.constant 0 : i32
    %c0_i32_0 = arith.constant 0 : i32
    %c0_i32_1 = arith.constant 0 : i32
    return %c0_i32, %c0_i32_0 : i32, i32
  }
  func.func @transform_6(%arg0: i32, %arg1: i32) -> (i32, i32, i32) {
    %c0_i32 = arith.constant 0 : i32
    %c0_i32_0 = arith.constant 0 : i32
    return %arg0, %arg1, %c0_i32 : i32, i32, i32
  }
  func.func @transform_7(%arg0: i32, %arg1: i32) -> (i32, i32, i32) {
    %c0_i32 = arith.constant 0 : i32
    %c0_i32_0 = arith.constant 0 : i32
    return %arg0, %arg1, %c0_i32 : i32, i32, i32
  }
  func.func @transform_8(%arg0: i32, %arg1: i32) -> (i32, i32, i32) {
    %c0_i32 = arith.constant 0 : i32
    %c0_i32_0 = arith.constant 0 : i32
    return %arg0, %arg1, %c0_i32 : i32, i32, i32
  }
}

module attributes {stable_mosaic.version = 11 : i64} {
  func.func @kv_norm_kernel(%arg0: i32, %arg1: i32, %arg2: memref<1x16x512xf32, #tpu.memory_space<vmem>>, %arg3: memref<16x128xf32, #tpu.memory_space<vmem>>, %arg4: memref<16x128xf32, #tpu.memory_space<vmem>>, %arg5: memref<1x512xf32, #tpu.memory_space<vmem>>, %arg6: memref<512x512xbf16, #tpu.memory_space<vmem>>, %arg7: memref<1x512xf32, #tpu.memory_space<vmem>>, %arg8: memref<1x16x512xbf16, #tpu.memory_space<vmem>>, %arg9: memref<1x16x256xbf16, #tpu.memory_space<vmem>>, %arg10: memref<1x16x256xbf16, #tpu.memory_space<vmem>>) attributes {dimension_semantics = [#tpu.dimension_semantics<parallel>, #tpu.dimension_semantics<parallel>], iteration_bounds = array<i64: 2, 1>, scalar_prefetch = 0 : i64, scratch_operands = 0 : i64, tpu.core_type = #tpu.core_type<tc>, window_params = [{transform_indices = @transform_0, window_bounds = array<i64: 1, 16, 512>}, {transform_indices = @transform_1, window_bounds = array<i64: 16, 128>}, {transform_indices = @transform_2, window_bounds = array<i64: 16, 128>}, {pipeline_mode = #tpu.pipeline_mode<synchronous>, transform_indices = @transform_3, window_bounds = array<i64: 1, 512>}, {pipeline_mode = #tpu.pipeline_mode<synchronous>, transform_indices = @transform_4, window_bounds = array<i64: 512, 512>}, {pipeline_mode = #tpu.pipeline_mode<synchronous>, transform_indices = @transform_5, window_bounds = array<i64: 1, 512>}, {transform_indices = @transform_6, window_bounds = array<i64: 1, 16, 512>}, {transform_indices = @transform_7, window_bounds = array<i64: 1, 16, 256>}, {transform_indices = @transform_8, window_bounds = array<i64: 1, 16, 256>}]} {
    %c0 = arith.constant 0 : index
    %c0_0 = arith.constant 0 : index
    %c0_1 = arith.constant 0 : index
    %0 = vector.load %arg2[%c0, %c0_0, %c0_1] : memref<1x16x512xf32, #tpu.memory_space<vmem>>, vector<1x16x512xf32>
    %1 = vector.shape_cast %0 : vector<1x16x512xf32> to vector<16x512xf32>
    %2 = arith.mulf %1, %1 : vector<16x512xf32>
    %cst = arith.constant dense<0.000000e+00> : vector<16xf32>
    %3 = vector.multi_reduction <add>, %2, %cst [1] : vector<16x512xf32> to vector<16xf32>
    %4 = vector.shape_cast %3 : vector<16xf32> to vector<16x1xf32>
    %cst_2 = arith.constant 5.120000e+02 : f32
    %5 = vector.broadcast %cst_2 : f32 to vector<16x1xf32>
    %6 = arith.divf %4, %5 : vector<16x1xf32>
    %cst_3 = arith.constant 9.99999997E-7 : f32
    %7 = vector.broadcast %cst_3 : f32 to vector<16x1xf32>
    %8 = arith.addf %6, %7 : vector<16x1xf32>
    %9 = math.rsqrt %8 : vector<16x1xf32>
    %10 = vector.broadcast %9 : vector<16x1xf32> to vector<16x512xf32>
    %11 = arith.mulf %1, %10 : vector<16x512xf32>
    %c0_4 = arith.constant 0 : index
    %c0_5 = arith.constant 0 : index
    %12 = vector.load %arg5[%c0_4, %c0_5] : memref<1x512xf32, #tpu.memory_space<vmem>>, vector<1x512xf32>
    %13 = vector.broadcast %12 : vector<1x512xf32> to vector<16x512xf32>
    %14 = arith.mulf %11, %13 : vector<16x512xf32>
    %15 = arith.truncf %14 : vector<16x512xf32> to vector<16x512xbf16>
    %c0_6 = arith.constant 0 : index
    %c0_7 = arith.constant 0 : index
    %c0_8 = arith.constant 0 : index
    %16 = vector.load %arg8[%c0_6, %c0_7, %c0_8] : memref<1x16x512xbf16, #tpu.memory_space<vmem>>, vector<1x16x512xbf16>
    %17 = vector.shape_cast %16 : vector<1x16x512xbf16> to vector<16x512xbf16>
    %18 = vector.shape_cast %15 : vector<16x512xbf16> to vector<1x16x512xbf16>
    tpu.vector_store %arg8[%c0_6, %c0_7, %c0_8], %18 {strides = array<i32>} : memref<1x16x512xbf16, #tpu.memory_space<vmem>>, vector<1x16x512xbf16>,
    %19 = arith.truncf %14 : vector<16x512xf32> to vector<16x512xbf16>
    %c0_9 = arith.constant 0 : index
    %c0_10 = arith.constant 0 : index
    %20 = vector.load %arg6[%c0_9, %c0_10] : memref<512x512xbf16, #tpu.memory_space<vmem>>, vector<512x512xbf16>
    %cst_11 = arith.constant dense<0.000000e+00> : vector<16x512xf32>
    %21 = tpu.matmul %19, %20, %cst_11 {dimension_numbers = #tpu.dot_dimension_numbers<[1], [0], [0], [1], [0, 0, 1, 1], [], []>} : vector<16x512xbf16>, vector<512x512xbf16>, vector<16x512xf32> -> vector<16x512xf32>
    %c0_12 = arith.constant 0 : index
    %c0_13 = arith.constant 0 : index
    %22 = vector.load %arg7[%c0_12, %c0_13] : memref<1x512xf32, #tpu.memory_space<vmem>>, vector<1x512xf32>
    %23 = vector.broadcast %22 : vector<1x512xf32> to vector<16x512xf32>
    %24 = arith.addf %21, %23 : vector<16x512xf32>
    %c0_14 = arith.constant 0 : index
    %c0_15 = arith.constant 0 : index
    %25 = vector.load %arg3[%c0_14, %c0_15] : memref<16x128xf32, #tpu.memory_space<vmem>>, vector<16x128xf32>
    %c0_16 = arith.constant 0 : index
    %c0_17 = arith.constant 0 : index
    %26 = vector.load %arg4[%c0_16, %c0_17] : memref<16x128xf32, #tpu.memory_space<vmem>>, vector<16x128xf32>
    %27 = tpu.iota {dimensions = array<i32: 1>} : vector<1x128xi32>
    %c64_i32 = arith.constant 64 : i32
    %28 = vector.broadcast %c64_i32 : i32 to vector<1x128xi32>
    %29 = arith.cmpi slt, %27, %28 : vector<1x128xi32>
    %cst_18 = arith.constant -1.000000e+00 : f32
    %cst_19 = arith.constant 1.000000e+00 : f32
    %30 = vector.broadcast %cst_18 : f32 to vector<1x128xf32>
    %31 = vector.broadcast %cst_19 : f32 to vector<1x128xf32>
    %32 = arith.select %29, %30, %31 : vector<1x128xi1>, vector<1x128xf32>
    %33 = vector.extract_strided_slice %24 {offsets = [0, 0], sizes = [16, 128], strides = [1, 1]} : vector<16x512xf32> to vector<16x128xf32>
    %34 = vector.extract_strided_slice %24 {offsets = [0, 256], sizes = [16, 128], strides = [1, 1]} : vector<16x512xf32> to vector<16x128xf32>
    %35 = arith.mulf %33, %25 : vector<16x128xf32>
    %c64_i32_20 = arith.constant 64 : i32
    %36 = tpu.dynamic_rotate %33 by %c64_i32_20 dim 1 : vector<16x128xf32>, i32 -> vector<16x128xf32>
    %37 = vector.broadcast %32 : vector<1x128xf32> to vector<16x128xf32>
    %38 = arith.mulf %36, %37 : vector<16x128xf32>
    %39 = arith.mulf %38, %26 : vector<16x128xf32>
    %40 = arith.addf %35, %39 : vector<16x128xf32>
    %41 = arith.truncf %40 : vector<16x128xf32> to vector<16x128xbf16>
    %c0_21 = arith.constant 0 : index
    %c0_22 = arith.constant 0 : index
    %c0_23 = arith.constant 0 : index
    %42 = vector.load %arg9[%c0_21, %c0_22, %c0_23] : memref<1x16x256xbf16, #tpu.memory_space<vmem>>, vector<1x16x128xbf16>
    %43 = vector.shape_cast %42 : vector<1x16x128xbf16> to vector<16x128xbf16>
    %44 = vector.shape_cast %41 : vector<16x128xbf16> to vector<1x16x128xbf16>
    tpu.vector_store %arg9[%c0_21, %c0_22, %c0_23], %44 {strides = array<i32>} : memref<1x16x256xbf16, #tpu.memory_space<vmem>>, vector<1x16x128xbf16>,
    %45 = arith.truncf %34 : vector<16x128xf32> to vector<16x128xbf16>
    %c0_24 = arith.constant 0 : index
    %c0_25 = arith.constant 0 : index
    %c0_26 = arith.constant 0 : index
    %46 = vector.load %arg10[%c0_24, %c0_25, %c0_26] : memref<1x16x256xbf16, #tpu.memory_space<vmem>>, vector<1x16x128xbf16>
    %47 = vector.shape_cast %46 : vector<1x16x128xbf16> to vector<16x128xbf16>
    %48 = vector.shape_cast %45 : vector<16x128xbf16> to vector<1x16x128xbf16>
    tpu.vector_store %arg10[%c0_24, %c0_25, %c0_26], %48 {strides = array<i32>} : memref<1x16x256xbf16, #tpu.memory_space<vmem>>, vector<1x16x128xbf16>,
    %49 = vector.extract_strided_slice %24 {offsets = [0, 128], sizes = [16, 128], strides = [1, 1]} : vector<16x512xf32> to vector<16x128xf32>
    %50 = vector.extract_strided_slice %24 {offsets = [0, 384], sizes = [16, 128], strides = [1, 1]} : vector<16x512xf32> to vector<16x128xf32>
    %51 = arith.mulf %49, %25 : vector<16x128xf32>
    %c64_i32_27 = arith.constant 64 : i32
    %52 = tpu.dynamic_rotate %49 by %c64_i32_27 dim 1 : vector<16x128xf32>, i32 -> vector<16x128xf32>
    %53 = vector.broadcast %32 : vector<1x128xf32> to vector<16x128xf32>
    %54 = arith.mulf %52, %53 : vector<16x128xf32>
    %55 = arith.mulf %54, %26 : vector<16x128xf32>
    %56 = arith.addf %51, %55 : vector<16x128xf32>
    %57 = arith.truncf %56 : vector<16x128xf32> to vector<16x128xbf16>
    %c0_28 = arith.constant 0 : index
    %c0_29 = arith.constant 0 : index
    %c128 = arith.constant 128 : index
    %58 = vector.load %arg9[%c0_28, %c0_29, %c128] : memref<1x16x256xbf16, #tpu.memory_space<vmem>>, vector<1x16x128xbf16>
    %59 = vector.shape_cast %58 : vector<1x16x128xbf16> to vector<16x128xbf16>
    %60 = vector.shape_cast %57 : vector<16x128xbf16> to vector<1x16x128xbf16>
    tpu.vector_store %arg9[%c0_28, %c0_29, %c128], %60 {strides = array<i32>} : memref<1x16x256xbf16, #tpu.memory_space<vmem>>, vector<1x16x128xbf16>,
    %61 = arith.truncf %50 : vector<16x128xf32> to vector<16x128xbf16>
    %c0_30 = arith.constant 0 : index
    %c0_31 = arith.constant 0 : index
    %c128_32 = arith.constant 128 : index
    %62 = vector.load %arg10[%c0_30, %c0_31, %c128_32] : memref<1x16x256xbf16, #tpu.memory_space<vmem>>, vector<1x16x128xbf16>
    %63 = vector.shape_cast %62 : vector<1x16x128xbf16> to vector<16x128xbf16>
    %64 = vector.shape_cast %61 : vector<16x128xbf16> to vector<1x16x128xbf16>
    tpu.vector_store %arg10[%c0_30, %c0_31, %c128_32], %64 {strides = array<i32>} : memref<1x16x256xbf16, #tpu.memory_space<vmem>>, vector<1x16x128xbf16>,
    return
  }
  func.func @transform_0(%arg0: i32, %arg1: i32) -> (i32, i32, i32) {
    %c0_i32 = arith.constant 0 : i32
    %c0_i32_0 = arith.constant 0 : i32
    return %arg0, %arg1, %c0_i32 : i32, i32, i32
  }
  func.func @transform_1(%arg0: i32, %arg1: i32) -> (i32, i32) {
    %c0_i32 = arith.constant 0 : i32
    %c0_i32_0 = arith.constant 0 : i32
    return %arg1, %c0_i32 : i32, i32
  }
  func.func @transform_2(%arg0: i32, %arg1: i32) -> (i32, i32) {
    %c0_i32 = arith.constant 0 : i32
    %c0_i32_0 = arith.constant 0 : i32
    return %arg1, %c0_i32 : i32, i32
  }
  func.func @transform_3(%arg0: i32, %arg1: i32) -> (i32, i32) {
    %c0_i32 = arith.constant 0 : i32
    %c0_i32_0 = arith.constant 0 : i32
    %c0_i32_1 = arith.constant 0 : i32
    return %c0_i32, %c0_i32_0 : i32, i32
  }
  func.func @transform_4(%arg0: i32, %arg1: i32) -> (i32, i32) {
    %c0_i32 = arith.constant 0 : i32
    %c0_i32_0 = arith.constant 0 : i32
    %c0_i32_1 = arith.constant 0 : i32
    return %c0_i32, %c0_i32_0 : i32, i32
  }
  func.func @transform_5(%arg0: i32, %arg1: i32) -> (i32, i32) {
    %c0_i32 = arith.constant 0 : i32
    %c0_i32_0 = arith.constant 0 : i32
    %c0_i32_1 = arith.constant 0 : i32
    return %c0_i32, %c0_i32_0 : i32, i32
  }
  func.func @transform_6(%arg0: i32, %arg1: i32) -> (i32, i32, i32) {
    %c0_i32 = arith.constant 0 : i32
    %c0_i32_0 = arith.constant 0 : i32
    return %arg0, %arg1, %c0_i32 : i32, i32, i32
  }
  func.func @transform_7(%arg0: i32, %arg1: i32) -> (i32, i32, i32) {
    %c0_i32 = arith.constant 0 : i32
    %c0_i32_0 = arith.constant 0 : i32
    return %arg0, %arg1, %c0_i32 : i32, i32, i32
  }
  func.func @transform_8(%arg0: i32, %arg1: i32) -> (i32, i32, i32) {
    %c0_i32 = arith.constant 0 : i32
    %c0_i32_0 = arith.constant 0 : i32
    return %arg0, %arg1, %c0_i32 : i32, i32, i32
  }
}

</mosaic_0001>

<llo_original>
// kernel: tpu_custom_call.1
$region0: #{tpu_custom_call.1}
  #allocation0 [shape = 'u32[]', space=smem, size = 0x4, offset = 0x4, fixed_abs, tag = 'smem constant byte address 0x4 - core index']
  #allocation1 [shape = 'u32[144,128]{1,0:T(1,128)}', space=vmem, size = 0x12000, scoped, tag = 'internal scratch']
  %s0 = inlined_call_operand.hbm [shape: f32[2,16,512], index: 0, kind: input, shape index: {}]
  %s1 = inlined_call_operand.hbm [shape: f32[16,128], index: 1, kind: input, shape index: {}]
  %s2 = inlined_call_operand.hbm [shape: f32[16,128], index: 2, kind: input, shape index: {}]
  %s3 = inlined_call_operand.vmem [shape: f32[1,512], index: 3, kind: input, shape index: {}]
  %s4 = inlined_call_operand.hbm [shape: bf16[512,512], index: 4, kind: input, shape index: {}]
  %s5 = inlined_call_operand.vmem [shape: f32[1,512], index: 5, kind: input, shape index: {}]
  %s6 = inlined_call_operand.hbm [shape: bf16[2,16,512], index: 6, kind: output, shape index: {0}]
  %s7 = inlined_call_operand.hbm [shape: bf16[2,16,256], index: 7, kind: output, shape index: {1}]
  %s8 = inlined_call_operand.hbm [shape: bf16[2,16,256], index: 8, kind: output, shape index: {2}]
  %9 = xla_tuple %s6, %s7, %s8
  %s10 = sld [smem:[#allocation0]]
  $region89: #{tpu_custom_call.1} parent=0
    _
  %s12 = ssub.s32 1, %s10
  %s13 = scalar_select 0, %s12, %s10
  $region1: #{tpu_custom_call.1} parent=0
    #allocation2 [shape = 'u8[65536]{0}', space=vmem, size = 0x10000, scoped, tag = 'input window, operand 0']
    #allocation3 [shape = 's32[2]{0}', space=sflag, size = 0x8, scoped, tag = 'scoped memory for tpu_custom_call.1']
    #allocation4 [shape = 's32[2]{0}', space=sflag, size = 0x8, scoped, tag = 'scoped memory for tpu_custom_call.1']
    #allocation5 [shape = 'u8[8192]{0}', space=vmem, size = 0x2000, scoped, tag = 'input window, operand 1, single buffered']
    #allocation6 [shape = 's32[1]{0}', space=sflag, size = 0x4, scoped, tag = 'scoped memory for tpu_custom_call.1']
    #allocation7 [shape = 'u8[8192]{0}', space=vmem, size = 0x2000, scoped, tag = 'input window, operand 2, single buffered']
    #allocation8 [shape = 'u8[524288]{0}', space=vmem, size = 0x80000, scoped, tag = 'input window, operand 4, single buffered']
    #allocation9 [shape = 's32[1]{0}', space=sflag, size = 0x4, scoped, tag = 'scoped memory for tpu_custom_call.1']
    #allocation10 [shape = 'u8[32768]{0}', space=vmem, size = 0x8000, scoped, tag = 'output window, operand 0']
    #allocation11 [shape = 'u8[16384]{0}', space=vmem, size = 0x4000, scoped, tag = 'output window, operand 1']
    #allocation12 [shape = 's32[2]{0}', space=sflag, size = 0x8, scoped, tag = 'scoped memory for tpu_custom_call.1']
    #allocation13 [shape = 'u8[16384]{0}', space=vmem, size = 0x4000, scoped, tag = 'output window, operand 2']
    %14 = vsyncpa [#allocation3], 0
    %s15 = scalar_lea.sflag [#allocation3], 1
    %16 = vsyncpa %s15, 0
    %17 = vsyncpa [#allocation6], 0
    %18 = vsyncpa [#allocation9], 0
    %19 = vsyncpa [#allocation4], 0
    %s20 = scalar_lea.sflag [#allocation4], 1
    %21 = vsyncpa %s20, 0
    %22 = vsyncpa [#allocation12], 0
    %s23 = scalar_lea.sflag [#allocation12], 1
    %24 = vsyncpa %s23, 0
    loop: start=0, step=1, limit=4
    $region2: #{tpu_custom_call.1} parent=1 // loop_pre_header
      _
    $region3: #{tpu_custom_call.1} parent=1 // loop_header
      %s26 = sphi 0, %s30
      %p27 = scmp.ge.s32.totalorder %s26, 4
      %s33 = sphi 0, %s45
      %s34 = sphi 0, %s41
      %s35 = sphi 0, %s33
      %s36 = sphi 0, %s34
      %s37 = sphi 0, %s35
      %s38 = sphi 0, %s36
      %s50 = sphi 0, %s52
      %s53 = sphi 0, %s50
      %s54 = sphi 0, %s53
      %s70 = sphi 0, %s54
      %s76 = sphi 0, %s78
      %s79 = sphi 0, %s76
      %s80 = sphi 0, %s79
      %s96 = sphi 0, %s80
      %s102 = sphi 0, %s104
      %s105 = sphi 0, %s102
      %s106 = sphi 0, %s105
      %s122 = sphi 0, %s106
      %s126 = sphi 0, %s126
      %s128 = sphi 0, %s126
      %s129 = sphi 0, %s128
      %s143 = sphi 0, %s129
      %s147 = sphi 0, %s147
      %s149 = sphi 0, %s147
      %s150 = sphi 0, %s149
      %s164 = sphi 0, %s150
      %s168 = sphi 0, %s168
      %s170 = sphi 0, %s168
      %s171 = sphi 0, %s170
      %s185 = sphi 0, %s171
      %s193 = sphi 0, %s195
      %s196 = sphi 0, %s193
      %s197 = sphi 0, %s196
      %s213 = sphi 0, %s197
      %s221 = sphi 0, %s223
      %s224 = sphi 0, %s221
      %s225 = sphi 0, %s224
      %s241 = sphi 0, %s225
      %s249 = sphi 0, %s251
      %s252 = sphi 0, %s249
      %s253 = sphi 0, %s252
      %s269 = sphi 0, %s253
    $region4: #{tpu_custom_call.1} parent=1 // loop_header_branch
      %29 = sbr.rel (%p27) target = $region8
    $region5: #{tpu_custom_call.1} parent=1 // loop_body
      %s31 = ssub.s32 %s26, 1
      %s32 = ssub.s32 %s26, 2
      %s39 = sadd.s32 1, %s34
      %p40 = scmp.ge.s32.totalorder %s39, 1
      %s41 = scalar_select %p40, 0, %s39
      %s42 = sadd.s32 1, %s33
      %s43 = scalar_select %p40, %s42, %s33
      %p44 = scmp.ge.s32.totalorder %s43, 2
      %s45 = scalar_select %p44, 0, %s43
      %s46 = ssub.s32 %s33, %s45
      %s47 = ssub.s32 %s34, %s41
      %s48 = sor.u32 %s46, %s47
      %p49 = scmp.eq.s32.totalorder %s48, 0
      %s51 = sadd.s32 %s50, 1
      %s52 = scalar_select %p49, %s50, %s51
      %p55 = pneg %p49
      %p56 = scmp.eq.s32.totalorder %s26, 1
      %p57 = por %p55, %p56
      %p58 = scmp.ne.s32.totalorder %s50, %s53
      %p59 = scmp.eq.s32.totalorder %s26, 0
      %p60 = por %p58, %p59
      %p61 = scmp.ne.s32.totalorder %s50, %s53
      %p62 = scmp.eq.s32.totalorder %s31, 1
      %p63 = por %p61, %p62
      %p64 = scmp.ne.s32.totalorder %s53, %s54
      %p65 = scmp.eq.s32.totalorder %s31, 0
      %p66 = por %p64, %p65
      %p67 = scmp.ne.s32.totalorder %s53, %s54
      %p68 = scmp.eq.s32.totalorder %s32, 1
      %p69 = por %p67, %p68
      %p71 = scmp.ne.s32.totalorder %s54, %s70
      %p72 = scmp.eq.s32.totalorder %s32, 0
      %p73 = por %p71, %p72
      %s74 = ssub.s32 %s34, %s41
      %p75 = scmp.eq.s32.totalorder %s74, 0
      %s77 = sadd.s32 %s76, 1
      %s78 = scalar_select %p75, %s76, %s77
      %p81 = pneg %p75
      %p82 = scmp.eq.s32.totalorder %s26, 1
      %p83 = por %p81, %p82
      %p84 = scmp.ne.s32.totalorder %s76, %s79
      %p85 = scmp.eq.s32.totalorder %s26, 0
      %p86 = por %p84, %p85
      %p87 = scmp.ne.s32.totalorder %s76, %s79
      %p88 = scmp.eq.s32.totalorder %s31, 1
      %p89 = por %p87, %p88
      %p90 = scmp.ne.s32.totalorder %s79, %s80
      %p91 = scmp.eq.s32.totalorder %s31, 0
      %p92 = por %p90, %p91
      %p93 = scmp.ne.s32.totalorder %s79, %s80
      %p94 = scmp.eq.s32.totalorder %s32, 1
      %p95 = por %p93, %p94
      %p97 = scmp.ne.s32.totalorder %s80, %s96
      %p98 = scmp.eq.s32.totalorder %s32, 0
      %p99 = por %p97, %p98
      %s100 = ssub.s32 %s34, %s41
      %p101 = scmp.eq.s32.totalorder %s100, 0
      %s103 = sadd.s32 %s102, 1
      %s104 = scalar_select %p101, %s102, %s103
      %p107 = pneg %p101
      %p108 = scmp.eq.s32.totalorder %s26, 1
      %p109 = por %p107, %p108
      %p110 = scmp.ne.s32.totalorder %s102, %s105
      %p111 = scmp.eq.s32.totalorder %s26, 0
      %p112 = por %p110, %p111
      %p113 = scmp.ne.s32.totalorder %s102, %s105
      %p114 = scmp.eq.s32.totalorder %s31, 1
      %p115 = por %p113, %p114
      %p116 = scmp.ne.s32.totalorder %s105, %s106
      %p117 = scmp.eq.s32.totalorder %s31, 0
      %p118 = por %p116, %p117
      %p119 = scmp.ne.s32.totalorder %s105, %s106
      %p120 = scmp.eq.s32.totalorder %s32, 1
      %p121 = por %p119, %p120
      %p123 = scmp.ne.s32.totalorder %s106, %s122
      %p124 = scmp.eq.s32.totalorder %s32, 0
      %p125 = por %p123, %p124
      %s127 = sadd.s32 %s126, 1
      %p130 = scmp.eq.s32.totalorder %s26, 1
      %p131 = scmp.ne.s32.totalorder %s126, %s128
      %p132 = scmp.eq.s32.totalorder %s26, 0
      %p133 = por %p131, %p132
      %p134 = scmp.ne.s32.totalorder %s126, %s128
      %p135 = scmp.eq.s32.totalorder %s31, 1
      %p136 = por %p134, %p135
      %p137 = scmp.ne.s32.totalorder %s128, %s129
      %p138 = scmp.eq.s32.totalorder %s31, 0
      %p139 = por %p137, %p138
      %p140 = scmp.ne.s32.totalorder %s128, %s129
      %p141 = scmp.eq.s32.totalorder %s32, 1
      %p142 = por %p140, %p141
      %p144 = scmp.ne.s32.totalorder %s129, %s143
      %p145 = scmp.eq.s32.totalorder %s32, 0
      %p146 = por %p144, %p145
      %s148 = sadd.s32 %s147, 1
      %p151 = scmp.eq.s32.totalorder %s26, 1
      %p152 = scmp.ne.s32.totalorder %s147, %s149
      %p153 = scmp.eq.s32.totalorder %s26, 0
      %p154 = por %p152, %p153
      %p155 = scmp.ne.s32.totalorder %s147, %s149
      %p156 = scmp.eq.s32.totalorder %s31, 1
      %p157 = por %p155, %p156
      %p158 = scmp.ne.s32.totalorder %s149, %s150
      %p159 = scmp.eq.s32.totalorder %s31, 0
      %p160 = por %p158, %p159
      %p161 = scmp.ne.s32.totalorder %s149, %s150
      %p162 = scmp.eq.s32.totalorder %s32, 1
      %p163 = por %p161, %p162
      %p165 = scmp.ne.s32.totalorder %s150, %s164
      %p166 = scmp.eq.s32.totalorder %s32, 0
      %p167 = por %p165, %p166
      %s169 = sadd.s32 %s168, 1
      %p172 = scmp.eq.s32.totalorder %s26, 1
      %p173 = scmp.ne.s32.totalorder %s168, %s170
      %p174 = scmp.eq.s32.totalorder %s26, 0
      %p175 = por %p173, %p174
      %p176 = scmp.ne.s32.totalorder %s168, %s170
      %p177 = scmp.eq.s32.totalorder %s31, 1
      %p178 = por %p176, %p177
      %p179 = scmp.ne.s32.totalorder %s170, %s171
      %p180 = scmp.eq.s32.totalorder %s31, 0
      %p181 = por %p179, %p180
      %p182 = scmp.ne.s32.totalorder %s170, %s171
      %p183 = scmp.eq.s32.totalorder %s32, 1
      %p184 = por %p182, %p183
      %p186 = scmp.ne.s32.totalorder %s171, %s185
      %p187 = scmp.eq.s32.totalorder %s32, 0
      %p188 = por %p186, %p187
      %s189 = ssub.s32 %s33, %s45
      %s190 = ssub.s32 %s34, %s41
      %s191 = sor.u32 %s189, %s190
      %p192 = scmp.eq.s32.totalorder %s191, 0
      %s194 = sadd.s32 %s193, 1
      %s195 = scalar_select %p192, %s193, %s194
      %p198 = pneg %p192
      %p199 = scmp.eq.s32.totalorder %s26, 1
      %p200 = por %p198, %p199
      %p201 = scmp.ne.s32.totalorder %s193, %s196
      %p202 = scmp.eq.s32.totalorder %s26, 0
      %p203 = por %p201, %p202
      %p204 = scmp.ne.s32.totalorder %s193, %s196
      %p205 = scmp.eq.s32.totalorder %s31, 1
      %p206 = por %p204, %p205
      %p207 = scmp.ne.s32.totalorder %s196, %s197
      %p208 = scmp.eq.s32.totalorder %s31, 0
      %p209 = por %p207, %p208
      %p210 = scmp.ne.s32.totalorder %s196, %s197
      %p211 = scmp.eq.s32.totalorder %s32, 1
      %p212 = por %p210, %p211
      %p214 = scmp.ne.s32.totalorder %s197, %s213
      %p215 = scmp.eq.s32.totalorder %s32, 0
      %p216 = por %p214, %p215
      %s217 = ssub.s32 %s33, %s45
      %s218 = ssub.s32 %s34, %s41
      %s219 = sor.u32 %s217, %s218
      %p220 = scmp.eq.s32.totalorder %s219, 0
      %s222 = sadd.s32 %s221, 1
      %s223 = scalar_select %p220, %s221, %s222
      %p226 = pneg %p220
      %p227 = scmp.eq.s32.totalorder %s26, 1
      %p228 = por %p226, %p227
      %p229 = scmp.ne.s32.totalorder %s221, %s224
      %p230 = scmp.eq.s32.totalorder %s26, 0
      %p231 = por %p229, %p230
      %p232 = scmp.ne.s32.totalorder %s221, %s224
      %p233 = scmp.eq.s32.totalorder %s31, 1
      %p234 = por %p232, %p233
      %p235 = scmp.ne.s32.totalorder %s224, %s225
      %p236 = scmp.eq.s32.totalorder %s31, 0
      %p237 = por %p235, %p236
      %p238 = scmp.ne.s32.totalorder %s224, %s225
      %p239 = scmp.eq.s32.totalorder %s32, 1
      %p240 = por %p238, %p239
      %p242 = scmp.ne.s32.totalorder %s225, %s241
      %p243 = scmp.eq.s32.totalorder %s32, 0
      %p244 = por %p242, %p243
      %s245 = ssub.s32 %s33, %s45
      %s246 = ssub.s32 %s34, %s41
      %s247 = sor.u32 %s245, %s246
      %p248 = scmp.eq.s32.totalorder %s247, 0
      %s250 = sadd.s32 %s249, 1
      %s251 = scalar_select %p248, %s249, %s250
      %p254 = pneg %p248
      %p255 = scmp.eq.s32.totalorder %s26, 1
      %p256 = por %p254, %p255
      %p257 = scmp.ne.s32.totalorder %s249, %s252
      %p258 = scmp.eq.s32.totalorder %s26, 0
      %p259 = por %p257, %p258
      %p260 = scmp.ne.s32.totalorder %s249, %s252
      %p261 = scmp.eq.s32.totalorder %s31, 1
      %p262 = por %p260, %p261
      %p263 = scmp.ne.s32.totalorder %s252, %s253
      %p264 = scmp.eq.s32.totalorder %s31, 0
      %p265 = por %p263, %p264
      %p266 = scmp.ne.s32.totalorder %s252, %s253
      %p267 = scmp.eq.s32.totalorder %s32, 1
      %p268 = por %p266, %p267
      %p270 = scmp.ne.s32.totalorder %s253, %s269
      %p271 = scmp.eq.s32.totalorder %s32, 0
      %p272 = por %p270, %p271
      %p273 = scmp.le.s32.totalorder 1, %s26
      %p274 = scmp.lt.s32.totalorder %s26, 3
      %p275 = pnand %p273, %p274
      %p276 = pneg %p275
      // Predicated region
      $region9: #{tpu_custom_call.1} parent=5 // pred_check
        _
      $region10: #{tpu_custom_call.1} parent=5 // pred_check_branch
        %278 = sbr.rel (%p275) target = $region12
      $region11: #{tpu_custom_call.1} parent=5 // pred_region
        %s279 = ssub.s32 %s26, 1
        // Predicated region
        $region13: #{tpu_custom_call.1} parent=11 // pred_check
          %p280 = pneg %p92
        $region14: #{tpu_custom_call.1} parent=11 // pred_check_branch
          %282 = sbr.rel (%p280) target = $region16
        $region15: #{tpu_custom_call.1} parent=11 // pred_region
          %s283 = smul.u32 2, %s36
          %s285 = ssub.s32 256, 256
          %286 = vsyncadd [#allocation6], %s285
          %s287 = smul.addr %s283, 128
          %s288 = scalar_lea.hbm %s1, %s287
          %s289 = sshll.u32 [#allocation5], 4
          %s290 = int_to_ptr.vmem [resolvable:$true] %s289
          %295 = dma.hbm_to_vmem [thread:$0]  %s288, 256, %s290, [#allocation6], 128, 128, 8
        $region16: #{tpu_custom_call.1} parent=11 // pred_fallthru
          _
        // Predicated region
        $region17: #{tpu_custom_call.1} parent=11 // pred_check
          %p296 = pneg %p118
        $region18: #{tpu_custom_call.1} parent=11 // pred_check_branch
          %298 = sbr.rel (%p296) target = $region20
        $region19: #{tpu_custom_call.1} parent=11 // pred_region
          %s299 = smul.u32 2, %s36
          %s301 = ssub.s32 256, 256
          %302 = vsyncadd [#allocation6], %s301
          %s303 = smul.addr %s299, 128
          %s304 = scalar_lea.hbm %s2, %s303
          %s305 = sshll.u32 [#allocation7], 4
          %s306 = int_to_ptr.vmem [resolvable:$true] %s305
          %311 = dma.hbm_to_vmem [thread:$0]  %s304, 256, %s306, [#allocation6], 128, 128, 8
        $region20: #{tpu_custom_call.1} parent=11 // pred_fallthru
          _
        // Predicated region
        $region21: #{tpu_custom_call.1} parent=11 // pred_check
          %p312 = pneg %p139
        $region22: #{tpu_custom_call.1} parent=11 // pred_check_branch
          %314 = sbr.rel (%p312) target = $region24
        $region23: #{tpu_custom_call.1} parent=11 // pred_region
          _
        $region24: #{tpu_custom_call.1} parent=11 // pred_fallthru
          _
        // Predicated region
        $region25: #{tpu_custom_call.1} parent=11 // pred_check
          %p315 = pneg %p160
        $region26: #{tpu_custom_call.1} parent=11 // pred_check_branch
          %317 = sbr.rel (%p315) target = $region28
        $region27: #{tpu_custom_call.1} parent=11 // pred_region
          %s319 = ssub.s32 16384, 16384
          %320 = vsyncadd [#allocation9], %s319
          %s321 = sshll.u32 [#allocation8], 4
          %s322 = int_to_ptr.vmem [resolvable:$true] %s321
          %327 = dma.hbm_to_vmem [thread:$0]  %s4, 16384, %s322, [#allocation9], 256, 256, 16
        $region28: #{tpu_custom_call.1} parent=11 // pred_fallthru
          _
        // Predicated region
        $region29: #{tpu_custom_call.1} parent=11 // pred_check
          %p328 = pneg %p181
        $region30: #{tpu_custom_call.1} parent=11 // pred_check_branch
          %330 = sbr.rel (%p328) target = $region32
        $region31: #{tpu_custom_call.1} parent=11 // pred_region
          _
        $region32: #{tpu_custom_call.1} parent=11 // pred_fallthru
          _
      $region12: #{tpu_custom_call.1} parent=5 // pred_fallthru
        _
      %p331 = scmp.lt.s32.totalorder %s26, 2
      // Predicated region
      $region33: #{tpu_custom_call.1} parent=5 // pred_check
        %p332 = pneg %p331
      $region34: #{tpu_custom_call.1} parent=5 // pred_check_branch
        %334 = sbr.rel (%p332) target = $region36
      $region35: #{tpu_custom_call.1} parent=5 // pred_region
        // Predicated region
        $region37: #{tpu_custom_call.1} parent=35 // pred_check
          %p335 = pneg %p60
        $region38: #{tpu_custom_call.1} parent=35 // pred_check_branch
          %337 = sbr.rel (%p335) target = $region40
        $region39: #{tpu_custom_call.1} parent=35 // pred_region
          %s338 = sand.u32 %s50, 1
          %s339 = scalar_lea.sflag [#allocation3], %s338
          %s340 = sand.u32 %s50, 1
          %s341 = smul.addr %s340, 64
          %s342 = scalar_lea.vmem [#allocation2], %s341
          %s343 = smul.u32 2, %s34
          %s345 = ssub.s32 1024, 1024
          %346 = vsyncadd %s339, %s345
          %s347 = smul.addr %s343, 4
          %s348 = smul.addr %s33, 8
          %s349 = sadd.s32 %s347, %s348
          %s350 = smul.addr %s349, 128
          %s351 = scalar_lea.hbm %s0, %s350
          %s352 = sshll.u32 %s342, 4
          %s353 = int_to_ptr.vmem [resolvable:$true] %s352
          %358 = dma.hbm_to_vmem [thread:$0]  %s351, 1024, %s353, %s339, 512, 512, 32
        $region40: #{tpu_custom_call.1} parent=35 // pred_fallthru
          _
      $region36: #{tpu_custom_call.1} parent=5 // pred_fallthru
        _
      %p359 = scmp.le.s32.totalorder 1, %s26
      %p360 = scmp.lt.s32.totalorder %s26, 3
      %p361 = pnand %p359, %p360
      %p362 = pneg %p361
      // Predicated region
      $region41: #{tpu_custom_call.1} parent=5 // pred_check
        _
      $region42: #{tpu_custom_call.1} parent=5 // pred_check_branch
        %364 = sbr.rel (%p361) target = $region44
      $region43: #{tpu_custom_call.1} parent=5 // pred_region
        %s365 = ssub.s32 %s26, 1
        %s366 = sand.u32 %s53, 1
        %s367 = scalar_lea.sflag [#allocation3], %s366
        %s368 = sand.u32 %s53, 1
        %s369 = smul.addr %s368, 64
        %s370 = scalar_lea.vmem [#allocation2], %s369
        // Predicated region
        $region45: #{tpu_custom_call.1} parent=43 // pred_check
          %p371 = pneg %p66
        $region46: #{tpu_custom_call.1} parent=43 // pred_check_branch
          %373 = sbr.rel (%p371) target = $region48
        $region47: #{tpu_custom_call.1} parent=43 // pred_region
          %374 = dma.done %s367, 1024
        $region48: #{tpu_custom_call.1} parent=43 // pred_fallthru
          _
        // Predicated region
        $region49: #{tpu_custom_call.1} parent=43 // pred_check
          %p375 = pneg %p92
        $region50: #{tpu_custom_call.1} parent=43 // pred_check_branch
          %377 = sbr.rel (%p375) target = $region52
        $region51: #{tpu_custom_call.1} parent=43 // pred_region
          %378 = dma.done [#allocation6], 256
        $region52: #{tpu_custom_call.1} parent=43 // pred_fallthru
          _
        // Predicated region
        $region53: #{tpu_custom_call.1} parent=43 // pred_check
          %p379 = pneg %p118
        $region54: #{tpu_custom_call.1} parent=43 // pred_check_branch
          %381 = sbr.rel (%p379) target = $region56
        $region55: #{tpu_custom_call.1} parent=43 // pred_region
          %382 = dma.done [#allocation6], 256
        $region56: #{tpu_custom_call.1} parent=43 // pred_fallthru
          _
        // Predicated region
        $region57: #{tpu_custom_call.1} parent=43 // pred_check
          %p383 = pneg %p160
        $region58: #{tpu_custom_call.1} parent=43 // pred_check_branch
          %385 = sbr.rel (%p383) target = $region60
        $region59: #{tpu_custom_call.1} parent=43 // pred_region
          %386 = dma.done [#allocation9], 16384
        $region60: #{tpu_custom_call.1} parent=43 // pred_fallthru
          _
        %s387 = sand.u32 %s53, 1
        %s388 = scalar_lea.sflag [#allocation3], %s387
        %s389 = sand.u32 %s53, 1
        %s390 = smul.addr %s389, 64
        %s391 = scalar_lea.vmem [#allocation2], %s390
        %p392 = pneg %p66
        %p393 = pneg %p63
        %p394 = pneg %p92
        %p395 = pneg %p89
        %p396 = pneg %p118
        %p397 = pneg %p115
        %p398 = pneg %p139
        %p399 = pneg %p136
        %p400 = pneg %p160
        %p401 = pneg %p157
        %p402 = pneg %p181
        %p403 = pneg %p178
        %p404 = pneg %p209
        %p405 = pneg %p206
        %s406 = sand.u32 %s196, 1
        %s407 = scalar_lea.sflag [#allocation4], %s406
        %s408 = sand.u32 %s196, 1
        %s409 = smul.addr %s408, 32
        %s410 = scalar_lea.vmem [#allocation10], %s409
        %p411 = pneg %p237
        %p412 = pneg %p234
        %s413 = sand.u32 %s31, 1
        %s414 = scalar_lea.sflag [#allocation12], %s413
        %s415 = sand.u32 %s224, 1
        %s416 = smul.addr %s415, 16
        %s417 = scalar_lea.vmem [#allocation11], %s416
        %p418 = pneg %p265
        %p419 = pneg %p262
        %s420 = sand.u32 %s31, 1
        %s421 = scalar_lea.sflag [#allocation12], %s420
        %s422 = sand.u32 %s252, 1
        %s423 = smul.addr %s422, 16
        %s424 = scalar_lea.vmem [#allocation13], %s423
        %s425 = smul.u32 2, %s36
        %s426 = smul.u32 2, %s36
        %s427 = smul.u32 2, %s36
        %s428 = smul.u32 2, %s36
        %s429 = smul.u32 2, %s36
        %s430 = smul.u32 2, %s36
        %v431 = vld [vmem:[%s370] sm:$0xff]
        %v432 = vld [vmem:[%s370 + $0x8] sm:$0xff]
        %v433 = vld [vmem:[%s370 + $0x10] sm:$0xff]
        %v434 = vld [vmem:[%s370 + $0x18] sm:$0xff]
        %v435 = vld [vmem:[%s370 + $0x20] sm:$0xff]
        %v436 = vld [vmem:[%s370 + $0x28] sm:$0xff]
        %v437 = vld [vmem:[%s370 + $0x30] sm:$0xff]
        %v438 = vld [vmem:[%s370 + $0x38] sm:$0xff]
        %v439 = vmul.f32 %v431, %v431
        %v440 = vmul.f32 %v432, %v432
        %v441 = vmul.f32 %v433, %v433
        %v442 = vmul.f32 %v434, %v434
        %v443 = vmul.f32 %v435, %v435
        %v444 = vmul.f32 %v436, %v436
        %v445 = vmul.f32 %v437, %v437
        %v446 = vmul.f32 %v438, %v438
        %v447 = vadd.f32 %v439, %v440
        %v448 = vadd.f32 %v447, %v441
        %v449 = vadd.f32 %v448, %v442
        %450 = vadd.xlane.f32.xlu0 %v449
        %v451 = vpop.xlane.xlu0 %450
        %v452 = vadd.f32 %v443, %v444
        %v453 = vadd.f32 %v452, %v445
        %v454 = vadd.f32 %v453, %v446
        %455 = vadd.xlane.f32.xlu0 %v454
        %v456 = vpop.xlane.xlu0 %455
        %v457 = vrcp.pop 512.0
        %v458 = vmul.f32 %v451, %v457
        %v459 = vmul.f32 %v456, %v457
        %v460 = vadd.f32 %v458, 1e-06
        %v461 = vadd.f32 %v459, 1e-06
        %v462 = vrsqrt.pop %v460
        %v463 = vrsqrt.pop %v461
        %v464 = vmul.f32 %v431, %v462
        %v465 = vmul.f32 %v432, %v462
        %v466 = vmul.f32 %v433, %v462
        %v467 = vmul.f32 %v434, %v462
        %v468 = vmul.f32 %v435, %v463
        %v469 = vmul.f32 %v436, %v463
        %v470 = vmul.f32 %v437, %v463
        %v471 = vmul.f32 %v438, %v463
        %v472 = vld [vmem:[%s3] sm:$0xf]
        %v474 = vlaneseq
        %v475 = vshrl.u32 %v474, 7
        %v476 = vsub.s32 0, %v475
        %v477 = vrot.slane %v472, %v476
        %v478 = vlaneseq
        %v479 = vshrl.u32 %v478, 7
        %v480 = vsub.s32 1, %v479
        %v481 = vrot.slane %v472, %v480
        %v482 = vlaneseq
        %v483 = vshrl.u32 %v482, 7
        %v484 = vsub.s32 2, %v483
        %v485 = vrot.slane %v472, %v484
        %v486 = vlaneseq
        %v487 = vshrl.u32 %v486, 7
        %v488 = vsub.s32 3, %v487
        %v489 = vrot.slane %v472, %v488
        %v494 = vmul.f32 %v464, %v477
        %v495 = vmul.f32 %v465, %v481
        %v496 = vmul.f32 %v466, %v485
        %v497 = vmul.f32 %v467, %v489
        %v498 = vmul.f32 %v468, %v477
        %v499 = vmul.f32 %v469, %v481
        %v500 = vmul.f32 %v470, %v485
        %v501 = vmul.f32 %v471, %v489
        %v502 = vpack.c.bf16 %v498, %v494
        %v503 = vpack.c.bf16 %v499, %v495
        %v504 = vpack.c.bf16 %v500, %v496
        %v505 = vpack.c.bf16 %v501, %v497
        %v510 = vunpack.c.l.b16 %v502
        %v511 = vunpack.c.l.b16 %v503
        %v512 = vunpack.c.l.b16 %v504
        %v513 = vunpack.c.l.b16 %v505
        %v514 = vunpack.c.h.b16 %v502
        %v515 = vunpack.c.h.b16 %v503
        %v516 = vunpack.c.h.b16 %v504
        %v517 = vunpack.c.h.b16 %v505
        %v518 = vpack.c.b16 %v511, %v510
        %v519 = vpack.c.b16 %v513, %v512
        %v520 = vpack.c.b16 %v515, %v514
        %v521 = vpack.c.b16 %v517, %v516
        %526 = vst [vmem:[%s410] sm:$0xff] %v518
        %527 = vst [vmem:[%s410 + $0x8] sm:$0xff] %v519
        %528 = vst [vmem:[%s410 + $0x10] sm:$0xff] %v520
        %529 = vst [vmem:[%s410 + $0x18] sm:$0xff] %v521
        %v530 = vld [vmem:[#allocation8] sm:$0xff]
        %v531 = vld [vmem:[#allocation8 + $0x8] sm:$0xff]
        %v532 = vld [vmem:[#allocation8 + $0x10] sm:$0xff]
        %v533 = vld [vmem:[#allocation8 + $0x18] sm:$0xff]
        %v534 = vld [vmem:[#allocation8 + $0x20] sm:$0xff]
        %v535 = vld [vmem:[#allocation8 + $0x28] sm:$0xff]
        %v536 = vld [vmem:[#allocation8 + $0x30] sm:$0xff]
        %v537 = vld [vmem:[#allocation8 + $0x38] sm:$0xff]
        %v538 = vld [vmem:[#allocation8 + $0x40] sm:$0xff]
        %v539 = vld [vmem:[#allocation8 + $0x48] sm:$0xff]
        %v540 = vld [vmem:[#allocation8 + $0x50] sm:$0xff]
        %v541 = vld [vmem:[#allocation8 + $0x58] sm:$0xff]
        %v542 = vld [vmem:[#allocation8 + $0x60] sm:$0xff]
        %v543 = vld [vmem:[#allocation8 + $0x68] sm:$0xff]
        %v544 = vld [vmem:[#allocation8 + $0x70] sm:$0xff]
        %v545 = vld [vmem:[#allocation8 + $0x78] sm:$0xff]
        %v546 = vld [vmem:[#allocation8 + $0x80] sm:$0xff]
        %v547 = vld [vmem:[#allocation8 + $0x88] sm:$0xff]
        %v548 = vld [vmem:[#allocation8 + $0x90] sm:$0xff]
        %v549 = vld [vmem:[#allocation8 + $0x98] sm:$0xff]
        %v550 = vld [vmem:[#allocation8 + $0xa0] sm:$0xff]
        %v551 = vld [vmem:[#allocation8 + $0xa8] sm:$0xff]
        %v552 = vld [vmem:[#allocation8 + $0xb0] sm:$0xff]
        %v553 = vld [vmem:[#allocation8 + $0xb8] sm:$0xff]
        %v554 = vld [vmem:[#allocation8 + $0xc0] sm:$0xff]
        %v555 = vld [vmem:[#allocation8 + $0xc8] sm:$0xff]
        %v556 = vld [vmem:[#allocation8 + $0xd0] sm:$0xff]
        %v557 = vld [vmem:[#allocation8 + $0xd8] sm:$0xff]
        %v558 = vld [vmem:[#allocation8 + $0xe0] sm:$0xff]
        %v559 = vld [vmem:[#allocation8 + $0xe8] sm:$0xff]
        %v560 = vld [vmem:[#allocation8 + $0xf0] sm:$0xff]
        %v561 = vld [vmem:[#allocation8 + $0xf8] sm:$0xff]
        %v562 = vld [vmem:[#allocation8 + $0x100] sm:$0xff]
        %v563 = vld [vmem:[#allocation8 + $0x108] sm:$0xff]
        %v564 = vld [vmem:[#allocation8 + $0x110] sm:$0xff]
        %v565 = vld [vmem:[#allocation8 + $0x118] sm:$0xff]
        %v566 = vld [vmem:[#allocation8 + $0x120] sm:$0xff]
        %v567 = vld [vmem:[#allocation8 + $0x128] sm:$0xff]
        %v568 = vld [vmem:[#allocation8 + $0x130] sm:$0xff]
        %v569 = vld [vmem:[#allocation8 + $0x138] sm:$0xff]
        %v570 = vld [vmem:[#allocation8 + $0x140] sm:$0xff]
        %v571 = vld [vmem:[#allocation8 + $0x148] sm:$0xff]
        %v572 = vld [vmem:[#allocation8 + $0x150] sm:$0xff]
        %v573 = vld [vmem:[#allocation8 + $0x158] sm:$0xff]
        %v574 = vld [vmem:[#allocation8 + $0x160] sm:$0xff]
        %v575 = vld [vmem:[#allocation8 + $0x168] sm:$0xff]
        %v576 = vld [vmem:[#allocation8 + $0x170] sm:$0xff]
        %v577 = vld [vmem:[#allocation8 + $0x178] sm:$0xff]
        %v578 = vld [vmem:[#allocation8 + $0x180] sm:$0xff]
        %v579 = vld [vmem:[#allocation8 + $0x188] sm:$0xff]
        %v580 = vld [vmem:[#allocation8 + $0x190] sm:$0xff]
        %v581 = vld [vmem:[#allocation8 + $0x198] sm:$0xff]
        %v582 = vld [vmem:[#allocation8 + $0x1a0] sm:$0xff]
        %v583 = vld [vmem:[#allocation8 + $0x1a8] sm:$0xff]
        %v584 = vld [vmem:[#allocation8 + $0x1b0] sm:$0xff]
        %v585 = vld [vmem:[#allocation8 + $0x1b8] sm:$0xff]
        %v586 = vld [vmem:[#allocation8 + $0x1c0] sm:$0xff]
        %v587 = vld [vmem:[#allocation8 + $0x1c8] sm:$0xff]
        %v588 = vld [vmem:[#allocation8 + $0x1d0] sm:$0xff]
        %v589 = vld [vmem:[#allocation8 + $0x1d8] sm:$0xff]
        %v590 = vld [vmem:[#allocation8 + $0x1e0] sm:$0xff]
        %v591 = vld [vmem:[#allocation8 + $0x1e8] sm:$0xff]
        %v592 = vld [vmem:[#allocation8 + $0x1f0] sm:$0xff]
        %v593 = vld [vmem:[#allocation8 + $0x1f8] sm:$0xff]
        %v594 = vld [vmem:[#allocation8 + $0x200] sm:$0xff]
        %v595 = vld [vmem:[#allocation8 + $0x208] sm:$0xff]
        %v596 = vld [vmem:[#allocation8 + $0x210] sm:$0xff]
        %v597 = vld [vmem:[#allocation8 + $0x218] sm:$0xff]
        %v598 = vld [vmem:[#allocation8 + $0x220] sm:$0xff]
        %v599 = vld [vmem:[#allocation8 + $0x228] sm:$0xff]
        %v600 = vld [vmem:[#allocation8 + $0x230] sm:$0xff]
        %v601 = vld [vmem:[#allocation8 + $0x238] sm:$0xff]
        %v602 = vld [vmem:[#allocation8 + $0x240] sm:$0xff]
        %v603 = vld [vmem:[#allocation8 + $0x248] sm:$0xff]
        %v604 = vld [vmem:[#allocation8 + $0x250] sm:$0xff]
        %v605 = vld [vmem:[#allocation8 + $0x258] sm:$0xff]
        %v606 = vld [vmem:[#allocation8 + $0x260] sm:$0xff]
        %v607 = vld [vmem:[#allocation8 + $0x268] sm:$0xff]
        %v608 = vld [vmem:[#allocation8 + $0x270] sm:$0xff]
        %v609 = vld [vmem:[#allocation8 + $0x278] sm:$0xff]
        %v610 = vld [vmem:[#allocation8 + $0x280] sm:$0xff]
        %v611 = vld [vmem:[#allocation8 + $0x288] sm:$0xff]
        %v612 = vld [vmem:[#allocation8 + $0x290] sm:$0xff]
        %v613 = vld [vmem:[#allocation8 + $0x298] sm:$0xff]
        %v614 = vld [vmem:[#allocation8 + $0x2a0] sm:$0xff]
        %v615 = vld [vmem:[#allocation8 + $0x2a8] sm:$0xff]
        %v616 = vld [vmem:[#allocation8 + $0x2b0] sm:$0xff]
        %v617 = vld [vmem:[#allocation8 + $0x2b8] sm:$0xff]
        %v618 = vld [vmem:[#allocation8 + $0x2c0] sm:$0xff]
        %v619 = vld [vmem:[#allocation8 + $0x2c8] sm:$0xff]
        %v620 = vld [vmem:[#allocation8 + $0x2d0] sm:$0xff]
        %v621 = vld [vmem:[#allocation8 + $0x2d8] sm:$0xff]
        %v622 = vld [vmem:[#allocation8 + $0x2e0] sm:$0xff]
        %v623 = vld [vmem:[#allocation8 + $0x2e8] sm:$0xff]
        %v624 = vld [vmem:[#allocation8 + $0x2f0] sm:$0xff]
        %v625 = vld [vmem:[#allocation8 + $0x2f8] sm:$0xff]
        %v626 = vld [vmem:[#allocation8 + $0x300] sm:$0xff]
        %v627 = vld [vmem:[#allocation8 + $0x308] sm:$0xff]
        %v628 = vld [vmem:[#allocation8 + $0x310] sm:$0xff]
        %v629 = vld [vmem:[#allocation8 + $0x318] sm:$0xff]
        %v630 = vld [vmem:[#allocation8 + $0x320] sm:$0xff]
        %v631 = vld [vmem:[#allocation8 + $0x328] sm:$0xff]
        %v632 = vld [vmem:[#allocation8 + $0x330] sm:$0xff]
        %v633 = vld [vmem:[#allocation8 + $0x338] sm:$0xff]
        %v634 = vld [vmem:[#allocation8 + $0x340] sm:$0xff]
        %v635 = vld [vmem:[#allocation8 + $0x348] sm:$0xff]
        %v636 = vld [vmem:[#allocation8 + $0x350] sm:$0xff]
        %v637 = vld [vmem:[#allocation8 + $0x358] sm:$0xff]
        %v638 = vld [vmem:[#allocation8 + $0x360] sm:$0xff]
        %v639 = vld [vmem:[#allocation8 + $0x368] sm:$0xff]
        %v640 = vld [vmem:[#allocation8 + $0x370] sm:$0xff]
        %v641 = vld [vmem:[#allocation8 + $0x378] sm:$0xff]
        %v642 = vld [vmem:[#allocation8 + $0x380] sm:$0xff]
        %v643 = vld [vmem:[#allocation8 + $0x388] sm:$0xff]
        %v644 = vld [vmem:[#allocation8 + $0x390] sm:$0xff]
        %v645 = vld [vmem:[#allocation8 + $0x398] sm:$0xff]
        %v646 = vld [vmem:[#allocation8 + $0x3a0] sm:$0xff]
        %v647 = vld [vmem:[#allocation8 + $0x3a8] sm:$0xff]
        %v648 = vld [vmem:[#allocation8 + $0x3b0] sm:$0xff]
        %v649 = vld [vmem:[#allocation8 + $0x3b8] sm:$0xff]
        %v650 = vld [vmem:[#allocation8 + $0x3c0] sm:$0xff]
        %v651 = vld [vmem:[#allocation8 + $0x3c8] sm:$0xff]
        %v652 = vld [vmem:[#allocation8 + $0x3d0] sm:$0xff]
        %v653 = vld [vmem:[#allocation8 + $0x3d8] sm:$0xff]
        %v654 = vld [vmem:[#allocation8 + $0x3e0] sm:$0xff]
        %v655 = vld [vmem:[#allocation8 + $0x3e8] sm:$0xff]
        %v656 = vld [vmem:[#allocation8 + $0x3f0] sm:$0xff]
        %v657 = vld [vmem:[#allocation8 + $0x3f8] sm:$0xff]
        %v658 = vld [vmem:[%s5] sm:$0xf]
        %v660 = vlaneseq
        %v661 = vshrl.u32 %v660, 7
        %v662 = vsub.s32 0, %v661
        %v663 = vrot.slane %v658, %v662
        %v664 = vlaneseq
        %v665 = vshrl.u32 %v664, 7
        %v666 = vsub.s32 1, %v665
        %v667 = vrot.slane %v658, %v666
        %v668 = vlaneseq
        %v669 = vshrl.u32 %v668, 7
        %v670 = vsub.s32 2, %v669
        %v671 = vrot.slane %v658, %v670
        %v672 = vlaneseq
        %v673 = vshrl.u32 %v672, 7
        %v674 = vsub.s32 3, %v673
        %v675 = vrot.slane %v658, %v674
        %v808 = vunpack.c.l.b16 %v530
        %v809 = vunpack.c.h.b16 %v530
        %v810 = vunpack.c.l.b16 %v531
        %v811 = vunpack.c.h.b16 %v531
        %v812 = vunpack.c.l.b16 %v532
        %v813 = vunpack.c.h.b16 %v532
        %v814 = vunpack.c.l.b16 %v533
        %v815 = vunpack.c.h.b16 %v533
        %v816 = vunpack.c.l.b16 %v534
        %v817 = vunpack.c.h.b16 %v534
        %v818 = vunpack.c.l.b16 %v535
        %v819 = vunpack.c.h.b16 %v535
        %v820 = vunpack.c.l.b16 %v536
        %v821 = vunpack.c.h.b16 %v536
        %v822 = vunpack.c.l.b16 %v537
        %v823 = vunpack.c.h.b16 %v537
        %v824 = vunpack.c.l.b16 %v538
        %v825 = vunpack.c.h.b16 %v538
        %v826 = vunpack.c.l.b16 %v539
        %v827 = vunpack.c.h.b16 %v539
        %v828 = vunpack.c.l.b16 %v540
        %v829 = vunpack.c.h.b16 %v540
        %v830 = vunpack.c.l.b16 %v541
        %v831 = vunpack.c.h.b16 %v541
        %v832 = vunpack.c.l.b16 %v542
        %v833 = vunpack.c.h.b16 %v542
        %v834 = vunpack.c.l.b16 %v543
        %v835 = vunpack.c.h.b16 %v543
        %v836 = vunpack.c.l.b16 %v544
        %v837 = vunpack.c.h.b16 %v544
        %v838 = vunpack.c.l.b16 %v545
        %v839 = vunpack.c.h.b16 %v545
        %v840 = vunpack.c.l.b16 %v546
        %v841 = vunpack.c.h.b16 %v546
        %v842 = vunpack.c.l.b16 %v547
        %v843 = vunpack.c.h.b16 %v547
        %v844 = vunpack.c.l.b16 %v548
        %v845 = vunpack.c.h.b16 %v548
        %v846 = vunpack.c.l.b16 %v549
        %v847 = vunpack.c.h.b16 %v549
        %v848 = vunpack.c.l.b16 %v550
        %v849 = vunpack.c.h.b16 %v550
        %v850 = vunpack.c.l.b16 %v551
        %v851 = vunpack.c.h.b16 %v551
        %v852 = vunpack.c.l.b16 %v552
        %v853 = vunpack.c.h.b16 %v552
        %v854 = vunpack.c.l.b16 %v553
        %v855 = vunpack.c.h.b16 %v553
        %v856 = vunpack.c.l.b16 %v554
        %v857 = vunpack.c.h.b16 %v554
        %v858 = vunpack.c.l.b16 %v555
        %v859 = vunpack.c.h.b16 %v555
        %v860 = vunpack.c.l.b16 %v556
        %v861 = vunpack.c.h.b16 %v556
        %v862 = vunpack.c.l.b16 %v557
        %v863 = vunpack.c.h.b16 %v557
        %v864 = vunpack.c.l.b16 %v558
        %v865 = vunpack.c.h.b16 %v558
        %v866 = vunpack.c.l.b16 %v559
        %v867 = vunpack.c.h.b16 %v559
        %v868 = vunpack.c.l.b16 %v560
        %v869 = vunpack.c.h.b16 %v560
        %v870 = vunpack.c.l.b16 %v561
        %v871 = vunpack.c.h.b16 %v561
        %v872 = vunpack.c.l.b16 %v562
        %v873 = vunpack.c.h.b16 %v562
        %v874 = vunpack.c.l.b16 %v563
        %v875 = vunpack.c.h.b16 %v563
        %v876 = vunpack.c.l.b16 %v564
        %v877 = vunpack.c.h.b16 %v564
        %v878 = vunpack.c.l.b16 %v565
        %v879 = vunpack.c.h.b16 %v565
        %v880 = vunpack.c.l.b16 %v566
        %v881 = vunpack.c.h.b16 %v566
        %v882 = vunpack.c.l.b16 %v567
        %v883 = vunpack.c.h.b16 %v567
        %v884 = vunpack.c.l.b16 %v568
        %v885 = vunpack.c.h.b16 %v568
        %v886 = vunpack.c.l.b16 %v569
        %v887 = vunpack.c.h.b16 %v569
        %v888 = vunpack.c.l.b16 %v570
        %v889 = vunpack.c.h.b16 %v570
        %v890 = vunpack.c.l.b16 %v571
        %v891 = vunpack.c.h.b16 %v571
        %v892 = vunpack.c.l.b16 %v572
        %v893 = vunpack.c.h.b16 %v572
        %v894 = vunpack.c.l.b16 %v573
        %v895 = vunpack.c.h.b16 %v573
        %v896 = vunpack.c.l.b16 %v574
        %v897 = vunpack.c.h.b16 %v574
        %v898 = vunpack.c.l.b16 %v575
        %v899 = vunpack.c.h.b16 %v575
        %v900 = vunpack.c.l.b16 %v576
        %v901 = vunpack.c.h.b16 %v576
        %v902 = vunpack.c.l.b16 %v577
        %v903 = vunpack.c.h.b16 %v577
        %v904 = vunpack.c.l.b16 %v578
        %v905 = vunpack.c.h.b16 %v578
        %v906 = vunpack.c.l.b16 %v579
        %v907 = vunpack.c.h.b16 %v579
        %v908 = vunpack.c.l.b16 %v580
        %v909 = vunpack.c.h.b16 %v580
        %v910 = vunpack.c.l.b16 %v581
        %v911 = vunpack.c.h.b16 %v581
        %v912 = vunpack.c.l.b16 %v582
        %v913 = vunpack.c.h.b16 %v582
        %v914 = vunpack.c.l.b16 %v583
        %v915 = vunpack.c.h.b16 %v583
        %v916 = vunpack.c.l.b16 %v584
        %v917 = vunpack.c.h.b16 %v584
        %v918 = vunpack.c.l.b16 %v585
        %v919 = vunpack.c.h.b16 %v585
        %v920 = vunpack.c.l.b16 %v586
        %v921 = vunpack.c.h.b16 %v586
        %v922 = vunpack.c.l.b16 %v587
        %v923 = vunpack.c.h.b16 %v587
        %v924 = vunpack.c.l.b16 %v588
        %v925 = vunpack.c.h.b16 %v588
        %v926 = vunpack.c.l.b16 %v589
        %v927 = vunpack.c.h.b16 %v589
        %v928 = vunpack.c.l.b16 %v590
        %v929 = vunpack.c.h.b16 %v590
        %v930 = vunpack.c.l.b16 %v591
        %v931 = vunpack.c.h.b16 %v591
        %v932 = vunpack.c.l.b16 %v592
        %v933 = vunpack.c.h.b16 %v592
        %v934 = vunpack.c.l.b16 %v593
        %v935 = vunpack.c.h.b16 %v593
        %v936 = vunpack.c.l.b16 %v594
        %v937 = vunpack.c.h.b16 %v594
        %v938 = vunpack.c.l.b16 %v595
        %v939 = vunpack.c.h.b16 %v595
        %v940 = vunpack.c.l.b16 %v596
        %v941 = vunpack.c.h.b16 %v596
        %v942 = vunpack.c.l.b16 %v597
        %v943 = vunpack.c.h.b16 %v597
        %v944 = vunpack.c.l.b16 %v598
        %v945 = vunpack.c.h.b16 %v598
        %v946 = vunpack.c.l.b16 %v599
        %v947 = vunpack.c.h.b16 %v599
        %v948 = vunpack.c.l.b16 %v600
        %v949 = vunpack.c.h.b16 %v600
        %v950 = vunpack.c.l.b16 %v601
        %v951 = vunpack.c.h.b16 %v601
        %v952 = vunpack.c.l.b16 %v602
        %v953 = vunpack.c.h.b16 %v602
        %v954 = vunpack.c.l.b16 %v603
        %v955 = vunpack.c.h.b16 %v603
        %v956 = vunpack.c.l.b16 %v604
        %v957 = vunpack.c.h.b16 %v604
        %v958 = vunpack.c.l.b16 %v605
        %v959 = vunpack.c.h.b16 %v605
        %v960 = vunpack.c.l.b16 %v606
        %v961 = vunpack.c.h.b16 %v606
        %v962 = vunpack.c.l.b16 %v607
        %v963 = vunpack.c.h.b16 %v607
        %v964 = vunpack.c.l.b16 %v608
        %v965 = vunpack.c.h.b16 %v608
        %v966 = vunpack.c.l.b16 %v609
        %v967 = vunpack.c.h.b16 %v609
        %v968 = vunpack.c.l.b16 %v610
        %v969 = vunpack.c.h.b16 %v610
        %v970 = vunpack.c.l.b16 %v611
        %v971 = vunpack.c.h.b16 %v611
        %v972 = vunpack.c.l.b16 %v612
        %v973 = vunpack.c.h.b16 %v612
        %v974 = vunpack.c.l.b16 %v613
        %v975 = vunpack.c.h.b16 %v613
        %v976 = vunpack.c.l.b16 %v614
        %v977 = vunpack.c.h.b16 %v614
        %v978 = vunpack.c.l.b16 %v615
        %v979 = vunpack.c.h.b16 %v615
        %v980 = vunpack.c.l.b16 %v616
        %v981 = vunpack.c.h.b16 %v616
        %v982 = vunpack.c.l.b16 %v617
        %v983 = vunpack.c.h.b16 %v617
        %v984 = vunpack.c.l.b16 %v618
        %v985 = vunpack.c.h.b16 %v618
        %v986 = vunpack.c.l.b16 %v619
        %v987 = vunpack.c.h.b16 %v619
        %v988 = vunpack.c.l.b16 %v620
        %v989 = vunpack.c.h.b16 %v620
        %v990 = vunpack.c.l.b16 %v621
        %v991 = vunpack.c.h.b16 %v621
        %v992 = vunpack.c.l.b16 %v622
        %v993 = vunpack.c.h.b16 %v622
        %v994 = vunpack.c.l.b16 %v623
        %v995 = vunpack.c.h.b16 %v623
        %v996 = vunpack.c.l.b16 %v624
        %v997 = vunpack.c.h.b16 %v624
        %v998 = vunpack.c.l.b16 %v625
        %v999 = vunpack.c.h.b16 %v625
        %v1000 = vunpack.c.l.b16 %v626
        %v1001 = vunpack.c.h.b16 %v626
        %v1002 = vunpack.c.l.b16 %v627
        %v1003 = vunpack.c.h.b16 %v627
        %v1004 = vunpack.c.l.b16 %v628
        %v1005 = vunpack.c.h.b16 %v628
        %v1006 = vunpack.c.l.b16 %v629
        %v1007 = vunpack.c.h.b16 %v629
        %v1008 = vunpack.c.l.b16 %v630
        %v1009 = vunpack.c.h.b16 %v630
        %v1010 = vunpack.c.l.b16 %v631
        %v1011 = vunpack.c.h.b16 %v631
        %v1012 = vunpack.c.l.b16 %v632
        %v1013 = vunpack.c.h.b16 %v632
        %v1014 = vunpack.c.l.b16 %v633
        %v1015 = vunpack.c.h.b16 %v633
        %v1016 = vunpack.c.l.b16 %v634
        %v1017 = vunpack.c.h.b16 %v634
        %v1018 = vunpack.c.l.b16 %v635
        %v1019 = vunpack.c.h.b16 %v635
        %v1020 = vunpack.c.l.b16 %v636
        %v1021 = vunpack.c.h.b16 %v636
        %v1022 = vunpack.c.l.b16 %v637
        %v1023 = vunpack.c.h.b16 %v637
        %v1024 = vunpack.c.l.b16 %v638
        %v1025 = vunpack.c.h.b16 %v638
        %v1026 = vunpack.c.l.b16 %v639
        %v1027 = vunpack.c.h.b16 %v639
        %v1028 = vunpack.c.l.b16 %v640
        %v1029 = vunpack.c.h.b16 %v640
        %v1030 = vunpack.c.l.b16 %v641
        %v1031 = vunpack.c.h.b16 %v641
        %v1032 = vunpack.c.l.b16 %v642
        %v1033 = vunpack.c.h.b16 %v642
        %v1034 = vunpack.c.l.b16 %v643
        %v1035 = vunpack.c.h.b16 %v643
        %v1036 = vunpack.c.l.b16 %v644
        %v1037 = vunpack.c.h.b16 %v644
        %v1038 = vunpack.c.l.b16 %v645
        %v1039 = vunpack.c.h.b16 %v645
        %v1040 = vunpack.c.l.b16 %v646
        %v1041 = vunpack.c.h.b16 %v646
        %v1042 = vunpack.c.l.b16 %v647
        %v1043 = vunpack.c.h.b16 %v647
        %v1044 = vunpack.c.l.b16 %v648
        %v1045 = vunpack.c.h.b16 %v648
        %v1046 = vunpack.c.l.b16 %v649
        %v1047 = vunpack.c.h.b16 %v649
        %v1048 = vunpack.c.l.b16 %v650
        %v1049 = vunpack.c.h.b16 %v650
        %v1050 = vunpack.c.l.b16 %v651
        %v1051 = vunpack.c.h.b16 %v651
        %v1052 = vunpack.c.l.b16 %v652
        %v1053 = vunpack.c.h.b16 %v652
        %v1054 = vunpack.c.l.b16 %v653
        %v1055 = vunpack.c.h.b16 %v653
        %v1056 = vunpack.c.l.b16 %v654
        %v1057 = vunpack.c.h.b16 %v654
        %v1058 = vunpack.c.l.b16 %v655
        %v1059 = vunpack.c.h.b16 %v655
        %v1060 = vunpack.c.l.b16 %v656
        %v1061 = vunpack.c.h.b16 %v656
        %v1062 = vunpack.c.l.b16 %v657
        %v1063 = vunpack.c.h.b16 %v657
        %v1064 = vpack.c.b16 %v812, %v808
        %v1065 = vpack.c.b16 %v813, %v809
        %v1066 = vpack.c.b16 %v814, %v810
        %v1067 = vpack.c.b16 %v815, %v811
        %v1068 = vpack.c.b16 %v820, %v816
        %v1069 = vpack.c.b16 %v821, %v817
        %v1070 = vpack.c.b16 %v822, %v818
        %v1071 = vpack.c.b16 %v823, %v819
        %v1072 = vpack.c.b16 %v828, %v824
        %v1073 = vpack.c.b16 %v829, %v825
        %v1074 = vpack.c.b16 %v830, %v826
        %v1075 = vpack.c.b16 %v831, %v827
        %v1076 = vpack.c.b16 %v836, %v832
        %v1077 = vpack.c.b16 %v837, %v833
        %v1078 = vpack.c.b16 %v838, %v834
        %v1079 = vpack.c.b16 %v839, %v835
        %v1080 = vpack.c.b16 %v844, %v840
        %v1081 = vpack.c.b16 %v845, %v841
        %v1082 = vpack.c.b16 %v846, %v842
        %v1083 = vpack.c.b16 %v847, %v843
        %v1084 = vpack.c.b16 %v852, %v848
        %v1085 = vpack.c.b16 %v853, %v849
        %v1086 = vpack.c.b16 %v854, %v850
        %v1087 = vpack.c.b16 %v855, %v851
        %v1088 = vpack.c.b16 %v860, %v856
        %v1089 = vpack.c.b16 %v861, %v857
        %v1090 = vpack.c.b16 %v862, %v858
        %v1091 = vpack.c.b16 %v863, %v859
        %v1092 = vpack.c.b16 %v868, %v864
        %v1093 = vpack.c.b16 %v869, %v865
        %v1094 = vpack.c.b16 %v870, %v866
        %v1095 = vpack.c.b16 %v871, %v867
        %v1096 = vpack.c.b16 %v876, %v872
        %v1097 = vpack.c.b16 %v877, %v873
        %v1098 = vpack.c.b16 %v878, %v874
        %v1099 = vpack.c.b16 %v879, %v875
        %v1100 = vpack.c.b16 %v884, %v880
        %v1101 = vpack.c.b16 %v885, %v881
        %v1102 = vpack.c.b16 %v886, %v882
        %v1103 = vpack.c.b16 %v887, %v883
        %v1104 = vpack.c.b16 %v892, %v888
        %v1105 = vpack.c.b16 %v893, %v889
        %v1106 = vpack.c.b16 %v894, %v890
        %v1107 = vpack.c.b16 %v895, %v891
        %v1108 = vpack.c.b16 %v900, %v896
        %v1109 = vpack.c.b16 %v901, %v897
        %v1110 = vpack.c.b16 %v902, %v898
        %v1111 = vpack.c.b16 %v903, %v899
        %v1112 = vpack.c.b16 %v908, %v904
        %v1113 = vpack.c.b16 %v909, %v905
        %v1114 = vpack.c.b16 %v910, %v906
        %v1115 = vpack.c.b16 %v911, %v907
        %v1116 = vpack.c.b16 %v916, %v912
        %v1117 = vpack.c.b16 %v917, %v913
        %v1118 = vpack.c.b16 %v918, %v914
        %v1119 = vpack.c.b16 %v919, %v915
        %v1120 = vpack.c.b16 %v924, %v920
        %v1121 = vpack.c.b16 %v925, %v921
        %v1122 = vpack.c.b16 %v926, %v922
        %v1123 = vpack.c.b16 %v927, %v923
        %v1124 = vpack.c.b16 %v932, %v928
        %v1125 = vpack.c.b16 %v933, %v929
        %v1126 = vpack.c.b16 %v934, %v930
        %v1127 = vpack.c.b16 %v935, %v931
        %v1128 = vpack.c.b16 %v940, %v936
        %v1129 = vpack.c.b16 %v941, %v937
        %v1130 = vpack.c.b16 %v942, %v938
        %v1131 = vpack.c.b16 %v943, %v939
        %v1132 = vpack.c.b16 %v948, %v944
        %v1133 = vpack.c.b16 %v949, %v945
        %v1134 = vpack.c.b16 %v950, %v946
        %v1135 = vpack.c.b16 %v951, %v947
        %v1136 = vpack.c.b16 %v956, %v952
        %v1137 = vpack.c.b16 %v957, %v953
        %v1138 = vpack.c.b16 %v958, %v954
        %v1139 = vpack.c.b16 %v959, %v955
        %v1140 = vpack.c.b16 %v964, %v960
        %v1141 = vpack.c.b16 %v965, %v961
        %v1142 = vpack.c.b16 %v966, %v962
        %v1143 = vpack.c.b16 %v967, %v963
        %v1144 = vpack.c.b16 %v972, %v968
        %v1145 = vpack.c.b16 %v973, %v969
        %v1146 = vpack.c.b16 %v974, %v970
        %v1147 = vpack.c.b16 %v975, %v971
        %v1148 = vpack.c.b16 %v980, %v976
        %v1149 = vpack.c.b16 %v981, %v977
        %v1150 = vpack.c.b16 %v982, %v978
        %v1151 = vpack.c.b16 %v983, %v979
        %v1152 = vpack.c.b16 %v988, %v984
        %v1153 = vpack.c.b16 %v989, %v985
        %v1154 = vpack.c.b16 %v990, %v986
        %v1155 = vpack.c.b16 %v991, %v987
        %v1156 = vpack.c.b16 %v996, %v992
        %v1157 = vpack.c.b16 %v997, %v993
        %v1158 = vpack.c.b16 %v998, %v994
        %v1159 = vpack.c.b16 %v999, %v995
        %v1160 = vpack.c.b16 %v1004, %v1000
        %v1161 = vpack.c.b16 %v1005, %v1001
        %v1162 = vpack.c.b16 %v1006, %v1002
        %v1163 = vpack.c.b16 %v1007, %v1003
        %v1164 = vpack.c.b16 %v1012, %v1008
        %v1165 = vpack.c.b16 %v1013, %v1009
        %v1166 = vpack.c.b16 %v1014, %v1010
        %v1167 = vpack.c.b16 %v1015, %v1011
        %v1168 = vpack.c.b16 %v1020, %v1016
        %v1169 = vpack.c.b16 %v1021, %v1017
        %v1170 = vpack.c.b16 %v1022, %v1018
        %v1171 = vpack.c.b16 %v1023, %v1019
        %v1172 = vpack.c.b16 %v1028, %v1024
        %v1173 = vpack.c.b16 %v1029, %v1025
        %v1174 = vpack.c.b16 %v1030, %v1026
        %v1175 = vpack.c.b16 %v1031, %v1027
        %v1176 = vpack.c.b16 %v1036, %v1032
        %v1177 = vpack.c.b16 %v1037, %v1033
        %v1178 = vpack.c.b16 %v1038, %v1034
        %v1179 = vpack.c.b16 %v1039, %v1035
        %v1180 = vpack.c.b16 %v1044, %v1040
        %v1181 = vpack.c.b16 %v1045, %v1041
        %v1182 = vpack.c.b16 %v1046, %v1042
        %v1183 = vpack.c.b16 %v1047, %v1043
        %v1184 = vpack.c.b16 %v1052, %v1048
        %v1185 = vpack.c.b16 %v1053, %v1049
        %v1186 = vpack.c.b16 %v1054, %v1050
        %v1187 = vpack.c.b16 %v1055, %v1051
        %v1188 = vpack.c.b16 %v1060, %v1056
        %v1189 = vpack.c.b16 %v1061, %v1057
        %v1190 = vpack.c.b16 %v1062, %v1058
        %v1191 = vpack.c.b16 %v1063, %v1059
        %1320 = vmatprep.subr.bf16.mxu0 %v1065
        %1321 = vmatpush1.bf16.msra.mxu0 %v1064
        %1322 = vmatprep.subr.bf16.mxu0 %v1069
        %1323 = vmatpush1.bf16.msra.mxu0 %v1068
        %1324 = vmatprep.subr.bf16.mxu0 %v1073
        %1325 = vmatpush1.bf16.msra.mxu0 %v1072
        %1326 = vmatprep.subr.bf16.mxu0 %v1077
        %1327 = vmatpush1.bf16.msra.mxu0 %v1076
        %1328 = vmatprep.subr.bf16.mxu0 %v1081
        %1329 = vmatpush1.bf16.msra.mxu0 %v1080
        %1330 = vmatprep.subr.bf16.mxu0 %v1085
        %1331 = vmatpush1.bf16.msra.mxu0 %v1084
        %1332 = vmatprep.subr.bf16.mxu0 %v1089
        %1333 = vmatpush1.bf16.msra.mxu0 %v1088
        %1334 = vmatprep.subr.bf16.mxu0 %v1093
        %1335 = vmatpush1.bf16.msra.mxu0 %v1092
        %1336 = vmatprep.subr.bf16.mxu0 %v1097
        %1337 = vmatpush1.bf16.msra.mxu0 %v1096
        %1338 = vmatprep.subr.bf16.mxu0 %v1101
        %1339 = vmatpush1.bf16.msra.mxu0 %v1100
        %1340 = vmatprep.subr.bf16.mxu0 %v1105
        %1341 = vmatpush1.bf16.msra.mxu0 %v1104
        %1342 = vmatprep.subr.bf16.mxu0 %v1109
        %1343 = vmatpush1.bf16.msra.mxu0 %v1108
        %1344 = vmatprep.subr.bf16.mxu0 %v1113
        %1345 = vmatpush1.bf16.msra.mxu0 %v1112
        %1346 = vmatprep.subr.bf16.mxu0 %v1117
        %1347 = vmatpush1.bf16.msra.mxu0 %v1116
        %1348 = vmatprep.subr.bf16.mxu0 %v1121
        %1349 = vmatpush1.bf16.msra.mxu0 %v1120
        %1350 = vmatprep.subr.bf16.mxu0 %v1125
        %1351 = vmatpush1.bf16.msra.mxu0 %v1124
        %1352 = vmatprep.mubr.bf16.mxu0 %v503
        %1353 = vmatmul.mubr.bf16.gmra.mrb[0].mxu0 %v502
        %v1354 = vpop.f32.mrb[0].mxu0
        %v1355 = vadd.f32 %v663, %v1354
        %v1356 = vpop.f32.mrb[0].mxu0
        %v1357 = vadd.f32 %v667, %v1356
        %v1358 = vpop.f32.mrb[0].mxu0
        %v1359 = vadd.f32 %v663, %v1358
        %v1360 = vpop.f32.mrb[0].mxu0
        %v1361 = vadd.f32 %v667, %v1360
        %1362 = vdwg.mxu0
        %1363 = vmatprep.subr.bf16.mxu0 %v1129
        %1364 = vmatpush1.bf16.msra.mxu0 %v1128
        %1365 = vmatprep.subr.bf16.mxu0 %v1133
        %1366 = vmatpush1.bf16.msra.mxu0 %v1132
        %1367 = vmatprep.subr.bf16.mxu0 %v1137
        %1368 = vmatpush1.bf16.msra.mxu0 %v1136
        %1369 = vmatprep.subr.bf16.mxu0 %v1141
        %1370 = vmatpush1.bf16.msra.mxu0 %v1140
        %1371 = vmatprep.subr.bf16.mxu0 %v1145
        %1372 = vmatpush1.bf16.msra.mxu0 %v1144
        %1373 = vmatprep.subr.bf16.mxu0 %v1149
        %1374 = vmatpush1.bf16.msra.mxu0 %v1148
        %1375 = vmatprep.subr.bf16.mxu0 %v1153
        %1376 = vmatpush1.bf16.msra.mxu0 %v1152
        %1377 = vmatprep.subr.bf16.mxu0 %v1157
        %1378 = vmatpush1.bf16.msra.mxu0 %v1156
        %1379 = vmatprep.subr.bf16.mxu0 %v1161
        %1380 = vmatpush1.bf16.msra.mxu0 %v1160
        %1381 = vmatprep.subr.bf16.mxu0 %v1165
        %1382 = vmatpush1.bf16.msra.mxu0 %v1164
        %1383 = vmatprep.subr.bf16.mxu0 %v1169
        %1384 = vmatpush1.bf16.msra.mxu0 %v1168
        %1385 = vmatprep.subr.bf16.mxu0 %v1173
        %1386 = vmatpush1.bf16.msra.mxu0 %v1172
        %1387 = vmatprep.subr.bf16.mxu0 %v1177
        %1388 = vmatpush1.bf16.msra.mxu0 %v1176
        %1389 = vmatprep.subr.bf16.mxu0 %v1181
        %1390 = vmatpush1.bf16.msra.mxu0 %v1180
        %1391 = vmatprep.subr.bf16.mxu0 %v1185
        %1392 = vmatpush1.bf16.msra.mxu0 %v1184
        %1393 = vmatprep.subr.bf16.mxu0 %v1189
        %1394 = vmatpush1.bf16.msra.mxu0 %v1188
        %1395 = vmatprep.mubr.bf16.mxu0 %v505
        %1396 = vmatmul.mubr.bf16.gmra.mrb[0].mxu0 %v504
        %v1397 = vpop.f32.mrb[0].mxu0
        %v1398 = vadd.f32 %v1355, %v1397
        %v1399 = vpop.f32.mrb[0].mxu0
        %v1400 = vadd.f32 %v1357, %v1399
        %v1401 = vpop.f32.mrb[0].mxu0
        %v1402 = vadd.f32 %v1359, %v1401
        %v1403 = vpop.f32.mrb[0].mxu0
        %v1404 = vadd.f32 %v1361, %v1403
        %1405 = vdwg.mxu0
        %1406 = vmatprep.subr.bf16.mxu0 %v1067
        %1407 = vmatpush1.bf16.msra.mxu0 %v1066
        %1408 = vmatprep.subr.bf16.mxu0 %v1071
        %1409 = vmatpush1.bf16.msra.mxu0 %v1070
        %1410 = vmatprep.subr.bf16.mxu0 %v1075
        %1411 = vmatpush1.bf16.msra.mxu0 %v1074
        %1412 = vmatprep.subr.bf16.mxu0 %v1079
        %1413 = vmatpush1.bf16.msra.mxu0 %v1078
        %1414 = vmatprep.subr.bf16.mxu0 %v1083
        %1415 = vmatpush1.bf16.msra.mxu0 %v1082
        %1416 = vmatprep.subr.bf16.mxu0 %v1087
        %1417 = vmatpush1.bf16.msra.mxu0 %v1086
        %1418 = vmatprep.subr.bf16.mxu0 %v1091
        %1419 = vmatpush1.bf16.msra.mxu0 %v1090
        %1420 = vmatprep.subr.bf16.mxu0 %v1095
        %1421 = vmatpush1.bf16.msra.mxu0 %v1094
        %1422 = vmatprep.subr.bf16.mxu0 %v1099
        %1423 = vmatpush1.bf16.msra.mxu0 %v1098
        %1424 = vmatprep.subr.bf16.mxu0 %v1103
        %1425 = vmatpush1.bf16.msra.mxu0 %v1102
        %1426 = vmatprep.subr.bf16.mxu0 %v1107
        %1427 = vmatpush1.bf16.msra.mxu0 %v1106
        %1428 = vmatprep.subr.bf16.mxu0 %v1111
        %1429 = vmatpush1.bf16.msra.mxu0 %v1110
        %1430 = vmatprep.subr.bf16.mxu0 %v1115
        %1431 = vmatpush1.bf16.msra.mxu0 %v1114
        %1432 = vmatprep.subr.bf16.mxu0 %v1119
        %1433 = vmatpush1.bf16.msra.mxu0 %v1118
        %1434 = vmatprep.subr.bf16.mxu0 %v1123
        %1435 = vmatpush1.bf16.msra.mxu0 %v1122
        %1436 = vmatprep.subr.bf16.mxu0 %v1127
        %1437 = vmatpush1.bf16.msra.mxu0 %v1126
        %1438 = vmatprep.mubr.bf16.mxu0 %v503
        %1439 = vmatmul.mubr.bf16.gmra.mrb[0].mxu0 %v502
        %v1440 = vpop.f32.mrb[0].mxu0
        %v1441 = vadd.f32 %v671, %v1440
        %v1442 = vpop.f32.mrb[0].mxu0
        %v1443 = vadd.f32 %v675, %v1442
        %v1444 = vpop.f32.mrb[0].mxu0
        %v1445 = vadd.f32 %v671, %v1444
        %v1446 = vpop.f32.mrb[0].mxu0
        %v1447 = vadd.f32 %v675, %v1446
        %1448 = vdwg.mxu0
        %1449 = vmatprep.subr.bf16.mxu0 %v1131
        %1450 = vmatpush1.bf16.msra.mxu0 %v1130
        %1451 = vmatprep.subr.bf16.mxu0 %v1135
        %1452 = vmatpush1.bf16.msra.mxu0 %v1134
        %1453 = vmatprep.subr.bf16.mxu0 %v1139
        %1454 = vmatpush1.bf16.msra.mxu0 %v1138
        %1455 = vmatprep.subr.bf16.mxu0 %v1143
        %1456 = vmatpush1.bf16.msra.mxu0 %v1142
        %1457 = vmatprep.subr.bf16.mxu0 %v1147
        %1458 = vmatpush1.bf16.msra.mxu0 %v1146
        %1459 = vmatprep.subr.bf16.mxu0 %v1151
        %1460 = vmatpush1.bf16.msra.mxu0 %v1150
        %1461 = vmatprep.subr.bf16.mxu0 %v1155
        %1462 = vmatpush1.bf16.msra.mxu0 %v1154
        %1463 = vmatprep.subr.bf16.mxu0 %v1159
        %1464 = vmatpush1.bf16.msra.mxu0 %v1158
        %1465 = vmatprep.subr.bf16.mxu0 %v1163
        %1466 = vmatpush1.bf16.msra.mxu0 %v1162
        %1467 = vmatprep.subr.bf16.mxu0 %v1167
        %1468 = vmatpush1.bf16.msra.mxu0 %v1166
        %1469 = vmatprep.subr.bf16.mxu0 %v1171
        %1470 = vmatpush1.bf16.msra.mxu0 %v1170
        %1471 = vmatprep.subr.bf16.mxu0 %v1175
        %1472 = vmatpush1.bf16.msra.mxu0 %v1174
        %1473 = vmatprep.subr.bf16.mxu0 %v1179
        %1474 = vmatpush1.bf16.msra.mxu0 %v1178
        %1475 = vmatprep.subr.bf16.mxu0 %v1183
        %1476 = vmatpush1.bf16.msra.mxu0 %v1182
        %1477 = vmatprep.subr.bf16.mxu0 %v1187
        %1478 = vmatpush1.bf16.msra.mxu0 %v1186
        %1479 = vmatprep.subr.bf16.mxu0 %v1191
        %1480 = vmatpush1.bf16.msra.mxu0 %v1190
        %1481 = vmatprep.mubr.bf16.mxu0 %v505
        %1482 = vmatmul.mubr.bf16.gmra.mrb[0].mxu0 %v504
        %v1483 = vpop.f32.mrb[0].mxu0
        %v1484 = vadd.f32 %v1441, %v1483
        %v1485 = vpop.f32.mrb[0].mxu0
        %v1486 = vadd.f32 %v1443, %v1485
        %v1487 = vpop.f32.mrb[0].mxu0
        %v1488 = vadd.f32 %v1445, %v1487
        %v1489 = vpop.f32.mrb[0].mxu0
        %v1490 = vadd.f32 %v1447, %v1489
        %1491 = vdwg.mxu0
        %v1492 = vld [vmem:[#allocation5] sm:$0xff]
        %v1493 = vld [vmem:[#allocation5 + $0x8] sm:$0xff]
        %v1494 = vld [vmem:[#allocation7] sm:$0xff]
        %v1495 = vld [vmem:[#allocation7 + $0x8] sm:$0xff]
        %v1496 = vlaneseq
        %v1497 = vand.u32 %v1496, 127
        %vm1498 = vcmp.lt.s32.totalorder %v1497, 64
        %v1499 = vsel %vm1498, -1.0, 1.0
        %v1500 = vmul.f32 %v1398, %v1492
        %v1501 = vmul.f32 %v1402, %v1493
        %1502 = vrot.lane.b32.xlu0 %v1398, 64
        %v1503 = vpop.permute.xlu0 %1502
        %1504 = vrot.lane.b32.xlu0 %v1402, 64
        %v1505 = vpop.permute.xlu0 %1504
        %v1506 = vmul.f32 %v1503, %v1499
        %v1507 = vmul.f32 %v1505, %v1499
        %v1508 = vmul.f32 %v1506, %v1494
        %v1509 = vmul.f32 %v1507, %v1495
        %v1510 = vadd.f32 %v1500, %v1508
        %v1511 = vadd.f32 %v1501, %v1509
        %v1512 = vpack.c.bf16 %v1511, %v1510
        %v1514 = vunpack.c.l.b16 %v1512
        %v1515 = vunpack.c.h.b16 %v1512
        %v1516 = vpack.c.b16 %v1514, %v1514
        %v1517 = vpack.c.b16 %v1515, %v1515
        %1520 = vst [vmem:[%s417] sm:$0xf] %v1516
        %1521 = vst [vmem:[%s417 + $0x8] sm:$0xf] %v1517
        %v1522 = vpack.c.bf16 %v1488, %v1484
        %v1524 = vunpack.c.l.b16 %v1522
        %v1525 = vunpack.c.h.b16 %v1522
        %v1526 = vpack.c.b16 %v1524, %v1524
        %v1527 = vpack.c.b16 %v1525, %v1525
        %1530 = vst [vmem:[%s424] sm:$0xf] %v1526
        %1531 = vst [vmem:[%s424 + $0x8] sm:$0xf] %v1527
        %v1532 = vmul.f32 %v1400, %v1492
        %v1533 = vmul.f32 %v1404, %v1493
        %1534 = vrot.lane.b32.xlu0 %v1400, 64
        %v1535 = vpop.permute.xlu0 %1534
        %1536 = vrot.lane.b32.xlu0 %v1404, 64
        %v1537 = vpop.permute.xlu0 %1536
        %v1538 = vmul.f32 %v1535, %v1499
        %v1539 = vmul.f32 %v1537, %v1499
        %v1540 = vmul.f32 %v1538, %v1494
        %v1541 = vmul.f32 %v1539, %v1495
        %v1542 = vadd.f32 %v1532, %v1540
        %v1543 = vadd.f32 %v1533, %v1541
        %v1544 = vpack.c.bf16 %v1543, %v1542
        %v1546 = vunpack.c.l.b16 %v1544
        %v1547 = vunpack.c.h.b16 %v1544
        %v1548 = vpack.c.b16 %v1546, %v1546
        %v1549 = vpack.c.b16 %v1547, %v1547
        %1552 = vst [vmem:[%s417 + $0x4] sm:$0xf] %v1548
        %1553 = vst [vmem:[%s417 + $0xc] sm:$0xf] %v1549
        %v1554 = vpack.c.bf16 %v1490, %v1486
        %v1556 = vunpack.c.l.b16 %v1554
        %v1557 = vunpack.c.h.b16 %v1554
        %v1558 = vpack.c.b16 %v1556, %v1556
        %v1559 = vpack.c.b16 %v1557, %v1557
        %1562 = vst [vmem:[%s424 + $0x4] sm:$0xf] %v1558
        %1563 = vst [vmem:[%s424 + $0xc] sm:$0xf] %v1559
        %s1564 = sand.u32 %s196, 1
        %s1565 = scalar_lea.sflag [#allocation4], %s1564
        %s1566 = sand.u32 %s196, 1
        %s1567 = smul.addr %s1566, 32
        %s1568 = scalar_lea.vmem [#allocation10], %s1567
        %s1569 = sand.u32 %s31, 1
        %s1570 = scalar_lea.sflag [#allocation12], %s1569
        %s1571 = sand.u32 %s224, 1
        %s1572 = smul.addr %s1571, 16
        %s1573 = scalar_lea.vmem [#allocation11], %s1572
        %s1574 = sand.u32 %s31, 1
        %s1575 = scalar_lea.sflag [#allocation12], %s1574
        %s1576 = sand.u32 %s252, 1
        %s1577 = smul.addr %s1576, 16
        %s1578 = scalar_lea.vmem [#allocation13], %s1577
        // Predicated region
        $region61: #{tpu_custom_call.1} parent=43 // pred_check
          %p1579 = pneg %p206
        $region62: #{tpu_custom_call.1} parent=43 // pred_check_branch
          %1581 = sbr.rel (%p1579) target = $region64
        $region63: #{tpu_custom_call.1} parent=43 // pred_region
          %s1582 = smul.u32 2, %s36
          %s1584 = ssub.s32 512, 512
          %1585 = vsyncadd %s1565, %s1584
          %s1586 = smul.addr %s1582, 4
          %s1587 = smul.addr %s35, 8
          %s1588 = sadd.s32 %s1586, %s1587
          %s1589 = smul.addr %s1588, 64
          %s1590 = scalar_lea.hbm %s6, %s1589
          %s1591 = sshll.u32 %s1568, 4
          %s1592 = int_to_ptr.vmem [resolvable:$true] %s1591
          %1597 = dma.vmem_to_hbm [thread:$0]  %s1592, 512, %s1590, %s1565, 256, 256, 16
        $region64: #{tpu_custom_call.1} parent=43 // pred_fallthru
          _
        // Predicated region
        $region65: #{tpu_custom_call.1} parent=43 // pred_check
          %p1598 = pneg %p234
        $region66: #{tpu_custom_call.1} parent=43 // pred_check_branch
          %1600 = sbr.rel (%p1598) target = $region68
        $region67: #{tpu_custom_call.1} parent=43 // pred_region
          %s1601 = smul.u32 2, %s36
          %s1603 = ssub.s32 256, 256
          %1604 = vsyncadd %s1570, %s1603
          %s1605 = smul.addr %s1601, 2
          %s1606 = smul.addr %s35, 4
          %s1607 = sadd.s32 %s1605, %s1606
          %s1608 = smul.addr %s1607, 64
          %s1609 = scalar_lea.hbm %s7, %s1608
          %s1610 = sshll.u32 %s1573, 4
          %s1611 = int_to_ptr.vmem [resolvable:$true] %s1610
          %1616 = dma.vmem_to_hbm [thread:$0]  %s1611, 256, %s1609, %s1570, 128, 128, 8
        $region68: #{tpu_custom_call.1} parent=43 // pred_fallthru
          _
        // Predicated region
        $region69: #{tpu_custom_call.1} parent=43 // pred_check
          %p1617 = pneg %p262
        $region70: #{tpu_custom_call.1} parent=43 // pred_check_branch
          %1619 = sbr.rel (%p1617) target = $region72
        $region71: #{tpu_custom_call.1} parent=43 // pred_region
          %s1620 = smul.u32 2, %s36
          %s1622 = ssub.s32 256, 256
          %1623 = vsyncadd %s1575, %s1622
          %s1624 = smul.addr %s1620, 2
          %s1625 = smul.addr %s35, 4
          %s1626 = sadd.s32 %s1624, %s1625
          %s1627 = smul.addr %s1626, 64
          %s1628 = scalar_lea.hbm %s8, %s1627
          %s1629 = sshll.u32 %s1578, 4
          %s1630 = int_to_ptr.vmem [resolvable:$true] %s1629
          %1635 = dma.vmem_to_hbm [thread:$0]  %s1630, 256, %s1628, %s1575, 128, 128, 8
        $region72: #{tpu_custom_call.1} parent=43 // pred_fallthru
          _
      $region44: #{tpu_custom_call.1} parent=5 // pred_fallthru
        _
      %p1636 = scmp.le.s32.totalorder 2, %s26
      // Predicated region
      $region73: #{tpu_custom_call.1} parent=5 // pred_check
        %p1637 = pneg %p1636
      $region74: #{tpu_custom_call.1} parent=5 // pred_check_branch
        %1639 = sbr.rel (%p1637) target = $region76
      $region75: #{tpu_custom_call.1} parent=5 // pred_region
        %s1640 = ssub.s32 %s26, 2
        // Predicated region
        $region77: #{tpu_custom_call.1} parent=75 // pred_check
          %p1641 = pneg %p212
        $region78: #{tpu_custom_call.1} parent=75 // pred_check_branch
          %1643 = sbr.rel (%p1641) target = $region80
        $region79: #{tpu_custom_call.1} parent=75 // pred_region
          %s1644 = sand.u32 %s197, 1
          %s1645 = scalar_lea.sflag [#allocation4], %s1644
          %s1646 = sand.u32 %s197, 1
          %s1647 = smul.addr %s1646, 32
          %s1648 = scalar_lea.vmem [#allocation10], %s1647
          %1649 = dma.done %s1645, 512
        $region80: #{tpu_custom_call.1} parent=75 // pred_fallthru
          _
        // Predicated region
        $region81: #{tpu_custom_call.1} parent=75 // pred_check
          %p1650 = pneg %p240
        $region82: #{tpu_custom_call.1} parent=75 // pred_check_branch
          %1652 = sbr.rel (%p1650) target = $region84
        $region83: #{tpu_custom_call.1} parent=75 // pred_region
          %s1653 = sand.u32 %s32, 1
          %s1654 = scalar_lea.sflag [#allocation12], %s1653
          %s1655 = sand.u32 %s225, 1
          %s1656 = smul.addr %s1655, 16
          %s1657 = scalar_lea.vmem [#allocation11], %s1656
          %1658 = dma.done %s1654, 256
        $region84: #{tpu_custom_call.1} parent=75 // pred_fallthru
          _
        // Predicated region
        $region85: #{tpu_custom_call.1} parent=75 // pred_check
          %p1659 = pneg %p268
        $region86: #{tpu_custom_call.1} parent=75 // pred_check_branch
          %1661 = sbr.rel (%p1659) target = $region88
        $region87: #{tpu_custom_call.1} parent=75 // pred_region
          %s1662 = sand.u32 %s32, 1
          %s1663 = scalar_lea.sflag [#allocation12], %s1662
          %s1664 = sand.u32 %s253, 1
          %s1665 = smul.addr %s1664, 16
          %s1666 = scalar_lea.vmem [#allocation13], %s1665
          %1667 = dma.done %s1663, 256
        $region88: #{tpu_custom_call.1} parent=75 // pred_fallthru
          _
      $region76: #{tpu_custom_call.1} parent=5 // pred_fallthru
        _
    $region6: #{tpu_custom_call.1} parent=1 // loop_footer
      %s30 = sadd.s32 1, %s26
    $region7: #{tpu_custom_call.1} parent=1 // loop_footer_branch
      %25 = sbr.rel target = $region3
    $region8: #{tpu_custom_call.1} parent=1 // loop_exit
      _
    %1668 = vsyncpa [#allocation3], 1
    %s1669 = scalar_lea.sflag [#allocation3], 1
    %1670 = vsyncpa %s1669, 1
    %1671 = vsyncpa [#allocation6], 1
    %1672 = vsyncpa [#allocation9], 1
    %1673 = vsyncpa [#allocation4], 1
    %s1674 = scalar_lea.sflag [#allocation4], 1
    %1675 = vsyncpa %s1674, 1
    %1676 = vsyncpa [#allocation12], 1
    %s1677 = scalar_lea.sflag [#allocation12], 1
    %1678 = vsyncpa %s1677, 1

// kernel: tpu_custom_call.1
$region0: #{tpu_custom_call.1}
  #allocation0 [shape = 'u32[]', space=smem, size = 0x4, offset = 0x4, fixed_abs, tag = 'smem constant byte address 0x4 - core index']
  #allocation1 [shape = 'u32[144,128]{1,0:T(1,128)}', space=vmem, size = 0x12000, scoped, tag = 'internal scratch']
  %s0 = inlined_call_operand.hbm [shape: f32[2,16,512], index: 0, kind: input, shape index: {}]
  %s1 = inlined_call_operand.hbm [shape: f32[16,128], index: 1, kind: input, shape index: {}]
  %s2 = inlined_call_operand.hbm [shape: f32[16,128], index: 2, kind: input, shape index: {}]
  %s3 = inlined_call_operand.vmem [shape: f32[1,512], index: 3, kind: input, shape index: {}]
  %s4 = inlined_call_operand.hbm [shape: bf16[512,512], index: 4, kind: input, shape index: {}]
  %s5 = inlined_call_operand.vmem [shape: f32[1,512], index: 5, kind: input, shape index: {}]
  %s6 = inlined_call_operand.hbm [shape: bf16[2,16,512], index: 6, kind: output, shape index: {0}]
  %s7 = inlined_call_operand.hbm [shape: bf16[2,16,256], index: 7, kind: output, shape index: {1}]
  %s8 = inlined_call_operand.hbm [shape: bf16[2,16,256], index: 8, kind: output, shape index: {2}]
  %9 = xla_tuple %s6, %s7, %s8
  %s10 = sld [smem:[#allocation0]]
  $region89: #{tpu_custom_call.1} parent=0
    _
  %s12 = ssub.s32 1, %s10
  %s13 = scalar_select 0, %s12, %s10
  $region1: #{tpu_custom_call.1} parent=0
    #allocation2 [shape = 'u8[65536]{0}', space=vmem, size = 0x10000, scoped, tag = 'input window, operand 0']
    #allocation3 [shape = 's32[2]{0}', space=sflag, size = 0x8, scoped, tag = 'scoped memory for tpu_custom_call.1']
    #allocation4 [shape = 's32[2]{0}', space=sflag, size = 0x8, scoped, tag = 'scoped memory for tpu_custom_call.1']
    #allocation5 [shape = 'u8[8192]{0}', space=vmem, size = 0x2000, scoped, tag = 'input window, operand 1, single buffered']
    #allocation6 [shape = 's32[1]{0}', space=sflag, size = 0x4, scoped, tag = 'scoped memory for tpu_custom_call.1']
    #allocation7 [shape = 'u8[8192]{0}', space=vmem, size = 0x2000, scoped, tag = 'input window, operand 2, single buffered']
    #allocation8 [shape = 'u8[524288]{0}', space=vmem, size = 0x80000, scoped, tag = 'input window, operand 4, single buffered']
    #allocation9 [shape = 's32[1]{0}', space=sflag, size = 0x4, scoped, tag = 'scoped memory for tpu_custom_call.1']
    #allocation10 [shape = 'u8[32768]{0}', space=vmem, size = 0x8000, scoped, tag = 'output window, operand 0']
    #allocation11 [shape = 'u8[16384]{0}', space=vmem, size = 0x4000, scoped, tag = 'output window, operand 1']
    #allocation12 [shape = 's32[2]{0}', space=sflag, size = 0x8, scoped, tag = 'scoped memory for tpu_custom_call.1']
    #allocation13 [shape = 'u8[16384]{0}', space=vmem, size = 0x4000, scoped, tag = 'output window, operand 2']
    %14 = vsyncpa [#allocation3], 0
    %s15 = scalar_lea.sflag [#allocation3], 1
    %16 = vsyncpa %s15, 0
    %17 = vsyncpa [#allocation6], 0
    %18 = vsyncpa [#allocation9], 0
    %19 = vsyncpa [#allocation4], 0
    %s20 = scalar_lea.sflag [#allocation4], 1
    %21 = vsyncpa %s20, 0
    %22 = vsyncpa [#allocation12], 0
    %s23 = scalar_lea.sflag [#allocation12], 1
    %24 = vsyncpa %s23, 0
    loop: start=0, step=1, limit=4
    $region2: #{tpu_custom_call.1} parent=1 // loop_pre_header
      _
    $region3: #{tpu_custom_call.1} parent=1 // loop_header
      %s26 = sphi 0, %s30
      %p27 = scmp.ge.s32.totalorder %s26, 4
      %s33 = sphi 0, %s45
      %s34 = sphi 0, %s41
      %s35 = sphi 0, %s33
      %s36 = sphi 0, %s34
      %s37 = sphi 0, %s35
      %s38 = sphi 0, %s36
      %s50 = sphi 0, %s52
      %s53 = sphi 0, %s50
      %s54 = sphi 0, %s53
      %s70 = sphi 0, %s54
      %s76 = sphi 0, %s78
      %s79 = sphi 0, %s76
      %s80 = sphi 0, %s79
      %s96 = sphi 0, %s80
      %s102 = sphi 0, %s104
      %s105 = sphi 0, %s102
      %s106 = sphi 0, %s105
      %s122 = sphi 0, %s106
      %s126 = sphi 0, %s126
      %s128 = sphi 0, %s126
      %s129 = sphi 0, %s128
      %s143 = sphi 0, %s129
      %s147 = sphi 0, %s147
      %s149 = sphi 0, %s147
      %s150 = sphi 0, %s149
      %s164 = sphi 0, %s150
      %s168 = sphi 0, %s168
      %s170 = sphi 0, %s168
      %s171 = sphi 0, %s170
      %s185 = sphi 0, %s171
      %s193 = sphi 0, %s195
      %s196 = sphi 0, %s193
      %s197 = sphi 0, %s196
      %s213 = sphi 0, %s197
      %s221 = sphi 0, %s223
      %s224 = sphi 0, %s221
      %s225 = sphi 0, %s224
      %s241 = sphi 0, %s225
      %s249 = sphi 0, %s251
      %s252 = sphi 0, %s249
      %s253 = sphi 0, %s252
      %s269 = sphi 0, %s253
    $region4: #{tpu_custom_call.1} parent=1 // loop_header_branch
      %29 = sbr.rel (%p27) target = $region8
    $region5: #{tpu_custom_call.1} parent=1 // loop_body
      %s31 = ssub.s32 %s26, 1
      %s32 = ssub.s32 %s26, 2
      %s39 = sadd.s32 1, %s34
      %p40 = scmp.ge.s32.totalorder %s39, 1
      %s41 = scalar_select %p40, 0, %s39
      %s42 = sadd.s32 1, %s33
      %s43 = scalar_select %p40, %s42, %s33
      %p44 = scmp.ge.s32.totalorder %s43, 2
      %s45 = scalar_select %p44, 0, %s43
      %s46 = ssub.s32 %s33, %s45
      %s47 = ssub.s32 %s34, %s41
      %s48 = sor.u32 %s46, %s47
      %p49 = scmp.eq.s32.totalorder %s48, 0
      %s51 = sadd.s32 %s50, 1
      %s52 = scalar_select %p49, %s50, %s51
      %p55 = pneg %p49
      %p56 = scmp.eq.s32.totalorder %s26, 1
      %p57 = por %p55, %p56
      %p58 = scmp.ne.s32.totalorder %s50, %s53
      %p59 = scmp.eq.s32.totalorder %s26, 0
      %p60 = por %p58, %p59
      %p61 = scmp.ne.s32.totalorder %s50, %s53
      %p62 = scmp.eq.s32.totalorder %s31, 1
      %p63 = por %p61, %p62
      %p64 = scmp.ne.s32.totalorder %s53, %s54
      %p65 = scmp.eq.s32.totalorder %s31, 0
      %p66 = por %p64, %p65
      %p67 = scmp.ne.s32.totalorder %s53, %s54
      %p68 = scmp.eq.s32.totalorder %s32, 1
      %p69 = por %p67, %p68
      %p71 = scmp.ne.s32.totalorder %s54, %s70
      %p72 = scmp.eq.s32.totalorder %s32, 0
      %p73 = por %p71, %p72
      %s74 = ssub.s32 %s34, %s41
      %p75 = scmp.eq.s32.totalorder %s74, 0
      %s77 = sadd.s32 %s76, 1
      %s78 = scalar_select %p75, %s76, %s77
      %p81 = pneg %p75
      %p82 = scmp.eq.s32.totalorder %s26, 1
      %p83 = por %p81, %p82
      %p84 = scmp.ne.s32.totalorder %s76, %s79
      %p85 = scmp.eq.s32.totalorder %s26, 0
      %p86 = por %p84, %p85
      %p87 = scmp.ne.s32.totalorder %s76, %s79
      %p88 = scmp.eq.s32.totalorder %s31, 1
      %p89 = por %p87, %p88
      %p90 = scmp.ne.s32.totalorder %s79, %s80
      %p91 = scmp.eq.s32.totalorder %s31, 0
      %p92 = por %p90, %p91
      %p93 = scmp.ne.s32.totalorder %s79, %s80
      %p94 = scmp.eq.s32.totalorder %s32, 1
      %p95 = por %p93, %p94
      %p97 = scmp.ne.s32.totalorder %s80, %s96
      %p98 = scmp.eq.s32.totalorder %s32, 0
      %p99 = por %p97, %p98
      %s100 = ssub.s32 %s34, %s41
      %p101 = scmp.eq.s32.totalorder %s100, 0
      %s103 = sadd.s32 %s102, 1
      %s104 = scalar_select %p101, %s102, %s103
      %p107 = pneg %p101
      %p108 = scmp.eq.s32.totalorder %s26, 1
      %p109 = por %p107, %p108
      %p110 = scmp.ne.s32.totalorder %s102, %s105
      %p111 = scmp.eq.s32.totalorder %s26, 0
      %p112 = por %p110, %p111
      %p113 = scmp.ne.s32.totalorder %s102, %s105
      %p114 = scmp.eq.s32.totalorder %s31, 1
      %p115 = por %p113, %p114
      %p116 = scmp.ne.s32.totalorder %s105, %s106
      %p117 = scmp.eq.s32.totalorder %s31, 0
      %p118 = por %p116, %p117
      %p119 = scmp.ne.s32.totalorder %s105, %s106
      %p120 = scmp.eq.s32.totalorder %s32, 1
      %p121 = por %p119, %p120
      %p123 = scmp.ne.s32.totalorder %s106, %s122
      %p124 = scmp.eq.s32.totalorder %s32, 0
      %p125 = por %p123, %p124
      %s127 = sadd.s32 %s126, 1
      %p130 = scmp.eq.s32.totalorder %s26, 1
      %p131 = scmp.ne.s32.totalorder %s126, %s128
      %p132 = scmp.eq.s32.totalorder %s26, 0
      %p133 = por %p131, %p132
      %p134 = scmp.ne.s32.totalorder %s126, %s128
      %p135 = scmp.eq.s32.totalorder %s31, 1
      %p136 = por %p134, %p135
      %p137 = scmp.ne.s32.totalorder %s128, %s129
      %p138 = scmp.eq.s32.totalorder %s31, 0
      %p139 = por %p137, %p138
      %p140 = scmp.ne.s32.totalorder %s128, %s129
      %p141 = scmp.eq.s32.totalorder %s32, 1
      %p142 = por %p140, %p141
      %p144 = scmp.ne.s32.totalorder %s129, %s143
      %p145 = scmp.eq.s32.totalorder %s32, 0
      %p146 = por %p144, %p145
      %s148 = sadd.s32 %s147, 1
      %p151 = scmp.eq.s32.totalorder %s26, 1
      %p152 = scmp.ne.s32.totalorder %s147, %s149
      %p153 = scmp.eq.s32.totalorder %s26, 0
      %p154 = por %p152, %p153
      %p155 = scmp.ne.s32.totalorder %s147, %s149
      %p156 = scmp.eq.s32.totalorder %s31, 1
      %p157 = por %p155, %p156
      %p158 = scmp.ne.s32.totalorder %s149, %s150
      %p159 = scmp.eq.s32.totalorder %s31, 0
      %p160 = por %p158, %p159
      %p161 = scmp.ne.s32.totalorder %s149, %s150
      %p162 = scmp.eq.s32.totalorder %s32, 1
      %p163 = por %p161, %p162
      %p165 = scmp.ne.s32.totalorder %s150, %s164
      %p166 = scmp.eq.s32.totalorder %s32, 0
      %p167 = por %p165, %p166
      %s169 = sadd.s32 %s168, 1
      %p172 = scmp.eq.s32.totalorder %s26, 1
      %p173 = scmp.ne.s32.totalorder %s168, %s170
      %p174 = scmp.eq.s32.totalorder %s26, 0
      %p175 = por %p173, %p174
      %p176 = scmp.ne.s32.totalorder %s168, %s170
      %p177 = scmp.eq.s32.totalorder %s31, 1
      %p178 = por %p176, %p177
      %p179 = scmp.ne.s32.totalorder %s170, %s171
      %p180 = scmp.eq.s32.totalorder %s31, 0
      %p181 = por %p179, %p180
      %p182 = scmp.ne.s32.totalorder %s170, %s171
      %p183 = scmp.eq.s32.totalorder %s32, 1
      %p184 = por %p182, %p183
      %p186 = scmp.ne.s32.totalorder %s171, %s185
      %p187 = scmp.eq.s32.totalorder %s32, 0
      %p188 = por %p186, %p187
      %s189 = ssub.s32 %s33, %s45
      %s190 = ssub.s32 %s34, %s41
      %s191 = sor.u32 %s189, %s190
      %p192 = scmp.eq.s32.totalorder %s191, 0
      %s194 = sadd.s32 %s193, 1
      %s195 = scalar_select %p192, %s193, %s194
      %p198 = pneg %p192
      %p199 = scmp.eq.s32.totalorder %s26, 1
      %p200 = por %p198, %p199
      %p201 = scmp.ne.s32.totalorder %s193, %s196
      %p202 = scmp.eq.s32.totalorder %s26, 0
      %p203 = por %p201, %p202
      %p204 = scmp.ne.s32.totalorder %s193, %s196
      %p205 = scmp.eq.s32.totalorder %s31, 1
      %p206 = por %p204, %p205
      %p207 = scmp.ne.s32.totalorder %s196, %s197
      %p208 = scmp.eq.s32.totalorder %s31, 0
      %p209 = por %p207, %p208
      %p210 = scmp.ne.s32.totalorder %s196, %s197
      %p211 = scmp.eq.s32.totalorder %s32, 1
      %p212 = por %p210, %p211
      %p214 = scmp.ne.s32.totalorder %s197, %s213
      %p215 = scmp.eq.s32.totalorder %s32, 0
      %p216 = por %p214, %p215
      %s217 = ssub.s32 %s33, %s45
      %s218 = ssub.s32 %s34, %s41
      %s219 = sor.u32 %s217, %s218
      %p220 = scmp.eq.s32.totalorder %s219, 0
      %s222 = sadd.s32 %s221, 1
      %s223 = scalar_select %p220, %s221, %s222
      %p226 = pneg %p220
      %p227 = scmp.eq.s32.totalorder %s26, 1
      %p228 = por %p226, %p227
      %p229 = scmp.ne.s32.totalorder %s221, %s224
      %p230 = scmp.eq.s32.totalorder %s26, 0
      %p231 = por %p229, %p230
      %p232 = scmp.ne.s32.totalorder %s221, %s224
      %p233 = scmp.eq.s32.totalorder %s31, 1
      %p234 = por %p232, %p233
      %p235 = scmp.ne.s32.totalorder %s224, %s225
      %p236 = scmp.eq.s32.totalorder %s31, 0
      %p237 = por %p235, %p236
      %p238 = scmp.ne.s32.totalorder %s224, %s225
      %p239 = scmp.eq.s32.totalorder %s32, 1
      %p240 = por %p238, %p239
      %p242 = scmp.ne.s32.totalorder %s225, %s241
      %p243 = scmp.eq.s32.totalorder %s32, 0
      %p244 = por %p242, %p243
      %s245 = ssub.s32 %s33, %s45
      %s246 = ssub.s32 %s34, %s41
      %s247 = sor.u32 %s245, %s246
      %p248 = scmp.eq.s32.totalorder %s247, 0
      %s250 = sadd.s32 %s249, 1
      %s251 = scalar_select %p248, %s249, %s250
      %p254 = pneg %p248
      %p255 = scmp.eq.s32.totalorder %s26, 1
      %p256 = por %p254, %p255
      %p257 = scmp.ne.s32.totalorder %s249, %s252
      %p258 = scmp.eq.s32.totalorder %s26, 0
      %p259 = por %p257, %p258
      %p260 = scmp.ne.s32.totalorder %s249, %s252
      %p261 = scmp.eq.s32.totalorder %s31, 1
      %p262 = por %p260, %p261
      %p263 = scmp.ne.s32.totalorder %s252, %s253
      %p264 = scmp.eq.s32.totalorder %s31, 0
      %p265 = por %p263, %p264
      %p266 = scmp.ne.s32.totalorder %s252, %s253
      %p267 = scmp.eq.s32.totalorder %s32, 1
      %p268 = por %p266, %p267
      %p270 = scmp.ne.s32.totalorder %s253, %s269
      %p271 = scmp.eq.s32.totalorder %s32, 0
      %p272 = por %p270, %p271
      %p273 = scmp.le.s32.totalorder 1, %s26
      %p274 = scmp.lt.s32.totalorder %s26, 3
      %p275 = pnand %p273, %p274
      %p276 = pneg %p275
      // Predicated region
      $region9: #{tpu_custom_call.1} parent=5 // pred_check
        _
      $region10: #{tpu_custom_call.1} parent=5 // pred_check_branch
        %278 = sbr.rel (%p275) target = $region12
      $region11: #{tpu_custom_call.1} parent=5 // pred_region
        %s279 = ssub.s32 %s26, 1
        // Predicated region
        $region13: #{tpu_custom_call.1} parent=11 // pred_check
          %p280 = pneg %p92
        $region14: #{tpu_custom_call.1} parent=11 // pred_check_branch
          %282 = sbr.rel (%p280) target = $region16
        $region15: #{tpu_custom_call.1} parent=11 // pred_region
          %s283 = smul.u32 2, %s36
          %s285 = ssub.s32 256, 256
          %286 = vsyncadd [#allocation6], %s285
          %s287 = smul.addr %s283, 128
          %s288 = scalar_lea.hbm %s1, %s287
          %s289 = sshll.u32 [#allocation5], 4
          %s290 = int_to_ptr.vmem [resolvable:$true] %s289
          %295 = dma.hbm_to_vmem [thread:$0]  %s288, 256, %s290, [#allocation6], 128, 128, 8
        $region16: #{tpu_custom_call.1} parent=11 // pred_fallthru
          _
        // Predicated region
        $region17: #{tpu_custom_call.1} parent=11 // pred_check
          %p296 = pneg %p118
        $region18: #{tpu_custom_call.1} parent=11 // pred_check_branch
          %298 = sbr.rel (%p296) target = $region20
        $region19: #{tpu_custom_call.1} parent=11 // pred_region
          %s299 = smul.u32 2, %s36
          %s301 = ssub.s32 256, 256
          %302 = vsyncadd [#allocation6], %s301
          %s303 = smul.addr %s299, 128
          %s304 = scalar_lea.hbm %s2, %s303
          %s305 = sshll.u32 [#allocation7], 4
          %s306 = int_to_ptr.vmem [resolvable:$true] %s305
          %311 = dma.hbm_to_vmem [thread:$0]  %s304, 256, %s306, [#allocation6], 128, 128, 8
        $region20: #{tpu_custom_call.1} parent=11 // pred_fallthru
          _
        // Predicated region
        $region21: #{tpu_custom_call.1} parent=11 // pred_check
          %p312 = pneg %p139
        $region22: #{tpu_custom_call.1} parent=11 // pred_check_branch
          %314 = sbr.rel (%p312) target = $region24
        $region23: #{tpu_custom_call.1} parent=11 // pred_region
          _
        $region24: #{tpu_custom_call.1} parent=11 // pred_fallthru
          _
        // Predicated region
        $region25: #{tpu_custom_call.1} parent=11 // pred_check
          %p315 = pneg %p160
        $region26: #{tpu_custom_call.1} parent=11 // pred_check_branch
          %317 = sbr.rel (%p315) target = $region28
        $region27: #{tpu_custom_call.1} parent=11 // pred_region
          %s319 = ssub.s32 16384, 16384
          %320 = vsyncadd [#allocation9], %s319
          %s321 = sshll.u32 [#allocation8], 4
          %s322 = int_to_ptr.vmem [resolvable:$true] %s321
          %327 = dma.hbm_to_vmem [thread:$0]  %s4, 16384, %s322, [#allocation9], 256, 256, 16
        $region28: #{tpu_custom_call.1} parent=11 // pred_fallthru
          _
        // Predicated region
        $region29: #{tpu_custom_call.1} parent=11 // pred_check
          %p328 = pneg %p181
        $region30: #{tpu_custom_call.1} parent=11 // pred_check_branch
          %330 = sbr.rel (%p328) target = $region32
        $region31: #{tpu_custom_call.1} parent=11 // pred_region
          _
        $region32: #{tpu_custom_call.1} parent=11 // pred_fallthru
          _
      $region12: #{tpu_custom_call.1} parent=5 // pred_fallthru
        _
      %p331 = scmp.lt.s32.totalorder %s26, 2
      // Predicated region
      $region33: #{tpu_custom_call.1} parent=5 // pred_check
        %p332 = pneg %p331
      $region34: #{tpu_custom_call.1} parent=5 // pred_check_branch
        %334 = sbr.rel (%p332) target = $region36
      $region35: #{tpu_custom_call.1} parent=5 // pred_region
        // Predicated region
        $region37: #{tpu_custom_call.1} parent=35 // pred_check
          %p335 = pneg %p60
        $region38: #{tpu_custom_call.1} parent=35 // pred_check_branch
          %337 = sbr.rel (%p335) target = $region40
        $region39: #{tpu_custom_call.1} parent=35 // pred_region
          %s338 = sand.u32 %s50, 1
          %s339 = scalar_lea.sflag [#allocation3], %s338
          %s340 = sand.u32 %s50, 1
          %s341 = smul.addr %s340, 64
          %s342 = scalar_lea.vmem [#allocation2], %s341
          %s343 = smul.u32 2, %s34
          %s345 = ssub.s32 1024, 1024
          %346 = vsyncadd %s339, %s345
          %s347 = smul.addr %s343, 4
          %s348 = smul.addr %s33, 8
          %s349 = sadd.s32 %s347, %s348
          %s350 = smul.addr %s349, 128
          %s351 = scalar_lea.hbm %s0, %s350
          %s352 = sshll.u32 %s342, 4
          %s353 = int_to_ptr.vmem [resolvable:$true] %s352
          %358 = dma.hbm_to_vmem [thread:$0]  %s351, 1024, %s353, %s339, 512, 512, 32
        $region40: #{tpu_custom_call.1} parent=35 // pred_fallthru
          _
      $region36: #{tpu_custom_call.1} parent=5 // pred_fallthru
        _
      %p359 = scmp.le.s32.totalorder 1, %s26
      %p360 = scmp.lt.s32.totalorder %s26, 3
      %p361 = pnand %p359, %p360
      %p362 = pneg %p361
      // Predicated region
      $region41: #{tpu_custom_call.1} parent=5 // pred_check
        _
      $region42: #{tpu_custom_call.1} parent=5 // pred_check_branch
        %364 = sbr.rel (%p361) target = $region44
      $region43: #{tpu_custom_call.1} parent=5 // pred_region
        %s365 = ssub.s32 %s26, 1
        %s366 = sand.u32 %s53, 1
        %s367 = scalar_lea.sflag [#allocation3], %s366
        %s368 = sand.u32 %s53, 1
        %s369 = smul.addr %s368, 64
        %s370 = scalar_lea.vmem [#allocation2], %s369
        // Predicated region
        $region45: #{tpu_custom_call.1} parent=43 // pred_check
          %p371 = pneg %p66
        $region46: #{tpu_custom_call.1} parent=43 // pred_check_branch
          %373 = sbr.rel (%p371) target = $region48
        $region47: #{tpu_custom_call.1} parent=43 // pred_region
          %374 = dma.done %s367, 1024
        $region48: #{tpu_custom_call.1} parent=43 // pred_fallthru
          _
        // Predicated region
        $region49: #{tpu_custom_call.1} parent=43 // pred_check
          %p375 = pneg %p92
        $region50: #{tpu_custom_call.1} parent=43 // pred_check_branch
          %377 = sbr.rel (%p375) target = $region52
        $region51: #{tpu_custom_call.1} parent=43 // pred_region
          %378 = dma.done [#allocation6], 256
        $region52: #{tpu_custom_call.1} parent=43 // pred_fallthru
          _
        // Predicated region
        $region53: #{tpu_custom_call.1} parent=43 // pred_check
          %p379 = pneg %p118
        $region54: #{tpu_custom_call.1} parent=43 // pred_check_branch
          %381 = sbr.rel (%p379) target = $region56
        $region55: #{tpu_custom_call.1} parent=43 // pred_region
          %382 = dma.done [#allocation6], 256
        $region56: #{tpu_custom_call.1} parent=43 // pred_fallthru
          _
        // Predicated region
        $region57: #{tpu_custom_call.1} parent=43 // pred_check
          %p383 = pneg %p160
        $region58: #{tpu_custom_call.1} parent=43 // pred_check_branch
          %385 = sbr.rel (%p383) target = $region60
        $region59: #{tpu_custom_call.1} parent=43 // pred_region
          %386 = dma.done [#allocation9], 16384
        $region60: #{tpu_custom_call.1} parent=43 // pred_fallthru
          _
        %s387 = sand.u32 %s53, 1
        %s388 = scalar_lea.sflag [#allocation3], %s387
        %s389 = sand.u32 %s53, 1
        %s390 = smul.addr %s389, 64
        %s391 = scalar_lea.vmem [#allocation2], %s390
        %p392 = pneg %p66
        %p393 = pneg %p63
        %p394 = pneg %p92
        %p395 = pneg %p89
        %p396 = pneg %p118
        %p397 = pneg %p115
        %p398 = pneg %p139
        %p399 = pneg %p136
        %p400 = pneg %p160
        %p401 = pneg %p157
        %p402 = pneg %p181
        %p403 = pneg %p178
        %p404 = pneg %p209
        %p405 = pneg %p206
        %s406 = sand.u32 %s196, 1
        %s407 = scalar_lea.sflag [#allocation4], %s406
        %s408 = sand.u32 %s196, 1
        %s409 = smul.addr %s408, 32
        %s410 = scalar_lea.vmem [#allocation10], %s409
        %p411 = pneg %p237
        %p412 = pneg %p234
        %s413 = sand.u32 %s31, 1
        %s414 = scalar_lea.sflag [#allocation12], %s413
        %s415 = sand.u32 %s224, 1
        %s416 = smul.addr %s415, 16
        %s417 = scalar_lea.vmem [#allocation11], %s416
        %p418 = pneg %p265
        %p419 = pneg %p262
        %s420 = sand.u32 %s31, 1
        %s421 = scalar_lea.sflag [#allocation12], %s420
        %s422 = sand.u32 %s252, 1
        %s423 = smul.addr %s422, 16
        %s424 = scalar_lea.vmem [#allocation13], %s423
        %s425 = smul.u32 2, %s36
        %s426 = smul.u32 2, %s36
        %s427 = smul.u32 2, %s36
        %s428 = smul.u32 2, %s36
        %s429 = smul.u32 2, %s36
        %s430 = smul.u32 2, %s36
        %v431 = vld [vmem:[%s370] sm:$0xff]
        %v432 = vld [vmem:[%s370 + $0x8] sm:$0xff]
        %v433 = vld [vmem:[%s370 + $0x10] sm:$0xff]
        %v434 = vld [vmem:[%s370 + $0x18] sm:$0xff]
        %v435 = vld [vmem:[%s370 + $0x20] sm:$0xff]
        %v436 = vld [vmem:[%s370 + $0x28] sm:$0xff]
        %v437 = vld [vmem:[%s370 + $0x30] sm:$0xff]
        %v438 = vld [vmem:[%s370 + $0x38] sm:$0xff]
        %v439 = vmul.f32 %v431, %v431
        %v440 = vmul.f32 %v432, %v432
        %v441 = vmul.f32 %v433, %v433
        %v442 = vmul.f32 %v434, %v434
        %v443 = vmul.f32 %v435, %v435
        %v444 = vmul.f32 %v436, %v436
        %v445 = vmul.f32 %v437, %v437
        %v446 = vmul.f32 %v438, %v438
        %v447 = vadd.f32 %v439, %v440
        %v448 = vadd.f32 %v447, %v441
        %v449 = vadd.f32 %v448, %v442
        %450 = vadd.xlane.f32.xlu0 %v449
        %v451 = vpop.xlane.xlu0 %450
        %v452 = vadd.f32 %v443, %v444
        %v453 = vadd.f32 %v452, %v445
        %v454 = vadd.f32 %v453, %v446
        %455 = vadd.xlane.f32.xlu0 %v454
        %v456 = vpop.xlane.xlu0 %455
        %v457 = vrcp.pop 512.0
        %v458 = vmul.f32 %v451, %v457
        %v459 = vmul.f32 %v456, %v457
        %v460 = vadd.f32 %v458, 1e-06
        %v461 = vadd.f32 %v459, 1e-06
        %v462 = vrsqrt.pop %v460
        %v463 = vrsqrt.pop %v461
        %v464 = vmul.f32 %v431, %v462
        %v465 = vmul.f32 %v432, %v462
        %v466 = vmul.f32 %v433, %v462
        %v467 = vmul.f32 %v434, %v462
        %v468 = vmul.f32 %v435, %v463
        %v469 = vmul.f32 %v436, %v463
        %v470 = vmul.f32 %v437, %v463
        %v471 = vmul.f32 %v438, %v463
        %v472 = vld [vmem:[%s3] sm:$0xf]
        %v474 = vlaneseq
        %v475 = vshrl.u32 %v474, 7
        %v476 = vsub.s32 0, %v475
        %v477 = vrot.slane %v472, %v476
        %v478 = vlaneseq
        %v479 = vshrl.u32 %v478, 7
        %v480 = vsub.s32 1, %v479
        %v481 = vrot.slane %v472, %v480
        %v482 = vlaneseq
        %v483 = vshrl.u32 %v482, 7
        %v484 = vsub.s32 2, %v483
        %v485 = vrot.slane %v472, %v484
        %v486 = vlaneseq
        %v487 = vshrl.u32 %v486, 7
        %v488 = vsub.s32 3, %v487
        %v489 = vrot.slane %v472, %v488
        %v494 = vmul.f32 %v464, %v477
        %v495 = vmul.f32 %v465, %v481
        %v496 = vmul.f32 %v466, %v485
        %v497 = vmul.f32 %v467, %v489
        %v498 = vmul.f32 %v468, %v477
        %v499 = vmul.f32 %v469, %v481
        %v500 = vmul.f32 %v470, %v485
        %v501 = vmul.f32 %v471, %v489
        %v502 = vpack.c.bf16 %v498, %v494
        %v503 = vpack.c.bf16 %v499, %v495
        %v504 = vpack.c.bf16 %v500, %v496
        %v505 = vpack.c.bf16 %v501, %v497
        %v510 = vunpack.c.l.b16 %v502
        %v511 = vunpack.c.l.b16 %v503
        %v512 = vunpack.c.l.b16 %v504
        %v513 = vunpack.c.l.b16 %v505
        %v514 = vunpack.c.h.b16 %v502
        %v515 = vunpack.c.h.b16 %v503
        %v516 = vunpack.c.h.b16 %v504
        %v517 = vunpack.c.h.b16 %v505
        %v518 = vpack.c.b16 %v511, %v510
        %v519 = vpack.c.b16 %v513, %v512
        %v520 = vpack.c.b16 %v515, %v514
        %v521 = vpack.c.b16 %v517, %v516
        %526 = vst [vmem:[%s410] sm:$0xff] %v518
        %527 = vst [vmem:[%s410 + $0x8] sm:$0xff] %v519
        %528 = vst [vmem:[%s410 + $0x10] sm:$0xff] %v520
        %529 = vst [vmem:[%s410 + $0x18] sm:$0xff] %v521
        %v530 = vld [vmem:[#allocation8] sm:$0xff]
        %v531 = vld [vmem:[#allocation8 + $0x8] sm:$0xff]
        %v532 = vld [vmem:[#allocation8 + $0x10] sm:$0xff]
        %v533 = vld [vmem:[#allocation8 + $0x18] sm:$0xff]
        %v534 = vld [vmem:[#allocation8 + $0x20] sm:$0xff]
        %v535 = vld [vmem:[#allocation8 + $0x28] sm:$0xff]
        %v536 = vld [vmem:[#allocation8 + $0x30] sm:$0xff]
        %v537 = vld [vmem:[#allocation8 + $0x38] sm:$0xff]
        %v538 = vld [vmem:[#allocation8 + $0x40] sm:$0xff]
        %v539 = vld [vmem:[#allocation8 + $0x48] sm:$0xff]
        %v540 = vld [vmem:[#allocation8 + $0x50] sm:$0xff]
        %v541 = vld [vmem:[#allocation8 + $0x58] sm:$0xff]
        %v542 = vld [vmem:[#allocation8 + $0x60] sm:$0xff]
        %v543 = vld [vmem:[#allocation8 + $0x68] sm:$0xff]
        %v544 = vld [vmem:[#allocation8 + $0x70] sm:$0xff]
        %v545 = vld [vmem:[#allocation8 + $0x78] sm:$0xff]
        %v546 = vld [vmem:[#allocation8 + $0x80] sm:$0xff]
        %v547 = vld [vmem:[#allocation8 + $0x88] sm:$0xff]
        %v548 = vld [vmem:[#allocation8 + $0x90] sm:$0xff]
        %v549 = vld [vmem:[#allocation8 + $0x98] sm:$0xff]
        %v550 = vld [vmem:[#allocation8 + $0xa0] sm:$0xff]
        %v551 = vld [vmem:[#allocation8 + $0xa8] sm:$0xff]
        %v552 = vld [vmem:[#allocation8 + $0xb0] sm:$0xff]
        %v553 = vld [vmem:[#allocation8 + $0xb8] sm:$0xff]
        %v554 = vld [vmem:[#allocation8 + $0xc0] sm:$0xff]
        %v555 = vld [vmem:[#allocation8 + $0xc8] sm:$0xff]
        %v556 = vld [vmem:[#allocation8 + $0xd0] sm:$0xff]
        %v557 = vld [vmem:[#allocation8 + $0xd8] sm:$0xff]
        %v558 = vld [vmem:[#allocation8 + $0xe0] sm:$0xff]
        %v559 = vld [vmem:[#allocation8 + $0xe8] sm:$0xff]
        %v560 = vld [vmem:[#allocation8 + $0xf0] sm:$0xff]
        %v561 = vld [vmem:[#allocation8 + $0xf8] sm:$0xff]
        %v562 = vld [vmem:[#allocation8 + $0x100] sm:$0xff]
        %v563 = vld [vmem:[#allocation8 + $0x108] sm:$0xff]
        %v564 = vld [vmem:[#allocation8 + $0x110] sm:$0xff]
        %v565 = vld [vmem:[#allocation8 + $0x118] sm:$0xff]
        %v566 = vld [vmem:[#allocation8 + $0x120] sm:$0xff]
        %v567 = vld [vmem:[#allocation8 + $0x128] sm:$0xff]
        %v568 = vld [vmem:[#allocation8 + $0x130] sm:$0xff]
        %v569 = vld [vmem:[#allocation8 + $0x138] sm:$0xff]
        %v570 = vld [vmem:[#allocation8 + $0x140] sm:$0xff]
        %v571 = vld [vmem:[#allocation8 + $0x148] sm:$0xff]
        %v572 = vld [vmem:[#allocation8 + $0x150] sm:$0xff]
        %v573 = vld [vmem:[#allocation8 + $0x158] sm:$0xff]
        %v574 = vld [vmem:[#allocation8 + $0x160] sm:$0xff]
        %v575 = vld [vmem:[#allocation8 + $0x168] sm:$0xff]
        %v576 = vld [vmem:[#allocation8 + $0x170] sm:$0xff]
        %v577 = vld [vmem:[#allocation8 + $0x178] sm:$0xff]
        %v578 = vld [vmem:[#allocation8 + $0x180] sm:$0xff]
        %v579 = vld [vmem:[#allocation8 + $0x188] sm:$0xff]
        %v580 = vld [vmem:[#allocation8 + $0x190] sm:$0xff]
        %v581 = vld [vmem:[#allocation8 + $0x198] sm:$0xff]
        %v582 = vld [vmem:[#allocation8 + $0x1a0] sm:$0xff]
        %v583 = vld [vmem:[#allocation8 + $0x1a8] sm:$0xff]
        %v584 = vld [vmem:[#allocation8 + $0x1b0] sm:$0xff]
        %v585 = vld [vmem:[#allocation8 + $0x1b8] sm:$0xff]
        %v586 = vld [vmem:[#allocation8 + $0x1c0] sm:$0xff]
        %v587 = vld [vmem:[#allocation8 + $0x1c8] sm:$0xff]
        %v588 = vld [vmem:[#allocation8 + $0x1d0] sm:$0xff]
        %v589 = vld [vmem:[#allocation8 + $0x1d8] sm:$0xff]
        %v590 = vld [vmem:[#allocation8 + $0x1e0] sm:$0xff]
        %v591 = vld [vmem:[#allocation8 + $0x1e8] sm:$0xff]
        %v592 = vld [vmem:[#allocation8 + $0x1f0] sm:$0xff]
        %v593 = vld [vmem:[#allocation8 + $0x1f8] sm:$0xff]
        %v594 = vld [vmem:[#allocation8 + $0x200] sm:$0xff]
        %v595 = vld [vmem:[#allocation8 + $0x208] sm:$0xff]
        %v596 = vld [vmem:[#allocation8 + $0x210] sm:$0xff]
        %v597 = vld [vmem:[#allocation8 + $0x218] sm:$0xff]
        %v598 = vld [vmem:[#allocation8 + $0x220] sm:$0xff]
        %v599 = vld [vmem:[#allocation8 + $0x228] sm:$0xff]
        %v600 = vld [vmem:[#allocation8 + $0x230] sm:$0xff]
        %v601 = vld [vmem:[#allocation8 + $0x238] sm:$0xff]
        %v602 = vld [vmem:[#allocation8 + $0x240] sm:$0xff]
        %v603 = vld [vmem:[#allocation8 + $0x248] sm:$0xff]
        %v604 = vld [vmem:[#allocation8 + $0x250] sm:$0xff]
        %v605 = vld [vmem:[#allocation8 + $0x258] sm:$0xff]
        %v606 = vld [vmem:[#allocation8 + $0x260] sm:$0xff]
        %v607 = vld [vmem:[#allocation8 + $0x268] sm:$0xff]
        %v608 = vld [vmem:[#allocation8 + $0x270] sm:$0xff]
        %v609 = vld [vmem:[#allocation8 + $0x278] sm:$0xff]
        %v610 = vld [vmem:[#allocation8 + $0x280] sm:$0xff]
        %v611 = vld [vmem:[#allocation8 + $0x288] sm:$0xff]
        %v612 = vld [vmem:[#allocation8 + $0x290] sm:$0xff]
        %v613 = vld [vmem:[#allocation8 + $0x298] sm:$0xff]
        %v614 = vld [vmem:[#allocation8 + $0x2a0] sm:$0xff]
        %v615 = vld [vmem:[#allocation8 + $0x2a8] sm:$0xff]
        %v616 = vld [vmem:[#allocation8 + $0x2b0] sm:$0xff]
        %v617 = vld [vmem:[#allocation8 + $0x2b8] sm:$0xff]
        %v618 = vld [vmem:[#allocation8 + $0x2c0] sm:$0xff]
        %v619 = vld [vmem:[#allocation8 + $0x2c8] sm:$0xff]
        %v620 = vld [vmem:[#allocation8 + $0x2d0] sm:$0xff]
        %v621 = vld [vmem:[#allocation8 + $0x2d8] sm:$0xff]
        %v622 = vld [vmem:[#allocation8 + $0x2e0] sm:$0xff]
        %v623 = vld [vmem:[#allocation8 + $0x2e8] sm:$0xff]
        %v624 = vld [vmem:[#allocation8 + $0x2f0] sm:$0xff]
        %v625 = vld [vmem:[#allocation8 + $0x2f8] sm:$0xff]
        %v626 = vld [vmem:[#allocation8 + $0x300] sm:$0xff]
        %v627 = vld [vmem:[#allocation8 + $0x308] sm:$0xff]
        %v628 = vld [vmem:[#allocation8 + $0x310] sm:$0xff]
        %v629 = vld [vmem:[#allocation8 + $0x318] sm:$0xff]
        %v630 = vld [vmem:[#allocation8 + $0x320] sm:$0xff]
        %v631 = vld [vmem:[#allocation8 + $0x328] sm:$0xff]
        %v632 = vld [vmem:[#allocation8 + $0x330] sm:$0xff]
        %v633 = vld [vmem:[#allocation8 + $0x338] sm:$0xff]
        %v634 = vld [vmem:[#allocation8 + $0x340] sm:$0xff]
        %v635 = vld [vmem:[#allocation8 + $0x348] sm:$0xff]
        %v636 = vld [vmem:[#allocation8 + $0x350] sm:$0xff]
        %v637 = vld [vmem:[#allocation8 + $0x358] sm:$0xff]
        %v638 = vld [vmem:[#allocation8 + $0x360] sm:$0xff]
        %v639 = vld [vmem:[#allocation8 + $0x368] sm:$0xff]
        %v640 = vld [vmem:[#allocation8 + $0x370] sm:$0xff]
        %v641 = vld [vmem:[#allocation8 + $0x378] sm:$0xff]
        %v642 = vld [vmem:[#allocation8 + $0x380] sm:$0xff]
        %v643 = vld [vmem:[#allocation8 + $0x388] sm:$0xff]
        %v644 = vld [vmem:[#allocation8 + $0x390] sm:$0xff]
        %v645 = vld [vmem:[#allocation8 + $0x398] sm:$0xff]
        %v646 = vld [vmem:[#allocation8 + $0x3a0] sm:$0xff]
        %v647 = vld [vmem:[#allocation8 + $0x3a8] sm:$0xff]
        %v648 = vld [vmem:[#allocation8 + $0x3b0] sm:$0xff]
        %v649 = vld [vmem:[#allocation8 + $0x3b8] sm:$0xff]
        %v650 = vld [vmem:[#allocation8 + $0x3c0] sm:$0xff]
        %v651 = vld [vmem:[#allocation8 + $0x3c8] sm:$0xff]
        %v652 = vld [vmem:[#allocation8 + $0x3d0] sm:$0xff]
        %v653 = vld [vmem:[#allocation8 + $0x3d8] sm:$0xff]
        %v654 = vld [vmem:[#allocation8 + $0x3e0] sm:$0xff]
        %v655 = vld [vmem:[#allocation8 + $0x3e8] sm:$0xff]
        %v656 = vld [vmem:[#allocation8 + $0x3f0] sm:$0xff]
        %v657 = vld [vmem:[#allocation8 + $0x3f8] sm:$0xff]
        %v658 = vld [vmem:[%s5] sm:$0xf]
        %v660 = vlaneseq
        %v661 = vshrl.u32 %v660, 7
        %v662 = vsub.s32 0, %v661
        %v663 = vrot.slane %v658, %v662
        %v664 = vlaneseq
        %v665 = vshrl.u32 %v664, 7
        %v666 = vsub.s32 1, %v665
        %v667 = vrot.slane %v658, %v666
        %v668 = vlaneseq
        %v669 = vshrl.u32 %v668, 7
        %v670 = vsub.s32 2, %v669
        %v671 = vrot.slane %v658, %v670
        %v672 = vlaneseq
        %v673 = vshrl.u32 %v672, 7
        %v674 = vsub.s32 3, %v673
        %v675 = vrot.slane %v658, %v674
        %v808 = vunpack.c.l.b16 %v530
        %v809 = vunpack.c.h.b16 %v530
        %v810 = vunpack.c.l.b16 %v531
        %v811 = vunpack.c.h.b16 %v531
        %v812 = vunpack.c.l.b16 %v532
        %v813 = vunpack.c.h.b16 %v532
        %v814 = vunpack.c.l.b16 %v533
        %v815 = vunpack.c.h.b16 %v533
        %v816 = vunpack.c.l.b16 %v534
        %v817 = vunpack.c.h.b16 %v534
        %v818 = vunpack.c.l.b16 %v535
        %v819 = vunpack.c.h.b16 %v535
        %v820 = vunpack.c.l.b16 %v536
        %v821 = vunpack.c.h.b16 %v536
        %v822 = vunpack.c.l.b16 %v537
        %v823 = vunpack.c.h.b16 %v537
        %v824 = vunpack.c.l.b16 %v538
        %v825 = vunpack.c.h.b16 %v538
        %v826 = vunpack.c.l.b16 %v539
        %v827 = vunpack.c.h.b16 %v539
        %v828 = vunpack.c.l.b16 %v540
        %v829 = vunpack.c.h.b16 %v540
        %v830 = vunpack.c.l.b16 %v541
        %v831 = vunpack.c.h.b16 %v541
        %v832 = vunpack.c.l.b16 %v542
        %v833 = vunpack.c.h.b16 %v542
        %v834 = vunpack.c.l.b16 %v543
        %v835 = vunpack.c.h.b16 %v543
        %v836 = vunpack.c.l.b16 %v544
        %v837 = vunpack.c.h.b16 %v544
        %v838 = vunpack.c.l.b16 %v545
        %v839 = vunpack.c.h.b16 %v545
        %v840 = vunpack.c.l.b16 %v546
        %v841 = vunpack.c.h.b16 %v546
        %v842 = vunpack.c.l.b16 %v547
        %v843 = vunpack.c.h.b16 %v547
        %v844 = vunpack.c.l.b16 %v548
        %v845 = vunpack.c.h.b16 %v548
        %v846 = vunpack.c.l.b16 %v549
        %v847 = vunpack.c.h.b16 %v549
        %v848 = vunpack.c.l.b16 %v550
        %v849 = vunpack.c.h.b16 %v550
        %v850 = vunpack.c.l.b16 %v551
        %v851 = vunpack.c.h.b16 %v551
        %v852 = vunpack.c.l.b16 %v552
        %v853 = vunpack.c.h.b16 %v552
        %v854 = vunpack.c.l.b16 %v553
        %v855 = vunpack.c.h.b16 %v553
        %v856 = vunpack.c.l.b16 %v554
        %v857 = vunpack.c.h.b16 %v554
        %v858 = vunpack.c.l.b16 %v555
        %v859 = vunpack.c.h.b16 %v555
        %v860 = vunpack.c.l.b16 %v556
        %v861 = vunpack.c.h.b16 %v556
        %v862 = vunpack.c.l.b16 %v557
        %v863 = vunpack.c.h.b16 %v557
        %v864 = vunpack.c.l.b16 %v558
        %v865 = vunpack.c.h.b16 %v558
        %v866 = vunpack.c.l.b16 %v559
        %v867 = vunpack.c.h.b16 %v559
        %v868 = vunpack.c.l.b16 %v560
        %v869 = vunpack.c.h.b16 %v560
        %v870 = vunpack.c.l.b16 %v561
        %v871 = vunpack.c.h.b16 %v561
        %v872 = vunpack.c.l.b16 %v562
        %v873 = vunpack.c.h.b16 %v562
        %v874 = vunpack.c.l.b16 %v563
        %v875 = vunpack.c.h.b16 %v563
        %v876 = vunpack.c.l.b16 %v564
        %v877 = vunpack.c.h.b16 %v564
        %v878 = vunpack.c.l.b16 %v565
        %v879 = vunpack.c.h.b16 %v565
        %v880 = vunpack.c.l.b16 %v566
        %v881 = vunpack.c.h.b16 %v566
        %v882 = vunpack.c.l.b16 %v567
        %v883 = vunpack.c.h.b16 %v567
        %v884 = vunpack.c.l.b16 %v568
        %v885 = vunpack.c.h.b16 %v568
        %v886 = vunpack.c.l.b16 %v569
        %v887 = vunpack.c.h.b16 %v569
        %v888 = vunpack.c.l.b16 %v570
        %v889 = vunpack.c.h.b16 %v570
        %v890 = vunpack.c.l.b16 %v571
        %v891 = vunpack.c.h.b16 %v571
        %v892 = vunpack.c.l.b16 %v572
        %v893 = vunpack.c.h.b16 %v572
        %v894 = vunpack.c.l.b16 %v573
        %v895 = vunpack.c.h.b16 %v573
        %v896 = vunpack.c.l.b16 %v574
        %v897 = vunpack.c.h.b16 %v574
        %v898 = vunpack.c.l.b16 %v575
        %v899 = vunpack.c.h.b16 %v575
        %v900 = vunpack.c.l.b16 %v576
        %v901 = vunpack.c.h.b16 %v576
        %v902 = vunpack.c.l.b16 %v577
        %v903 = vunpack.c.h.b16 %v577
        %v904 = vunpack.c.l.b16 %v578
        %v905 = vunpack.c.h.b16 %v578
        %v906 = vunpack.c.l.b16 %v579
        %v907 = vunpack.c.h.b16 %v579
        %v908 = vunpack.c.l.b16 %v580
        %v909 = vunpack.c.h.b16 %v580
        %v910 = vunpack.c.l.b16 %v581
        %v911 = vunpack.c.h.b16 %v581
        %v912 = vunpack.c.l.b16 %v582
        %v913 = vunpack.c.h.b16 %v582
        %v914 = vunpack.c.l.b16 %v583
        %v915 = vunpack.c.h.b16 %v583
        %v916 = vunpack.c.l.b16 %v584
        %v917 = vunpack.c.h.b16 %v584
        %v918 = vunpack.c.l.b16 %v585
        %v919 = vunpack.c.h.b16 %v585
        %v920 = vunpack.c.l.b16 %v586
        %v921 = vunpack.c.h.b16 %v586
        %v922 = vunpack.c.l.b16 %v587
        %v923 = vunpack.c.h.b16 %v587
        %v924 = vunpack.c.l.b16 %v588
        %v925 = vunpack.c.h.b16 %v588
        %v926 = vunpack.c.l.b16 %v589
        %v927 = vunpack.c.h.b16 %v589
        %v928 = vunpack.c.l.b16 %v590
        %v929 = vunpack.c.h.b16 %v590
        %v930 = vunpack.c.l.b16 %v591
        %v931 = vunpack.c.h.b16 %v591
        %v932 = vunpack.c.l.b16 %v592
        %v933 = vunpack.c.h.b16 %v592
        %v934 = vunpack.c.l.b16 %v593
        %v935 = vunpack.c.h.b16 %v593
        %v936 = vunpack.c.l.b16 %v594
        %v937 = vunpack.c.h.b16 %v594
        %v938 = vunpack.c.l.b16 %v595
        %v939 = vunpack.c.h.b16 %v595
        %v940 = vunpack.c.l.b16 %v596
        %v941 = vunpack.c.h.b16 %v596
        %v942 = vunpack.c.l.b16 %v597
        %v943 = vunpack.c.h.b16 %v597
        %v944 = vunpack.c.l.b16 %v598
        %v945 = vunpack.c.h.b16 %v598
        %v946 = vunpack.c.l.b16 %v599
        %v947 = vunpack.c.h.b16 %v599
        %v948 = vunpack.c.l.b16 %v600
        %v949 = vunpack.c.h.b16 %v600
        %v950 = vunpack.c.l.b16 %v601
        %v951 = vunpack.c.h.b16 %v601
        %v952 = vunpack.c.l.b16 %v602
        %v953 = vunpack.c.h.b16 %v602
        %v954 = vunpack.c.l.b16 %v603
        %v955 = vunpack.c.h.b16 %v603
        %v956 = vunpack.c.l.b16 %v604
        %v957 = vunpack.c.h.b16 %v604
        %v958 = vunpack.c.l.b16 %v605
        %v959 = vunpack.c.h.b16 %v605
        %v960 = vunpack.c.l.b16 %v606
        %v961 = vunpack.c.h.b16 %v606
        %v962 = vunpack.c.l.b16 %v607
        %v963 = vunpack.c.h.b16 %v607
        %v964 = vunpack.c.l.b16 %v608
        %v965 = vunpack.c.h.b16 %v608
        %v966 = vunpack.c.l.b16 %v609
        %v967 = vunpack.c.h.b16 %v609
        %v968 = vunpack.c.l.b16 %v610
        %v969 = vunpack.c.h.b16 %v610
        %v970 = vunpack.c.l.b16 %v611
        %v971 = vunpack.c.h.b16 %v611
        %v972 = vunpack.c.l.b16 %v612
        %v973 = vunpack.c.h.b16 %v612
        %v974 = vunpack.c.l.b16 %v613
        %v975 = vunpack.c.h.b16 %v613
        %v976 = vunpack.c.l.b16 %v614
        %v977 = vunpack.c.h.b16 %v614
        %v978 = vunpack.c.l.b16 %v615
        %v979 = vunpack.c.h.b16 %v615
        %v980 = vunpack.c.l.b16 %v616
        %v981 = vunpack.c.h.b16 %v616
        %v982 = vunpack.c.l.b16 %v617
        %v983 = vunpack.c.h.b16 %v617
        %v984 = vunpack.c.l.b16 %v618
        %v985 = vunpack.c.h.b16 %v618
        %v986 = vunpack.c.l.b16 %v619
        %v987 = vunpack.c.h.b16 %v619
        %v988 = vunpack.c.l.b16 %v620
        %v989 = vunpack.c.h.b16 %v620
        %v990 = vunpack.c.l.b16 %v621
        %v991 = vunpack.c.h.b16 %v621
        %v992 = vunpack.c.l.b16 %v622
        %v993 = vunpack.c.h.b16 %v622
        %v994 = vunpack.c.l.b16 %v623
        %v995 = vunpack.c.h.b16 %v623
        %v996 = vunpack.c.l.b16 %v624
        %v997 = vunpack.c.h.b16 %v624
        %v998 = vunpack.c.l.b16 %v625
        %v999 = vunpack.c.h.b16 %v625
        %v1000 = vunpack.c.l.b16 %v626
        %v1001 = vunpack.c.h.b16 %v626
        %v1002 = vunpack.c.l.b16 %v627
        %v1003 = vunpack.c.h.b16 %v627
        %v1004 = vunpack.c.l.b16 %v628
        %v1005 = vunpack.c.h.b16 %v628
        %v1006 = vunpack.c.l.b16 %v629
        %v1007 = vunpack.c.h.b16 %v629
        %v1008 = vunpack.c.l.b16 %v630
        %v1009 = vunpack.c.h.b16 %v630
        %v1010 = vunpack.c.l.b16 %v631
        %v1011 = vunpack.c.h.b16 %v631
        %v1012 = vunpack.c.l.b16 %v632
        %v1013 = vunpack.c.h.b16 %v632
        %v1014 = vunpack.c.l.b16 %v633
        %v1015 = vunpack.c.h.b16 %v633
        %v1016 = vunpack.c.l.b16 %v634
        %v1017 = vunpack.c.h.b16 %v634
        %v1018 = vunpack.c.l.b16 %v635
        %v1019 = vunpack.c.h.b16 %v635
        %v1020 = vunpack.c.l.b16 %v636
        %v1021 = vunpack.c.h.b16 %v636
        %v1022 = vunpack.c.l.b16 %v637
        %v1023 = vunpack.c.h.b16 %v637
        %v1024 = vunpack.c.l.b16 %v638
        %v1025 = vunpack.c.h.b16 %v638
        %v1026 = vunpack.c.l.b16 %v639
        %v1027 = vunpack.c.h.b16 %v639
        %v1028 = vunpack.c.l.b16 %v640
        %v1029 = vunpack.c.h.b16 %v640
        %v1030 = vunpack.c.l.b16 %v641
        %v1031 = vunpack.c.h.b16 %v641
        %v1032 = vunpack.c.l.b16 %v642
        %v1033 = vunpack.c.h.b16 %v642
        %v1034 = vunpack.c.l.b16 %v643
        %v1035 = vunpack.c.h.b16 %v643
        %v1036 = vunpack.c.l.b16 %v644
        %v1037 = vunpack.c.h.b16 %v644
        %v1038 = vunpack.c.l.b16 %v645
        %v1039 = vunpack.c.h.b16 %v645
        %v1040 = vunpack.c.l.b16 %v646
        %v1041 = vunpack.c.h.b16 %v646
        %v1042 = vunpack.c.l.b16 %v647
        %v1043 = vunpack.c.h.b16 %v647
        %v1044 = vunpack.c.l.b16 %v648
        %v1045 = vunpack.c.h.b16 %v648
        %v1046 = vunpack.c.l.b16 %v649
        %v1047 = vunpack.c.h.b16 %v649
        %v1048 = vunpack.c.l.b16 %v650
        %v1049 = vunpack.c.h.b16 %v650
        %v1050 = vunpack.c.l.b16 %v651
        %v1051 = vunpack.c.h.b16 %v651
        %v1052 = vunpack.c.l.b16 %v652
        %v1053 = vunpack.c.h.b16 %v652
        %v1054 = vunpack.c.l.b16 %v653
        %v1055 = vunpack.c.h.b16 %v653
        %v1056 = vunpack.c.l.b16 %v654
        %v1057 = vunpack.c.h.b16 %v654
        %v1058 = vunpack.c.l.b16 %v655
        %v1059 = vunpack.c.h.b16 %v655
        %v1060 = vunpack.c.l.b16 %v656
        %v1061 = vunpack.c.h.b16 %v656
        %v1062 = vunpack.c.l.b16 %v657
        %v1063 = vunpack.c.h.b16 %v657
        %v1064 = vpack.c.b16 %v812, %v808
        %v1065 = vpack.c.b16 %v813, %v809
        %v1066 = vpack.c.b16 %v814, %v810
        %v1067 = vpack.c.b16 %v815, %v811
        %v1068 = vpack.c.b16 %v820, %v816
        %v1069 = vpack.c.b16 %v821, %v817
        %v1070 = vpack.c.b16 %v822, %v818
        %v1071 = vpack.c.b16 %v823, %v819
        %v1072 = vpack.c.b16 %v828, %v824
        %v1073 = vpack.c.b16 %v829, %v825
        %v1074 = vpack.c.b16 %v830, %v826
        %v1075 = vpack.c.b16 %v831, %v827
        %v1076 = vpack.c.b16 %v836, %v832
        %v1077 = vpack.c.b16 %v837, %v833
        %v1078 = vpack.c.b16 %v838, %v834
        %v1079 = vpack.c.b16 %v839, %v835
        %v1080 = vpack.c.b16 %v844, %v840
        %v1081 = vpack.c.b16 %v845, %v841
        %v1082 = vpack.c.b16 %v846, %v842
        %v1083 = vpack.c.b16 %v847, %v843
        %v1084 = vpack.c.b16 %v852, %v848
        %v1085 = vpack.c.b16 %v853, %v849
        %v1086 = vpack.c.b16 %v854, %v850
        %v1087 = vpack.c.b16 %v855, %v851
        %v1088 = vpack.c.b16 %v860, %v856
        %v1089 = vpack.c.b16 %v861, %v857
        %v1090 = vpack.c.b16 %v862, %v858
        %v1091 = vpack.c.b16 %v863, %v859
        %v1092 = vpack.c.b16 %v868, %v864
        %v1093 = vpack.c.b16 %v869, %v865
        %v1094 = vpack.c.b16 %v870, %v866
        %v1095 = vpack.c.b16 %v871, %v867
        %v1096 = vpack.c.b16 %v876, %v872
        %v1097 = vpack.c.b16 %v877, %v873
        %v1098 = vpack.c.b16 %v878, %v874
        %v1099 = vpack.c.b16 %v879, %v875
        %v1100 = vpack.c.b16 %v884, %v880
        %v1101 = vpack.c.b16 %v885, %v881
        %v1102 = vpack.c.b16 %v886, %v882
        %v1103 = vpack.c.b16 %v887, %v883
        %v1104 = vpack.c.b16 %v892, %v888
        %v1105 = vpack.c.b16 %v893, %v889
        %v1106 = vpack.c.b16 %v894, %v890
        %v1107 = vpack.c.b16 %v895, %v891
        %v1108 = vpack.c.b16 %v900, %v896
        %v1109 = vpack.c.b16 %v901, %v897
        %v1110 = vpack.c.b16 %v902, %v898
        %v1111 = vpack.c.b16 %v903, %v899
        %v1112 = vpack.c.b16 %v908, %v904
        %v1113 = vpack.c.b16 %v909, %v905
        %v1114 = vpack.c.b16 %v910, %v906
        %v1115 = vpack.c.b16 %v911, %v907
        %v1116 = vpack.c.b16 %v916, %v912
        %v1117 = vpack.c.b16 %v917, %v913
        %v1118 = vpack.c.b16 %v918, %v914
        %v1119 = vpack.c.b16 %v919, %v915
        %v1120 = vpack.c.b16 %v924, %v920
        %v1121 = vpack.c.b16 %v925, %v921
        %v1122 = vpack.c.b16 %v926, %v922
        %v1123 = vpack.c.b16 %v927, %v923
        %v1124 = vpack.c.b16 %v932, %v928
        %v1125 = vpack.c.b16 %v933, %v929
        %v1126 = vpack.c.b16 %v934, %v930
        %v1127 = vpack.c.b16 %v935, %v931
        %v1128 = vpack.c.b16 %v940, %v936
        %v1129 = vpack.c.b16 %v941, %v937
        %v1130 = vpack.c.b16 %v942, %v938
        %v1131 = vpack.c.b16 %v943, %v939
        %v1132 = vpack.c.b16 %v948, %v944
        %v1133 = vpack.c.b16 %v949, %v945
        %v1134 = vpack.c.b16 %v950, %v946
        %v1135 = vpack.c.b16 %v951, %v947
        %v1136 = vpack.c.b16 %v956, %v952
        %v1137 = vpack.c.b16 %v957, %v953
        %v1138 = vpack.c.b16 %v958, %v954
        %v1139 = vpack.c.b16 %v959, %v955
        %v1140 = vpack.c.b16 %v964, %v960
        %v1141 = vpack.c.b16 %v965, %v961
        %v1142 = vpack.c.b16 %v966, %v962
        %v1143 = vpack.c.b16 %v967, %v963
        %v1144 = vpack.c.b16 %v972, %v968
        %v1145 = vpack.c.b16 %v973, %v969
        %v1146 = vpack.c.b16 %v974, %v970
        %v1147 = vpack.c.b16 %v975, %v971
        %v1148 = vpack.c.b16 %v980, %v976
        %v1149 = vpack.c.b16 %v981, %v977
        %v1150 = vpack.c.b16 %v982, %v978
        %v1151 = vpack.c.b16 %v983, %v979
        %v1152 = vpack.c.b16 %v988, %v984
        %v1153 = vpack.c.b16 %v989, %v985
        %v1154 = vpack.c.b16 %v990, %v986
        %v1155 = vpack.c.b16 %v991, %v987
        %v1156 = vpack.c.b16 %v996, %v992
        %v1157 = vpack.c.b16 %v997, %v993
        %v1158 = vpack.c.b16 %v998, %v994
        %v1159 = vpack.c.b16 %v999, %v995
        %v1160 = vpack.c.b16 %v1004, %v1000
        %v1161 = vpack.c.b16 %v1005, %v1001
        %v1162 = vpack.c.b16 %v1006, %v1002
        %v1163 = vpack.c.b16 %v1007, %v1003
        %v1164 = vpack.c.b16 %v1012, %v1008
        %v1165 = vpack.c.b16 %v1013, %v1009
        %v1166 = vpack.c.b16 %v1014, %v1010
        %v1167 = vpack.c.b16 %v1015, %v1011
        %v1168 = vpack.c.b16 %v1020, %v1016
        %v1169 = vpack.c.b16 %v1021, %v1017
        %v1170 = vpack.c.b16 %v1022, %v1018
        %v1171 = vpack.c.b16 %v1023, %v1019
        %v1172 = vpack.c.b16 %v1028, %v1024
        %v1173 = vpack.c.b16 %v1029, %v1025
        %v1174 = vpack.c.b16 %v1030, %v1026
        %v1175 = vpack.c.b16 %v1031, %v1027
        %v1176 = vpack.c.b16 %v1036, %v1032
        %v1177 = vpack.c.b16 %v1037, %v1033
        %v1178 = vpack.c.b16 %v1038, %v1034
        %v1179 = vpack.c.b16 %v1039, %v1035
        %v1180 = vpack.c.b16 %v1044, %v1040
        %v1181 = vpack.c.b16 %v1045, %v1041
        %v1182 = vpack.c.b16 %v1046, %v1042
        %v1183 = vpack.c.b16 %v1047, %v1043
        %v1184 = vpack.c.b16 %v1052, %v1048
        %v1185 = vpack.c.b16 %v1053, %v1049
        %v1186 = vpack.c.b16 %v1054, %v1050
        %v1187 = vpack.c.b16 %v1055, %v1051
        %v1188 = vpack.c.b16 %v1060, %v1056
        %v1189 = vpack.c.b16 %v1061, %v1057
        %v1190 = vpack.c.b16 %v1062, %v1058
        %v1191 = vpack.c.b16 %v1063, %v1059
        %1320 = vmatprep.subr.bf16.mxu0 %v1065
        %1321 = vmatpush1.bf16.msra.mxu0 %v1064
        %1322 = vmatprep.subr.bf16.mxu0 %v1069
        %1323 = vmatpush1.bf16.msra.mxu0 %v1068
        %1324 = vmatprep.subr.bf16.mxu0 %v1073
        %1325 = vmatpush1.bf16.msra.mxu0 %v1072
        %1326 = vmatprep.subr.bf16.mxu0 %v1077
        %1327 = vmatpush1.bf16.msra.mxu0 %v1076
        %1328 = vmatprep.subr.bf16.mxu0 %v1081
        %1329 = vmatpush1.bf16.msra.mxu0 %v1080
        %1330 = vmatprep.subr.bf16.mxu0 %v1085
        %1331 = vmatpush1.bf16.msra.mxu0 %v1084
        %1332 = vmatprep.subr.bf16.mxu0 %v1089
        %1333 = vmatpush1.bf16.msra.mxu0 %v1088
        %1334 = vmatprep.subr.bf16.mxu0 %v1093
        %1335 = vmatpush1.bf16.msra.mxu0 %v1092
        %1336 = vmatprep.subr.bf16.mxu0 %v1097
        %1337 = vmatpush1.bf16.msra.mxu0 %v1096
        %1338 = vmatprep.subr.bf16.mxu0 %v1101
        %1339 = vmatpush1.bf16.msra.mxu0 %v1100
        %1340 = vmatprep.subr.bf16.mxu0 %v1105
        %1341 = vmatpush1.bf16.msra.mxu0 %v1104
        %1342 = vmatprep.subr.bf16.mxu0 %v1109
        %1343 = vmatpush1.bf16.msra.mxu0 %v1108
        %1344 = vmatprep.subr.bf16.mxu0 %v1113
        %1345 = vmatpush1.bf16.msra.mxu0 %v1112
        %1346 = vmatprep.subr.bf16.mxu0 %v1117
        %1347 = vmatpush1.bf16.msra.mxu0 %v1116
        %1348 = vmatprep.subr.bf16.mxu0 %v1121
        %1349 = vmatpush1.bf16.msra.mxu0 %v1120
        %1350 = vmatprep.subr.bf16.mxu0 %v1125
        %1351 = vmatpush1.bf16.msra.mxu0 %v1124
        %1352 = vmatprep.mubr.bf16.mxu0 %v503
        %1353 = vmatmul.mubr.bf16.gmra.mrb[0].mxu0 %v502
        %v1354 = vpop.f32.mrb[0].mxu0
        %v1355 = vadd.f32 %v663, %v1354
        %v1356 = vpop.f32.mrb[0].mxu0
        %v1357 = vadd.f32 %v667, %v1356
        %v1358 = vpop.f32.mrb[0].mxu0
        %v1359 = vadd.f32 %v663, %v1358
        %v1360 = vpop.f32.mrb[0].mxu0
        %v1361 = vadd.f32 %v667, %v1360
        %1362 = vdwg.mxu0
        %1363 = vmatprep.subr.bf16.mxu0 %v1129
        %1364 = vmatpush1.bf16.msra.mxu0 %v1128
        %1365 = vmatprep.subr.bf16.mxu0 %v1133
        %1366 = vmatpush1.bf16.msra.mxu0 %v1132
        %1367 = vmatprep.subr.bf16.mxu0 %v1137
        %1368 = vmatpush1.bf16.msra.mxu0 %v1136
        %1369 = vmatprep.subr.bf16.mxu0 %v1141
        %1370 = vmatpush1.bf16.msra.mxu0 %v1140
        %1371 = vmatprep.subr.bf16.mxu0 %v1145
        %1372 = vmatpush1.bf16.msra.mxu0 %v1144
        %1373 = vmatprep.subr.bf16.mxu0 %v1149
        %1374 = vmatpush1.bf16.msra.mxu0 %v1148
        %1375 = vmatprep.subr.bf16.mxu0 %v1153
        %1376 = vmatpush1.bf16.msra.mxu0 %v1152
        %1377 = vmatprep.subr.bf16.mxu0 %v1157
        %1378 = vmatpush1.bf16.msra.mxu0 %v1156
        %1379 = vmatprep.subr.bf16.mxu0 %v1161
        %1380 = vmatpush1.bf16.msra.mxu0 %v1160
        %1381 = vmatprep.subr.bf16.mxu0 %v1165
        %1382 = vmatpush1.bf16.msra.mxu0 %v1164
        %1383 = vmatprep.subr.bf16.mxu0 %v1169
        %1384 = vmatpush1.bf16.msra.mxu0 %v1168
        %1385 = vmatprep.subr.bf16.mxu0 %v1173
        %1386 = vmatpush1.bf16.msra.mxu0 %v1172
        %1387 = vmatprep.subr.bf16.mxu0 %v1177
        %1388 = vmatpush1.bf16.msra.mxu0 %v1176
        %1389 = vmatprep.subr.bf16.mxu0 %v1181
        %1390 = vmatpush1.bf16.msra.mxu0 %v1180
        %1391 = vmatprep.subr.bf16.mxu0 %v1185
        %1392 = vmatpush1.bf16.msra.mxu0 %v1184
        %1393 = vmatprep.subr.bf16.mxu0 %v1189
        %1394 = vmatpush1.bf16.msra.mxu0 %v1188
        %1395 = vmatprep.mubr.bf16.mxu0 %v505
        %1396 = vmatmul.mubr.bf16.gmra.mrb[0].mxu0 %v504
        %v1397 = vpop.f32.mrb[0].mxu0
        %v1398 = vadd.f32 %v1355, %v1397
        %v1399 = vpop.f32.mrb[0].mxu0
        %v1400 = vadd.f32 %v1357, %v1399
        %v1401 = vpop.f32.mrb[0].mxu0
        %v1402 = vadd.f32 %v1359, %v1401
        %v1403 = vpop.f32.mrb[0].mxu0
        %v1404 = vadd.f32 %v1361, %v1403
        %1405 = vdwg.mxu0
        %1406 = vmatprep.subr.bf16.mxu0 %v1067
        %1407 = vmatpush1.bf16.msra.mxu0 %v1066
        %1408 = vmatprep.subr.bf16.mxu0 %v1071
        %1409 = vmatpush1.bf16.msra.mxu0 %v1070
        %1410 = vmatprep.subr.bf16.mxu0 %v1075
        %1411 = vmatpush1.bf16.msra.mxu0 %v1074
        %1412 = vmatprep.subr.bf16.mxu0 %v1079
        %1413 = vmatpush1.bf16.msra.mxu0 %v1078
        %1414 = vmatprep.subr.bf16.mxu0 %v1083
        %1415 = vmatpush1.bf16.msra.mxu0 %v1082
        %1416 = vmatprep.subr.bf16.mxu0 %v1087
        %1417 = vmatpush1.bf16.msra.mxu0 %v1086
        %1418 = vmatprep.subr.bf16.mxu0 %v1091
        %1419 = vmatpush1.bf16.msra.mxu0 %v1090
        %1420 = vmatprep.subr.bf16.mxu0 %v1095
        %1421 = vmatpush1.bf16.msra.mxu0 %v1094
        %1422 = vmatprep.subr.bf16.mxu0 %v1099
        %1423 = vmatpush1.bf16.msra.mxu0 %v1098
        %1424 = vmatprep.subr.bf16.mxu0 %v1103
        %1425 = vmatpush1.bf16.msra.mxu0 %v1102
        %1426 = vmatprep.subr.bf16.mxu0 %v1107
        %1427 = vmatpush1.bf16.msra.mxu0 %v1106
        %1428 = vmatprep.subr.bf16.mxu0 %v1111
        %1429 = vmatpush1.bf16.msra.mxu0 %v1110
        %1430 = vmatprep.subr.bf16.mxu0 %v1115
        %1431 = vmatpush1.bf16.msra.mxu0 %v1114
        %1432 = vmatprep.subr.bf16.mxu0 %v1119
        %1433 = vmatpush1.bf16.msra.mxu0 %v1118
        %1434 = vmatprep.subr.bf16.mxu0 %v1123
        %1435 = vmatpush1.bf16.msra.mxu0 %v1122
        %1436 = vmatprep.subr.bf16.mxu0 %v1127
        %1437 = vmatpush1.bf16.msra.mxu0 %v1126
        %1438 = vmatprep.mubr.bf16.mxu0 %v503
        %1439 = vmatmul.mubr.bf16.gmra.mrb[0].mxu0 %v502
        %v1440 = vpop.f32.mrb[0].mxu0
        %v1441 = vadd.f32 %v671, %v1440
        %v1442 = vpop.f32.mrb[0].mxu0
        %v1443 = vadd.f32 %v675, %v1442
        %v1444 = vpop.f32.mrb[0].mxu0
        %v1445 = vadd.f32 %v671, %v1444
        %v1446 = vpop.f32.mrb[0].mxu0
        %v1447 = vadd.f32 %v675, %v1446
        %1448 = vdwg.mxu0
        %1449 = vmatprep.subr.bf16.mxu0 %v1131
        %1450 = vmatpush1.bf16.msra.mxu0 %v1130
        %1451 = vmatprep.subr.bf16.mxu0 %v1135
        %1452 = vmatpush1.bf16.msra.mxu0 %v1134
        %1453 = vmatprep.subr.bf16.mxu0 %v1139
        %1454 = vmatpush1.bf16.msra.mxu0 %v1138
        %1455 = vmatprep.subr.bf16.mxu0 %v1143
        %1456 = vmatpush1.bf16.msra.mxu0 %v1142
        %1457 = vmatprep.subr.bf16.mxu0 %v1147
        %1458 = vmatpush1.bf16.msra.mxu0 %v1146
        %1459 = vmatprep.subr.bf16.mxu0 %v1151
        %1460 = vmatpush1.bf16.msra.mxu0 %v1150
        %1461 = vmatprep.subr.bf16.mxu0 %v1155
        %1462 = vmatpush1.bf16.msra.mxu0 %v1154
        %1463 = vmatprep.subr.bf16.mxu0 %v1159
        %1464 = vmatpush1.bf16.msra.mxu0 %v1158
        %1465 = vmatprep.subr.bf16.mxu0 %v1163
        %1466 = vmatpush1.bf16.msra.mxu0 %v1162
        %1467 = vmatprep.subr.bf16.mxu0 %v1167
        %1468 = vmatpush1.bf16.msra.mxu0 %v1166
        %1469 = vmatprep.subr.bf16.mxu0 %v1171
        %1470 = vmatpush1.bf16.msra.mxu0 %v1170
        %1471 = vmatprep.subr.bf16.mxu0 %v1175
        %1472 = vmatpush1.bf16.msra.mxu0 %v1174
        %1473 = vmatprep.subr.bf16.mxu0 %v1179
        %1474 = vmatpush1.bf16.msra.mxu0 %v1178
        %1475 = vmatprep.subr.bf16.mxu0 %v1183
        %1476 = vmatpush1.bf16.msra.mxu0 %v1182
        %1477 = vmatprep.subr.bf16.mxu0 %v1187
        %1478 = vmatpush1.bf16.msra.mxu0 %v1186
        %1479 = vmatprep.subr.bf16.mxu0 %v1191
        %1480 = vmatpush1.bf16.msra.mxu0 %v1190
        %1481 = vmatprep.mubr.bf16.mxu0 %v505
        %1482 = vmatmul.mubr.bf16.gmra.mrb[0].mxu0 %v504
        %v1483 = vpop.f32.mrb[0].mxu0
        %v1484 = vadd.f32 %v1441, %v1483
        %v1485 = vpop.f32.mrb[0].mxu0
        %v1486 = vadd.f32 %v1443, %v1485
        %v1487 = vpop.f32.mrb[0].mxu0
        %v1488 = vadd.f32 %v1445, %v1487
        %v1489 = vpop.f32.mrb[0].mxu0
        %v1490 = vadd.f32 %v1447, %v1489
        %1491 = vdwg.mxu0
        %v1492 = vld [vmem:[#allocation5] sm:$0xff]
        %v1493 = vld [vmem:[#allocation5 + $0x8] sm:$0xff]
        %v1494 = vld [vmem:[#allocation7] sm:$0xff]
        %v1495 = vld [vmem:[#allocation7 + $0x8] sm:$0xff]
        %v1496 = vlaneseq
        %v1497 = vand.u32 %v1496, 127
        %vm1498 = vcmp.lt.s32.totalorder %v1497, 64
        %v1499 = vsel %vm1498, -1.0, 1.0
        %v1500 = vmul.f32 %v1398, %v1492
        %v1501 = vmul.f32 %v1402, %v1493
        %1502 = vrot.lane.b32.xlu0 %v1398, 64
        %v1503 = vpop.permute.xlu0 %1502
        %1504 = vrot.lane.b32.xlu0 %v1402, 64
        %v1505 = vpop.permute.xlu0 %1504
        %v1506 = vmul.f32 %v1503, %v1499
        %v1507 = vmul.f32 %v1505, %v1499
        %v1508 = vmul.f32 %v1506, %v1494
        %v1509 = vmul.f32 %v1507, %v1495
        %v1510 = vadd.f32 %v1500, %v1508
        %v1511 = vadd.f32 %v1501, %v1509
        %v1512 = vpack.c.bf16 %v1511, %v1510
        %v1514 = vunpack.c.l.b16 %v1512
        %v1515 = vunpack.c.h.b16 %v1512
        %v1516 = vpack.c.b16 %v1514, %v1514
        %v1517 = vpack.c.b16 %v1515, %v1515
        %1520 = vst [vmem:[%s417] sm:$0xf] %v1516
        %1521 = vst [vmem:[%s417 + $0x8] sm:$0xf] %v1517
        %v1522 = vpack.c.bf16 %v1488, %v1484
        %v1524 = vunpack.c.l.b16 %v1522
        %v1525 = vunpack.c.h.b16 %v1522
        %v1526 = vpack.c.b16 %v1524, %v1524
        %v1527 = vpack.c.b16 %v1525, %v1525
        %1530 = vst [vmem:[%s424] sm:$0xf] %v1526
        %1531 = vst [vmem:[%s424 + $0x8] sm:$0xf] %v1527
        %v1532 = vmul.f32 %v1400, %v1492
        %v1533 = vmul.f32 %v1404, %v1493
        %1534 = vrot.lane.b32.xlu0 %v1400, 64
        %v1535 = vpop.permute.xlu0 %1534
        %1536 = vrot.lane.b32.xlu0 %v1404, 64
        %v1537 = vpop.permute.xlu0 %1536
        %v1538 = vmul.f32 %v1535, %v1499
        %v1539 = vmul.f32 %v1537, %v1499
        %v1540 = vmul.f32 %v1538, %v1494
        %v1541 = vmul.f32 %v1539, %v1495
        %v1542 = vadd.f32 %v1532, %v1540
        %v1543 = vadd.f32 %v1533, %v1541
        %v1544 = vpack.c.bf16 %v1543, %v1542
        %v1546 = vunpack.c.l.b16 %v1544
        %v1547 = vunpack.c.h.b16 %v1544
        %v1548 = vpack.c.b16 %v1546, %v1546
        %v1549 = vpack.c.b16 %v1547, %v1547
        %1552 = vst [vmem:[%s417 + $0x4] sm:$0xf] %v1548
        %1553 = vst [vmem:[%s417 + $0xc] sm:$0xf] %v1549
        %v1554 = vpack.c.bf16 %v1490, %v1486
        %v1556 = vunpack.c.l.b16 %v1554
        %v1557 = vunpack.c.h.b16 %v1554
        %v1558 = vpack.c.b16 %v1556, %v1556
        %v1559 = vpack.c.b16 %v1557, %v1557
        %1562 = vst [vmem:[%s424 + $0x4] sm:$0xf] %v1558
        %1563 = vst [vmem:[%s424 + $0xc] sm:$0xf] %v1559
        %s1564 = sand.u32 %s196, 1
        %s1565 = scalar_lea.sflag [#allocation4], %s1564
        %s1566 = sand.u32 %s196, 1
        %s1567 = smul.addr %s1566, 32
        %s1568 = scalar_lea.vmem [#allocation10], %s1567
        %s1569 = sand.u32 %s31, 1
        %s1570 = scalar_lea.sflag [#allocation12], %s1569
        %s1571 = sand.u32 %s224, 1
        %s1572 = smul.addr %s1571, 16
        %s1573 = scalar_lea.vmem [#allocation11], %s1572
        %s1574 = sand.u32 %s31, 1
        %s1575 = scalar_lea.sflag [#allocation12], %s1574
        %s1576 = sand.u32 %s252, 1
        %s1577 = smul.addr %s1576, 16
        %s1578 = scalar_lea.vmem [#allocation13], %s1577
        // Predicated region
        $region61: #{tpu_custom_call.1} parent=43 // pred_check
          %p1579 = pneg %p206
        $region62: #{tpu_custom_call.1} parent=43 // pred_check_branch
          %1581 = sbr.rel (%p1579) target = $region64
        $region63: #{tpu_custom_call.1} parent=43 // pred_region
          %s1582 = smul.u32 2, %s36
          %s1584 = ssub.s32 512, 512
          %1585 = vsyncadd %s1565, %s1584
          %s1586 = smul.addr %s1582, 4
          %s1587 = smul.addr %s35, 8
          %s1588 = sadd.s32 %s1586, %s1587
          %s1589 = smul.addr %s1588, 64
          %s1590 = scalar_lea.hbm %s6, %s1589
          %s1591 = sshll.u32 %s1568, 4
          %s1592 = int_to_ptr.vmem [resolvable:$true] %s1591
          %1597 = dma.vmem_to_hbm [thread:$0]  %s1592, 512, %s1590, %s1565, 256, 256, 16
        $region64: #{tpu_custom_call.1} parent=43 // pred_fallthru
          _
        // Predicated region
        $region65: #{tpu_custom_call.1} parent=43 // pred_check
          %p1598 = pneg %p234
        $region66: #{tpu_custom_call.1} parent=43 // pred_check_branch
          %1600 = sbr.rel (%p1598) target = $region68
        $region67: #{tpu_custom_call.1} parent=43 // pred_region
          %s1601 = smul.u32 2, %s36
          %s1603 = ssub.s32 256, 256
          %1604 = vsyncadd %s1570, %s1603
          %s1605 = smul.addr %s1601, 2
          %s1606 = smul.addr %s35, 4
          %s1607 = sadd.s32 %s1605, %s1606
          %s1608 = smul.addr %s1607, 64
          %s1609 = scalar_lea.hbm %s7, %s1608
          %s1610 = sshll.u32 %s1573, 4
          %s1611 = int_to_ptr.vmem [resolvable:$true] %s1610
          %1616 = dma.vmem_to_hbm [thread:$0]  %s1611, 256, %s1609, %s1570, 128, 128, 8
        $region68: #{tpu_custom_call.1} parent=43 // pred_fallthru
          _
        // Predicated region
        $region69: #{tpu_custom_call.1} parent=43 // pred_check
          %p1617 = pneg %p262
        $region70: #{tpu_custom_call.1} parent=43 // pred_check_branch
          %1619 = sbr.rel (%p1617) target = $region72
        $region71: #{tpu_custom_call.1} parent=43 // pred_region
          %s1620 = smul.u32 2, %s36
          %s1622 = ssub.s32 256, 256
          %1623 = vsyncadd %s1575, %s1622
          %s1624 = smul.addr %s1620, 2
          %s1625 = smul.addr %s35, 4
          %s1626 = sadd.s32 %s1624, %s1625
          %s1627 = smul.addr %s1626, 64
          %s1628 = scalar_lea.hbm %s8, %s1627
          %s1629 = sshll.u32 %s1578, 4
          %s1630 = int_to_ptr.vmem [resolvable:$true] %s1629
          %1635 = dma.vmem_to_hbm [thread:$0]  %s1630, 256, %s1628, %s1575, 128, 128, 8
        $region72: #{tpu_custom_call.1} parent=43 // pred_fallthru
          _
      $region44: #{tpu_custom_call.1} parent=5 // pred_fallthru
        _
      %p1636 = scmp.le.s32.totalorder 2, %s26
      // Predicated region
      $region73: #{tpu_custom_call.1} parent=5 // pred_check
        %p1637 = pneg %p1636
      $region74: #{tpu_custom_call.1} parent=5 // pred_check_branch
        %1639 = sbr.rel (%p1637) target = $region76
      $region75: #{tpu_custom_call.1} parent=5 // pred_region
        %s1640 = ssub.s32 %s26, 2
        // Predicated region
        $region77: #{tpu_custom_call.1} parent=75 // pred_check
          %p1641 = pneg %p212
        $region78: #{tpu_custom_call.1} parent=75 // pred_check_branch
          %1643 = sbr.rel (%p1641) target = $region80
        $region79: #{tpu_custom_call.1} parent=75 // pred_region
          %s1644 = sand.u32 %s197, 1
          %s1645 = scalar_lea.sflag [#allocation4], %s1644
          %s1646 = sand.u32 %s197, 1
          %s1647 = smul.addr %s1646, 32
          %s1648 = scalar_lea.vmem [#allocation10], %s1647
          %1649 = dma.done %s1645, 512
        $region80: #{tpu_custom_call.1} parent=75 // pred_fallthru
          _
        // Predicated region
        $region81: #{tpu_custom_call.1} parent=75 // pred_check
          %p1650 = pneg %p240
        $region82: #{tpu_custom_call.1} parent=75 // pred_check_branch
          %1652 = sbr.rel (%p1650) target = $region84
        $region83: #{tpu_custom_call.1} parent=75 // pred_region
          %s1653 = sand.u32 %s32, 1
          %s1654 = scalar_lea.sflag [#allocation12], %s1653
          %s1655 = sand.u32 %s225, 1
          %s1656 = smul.addr %s1655, 16
          %s1657 = scalar_lea.vmem [#allocation11], %s1656
          %1658 = dma.done %s1654, 256
        $region84: #{tpu_custom_call.1} parent=75 // pred_fallthru
          _
        // Predicated region
        $region85: #{tpu_custom_call.1} parent=75 // pred_check
          %p1659 = pneg %p268
        $region86: #{tpu_custom_call.1} parent=75 // pred_check_branch
          %1661 = sbr.rel (%p1659) target = $region88
        $region87: #{tpu_custom_call.1} parent=75 // pred_region
          %s1662 = sand.u32 %s32, 1
          %s1663 = scalar_lea.sflag [#allocation12], %s1662
          %s1664 = sand.u32 %s253, 1
          %s1665 = smul.addr %s1664, 16
          %s1666 = scalar_lea.vmem [#allocation13], %s1665
          %1667 = dma.done %s1663, 256
        $region88: #{tpu_custom_call.1} parent=75 // pred_fallthru
          _
      $region76: #{tpu_custom_call.1} parent=5 // pred_fallthru
        _
    $region6: #{tpu_custom_call.1} parent=1 // loop_footer
      %s30 = sadd.s32 1, %s26
    $region7: #{tpu_custom_call.1} parent=1 // loop_footer_branch
      %25 = sbr.rel target = $region3
    $region8: #{tpu_custom_call.1} parent=1 // loop_exit
      _
    %1668 = vsyncpa [#allocation3], 1
    %s1669 = scalar_lea.sflag [#allocation3], 1
    %1670 = vsyncpa %s1669, 1
    %1671 = vsyncpa [#allocation6], 1
    %1672 = vsyncpa [#allocation9], 1
    %1673 = vsyncpa [#allocation4], 1
    %s1674 = scalar_lea.sflag [#allocation4], 1
    %1675 = vsyncpa %s1674, 1
    %1676 = vsyncpa [#allocation12], 1
    %s1677 = scalar_lea.sflag [#allocation12], 1
    %1678 = vsyncpa %s1677, 1

</llo_original>
